<compile_context>
chip_gen: v7x
topology: tpu7x:2x2x1
jax: 0.10.0
libtpu: 0.0.40
codegen_flags: <defaults>
</compile_context>

<pallas_src>
import functools

import jax
import jax.numpy as jnp
from jax.experimental import pallas as pl
from jax.experimental.pallas import tpu as pltpu


def _softmax_last(s):
    m = jnp.max(s, axis=-1, keepdims=True)
    e = jnp.exp(s - m)
    return e * pl.reciprocal(jnp.sum(e, axis=-1, keepdims=True), approx=True)


def _layer_norm(v, g, b, eps=1e-5):
    mu = jnp.mean(v, axis=-1, keepdims=True)
    c = v - mu
    var = jnp.mean(c * c, axis=-1, keepdims=True)
    return c * jax.lax.rsqrt(var + eps) * g + b


def encoder_layer_kernel(
    x_ref, wqkv_ref, bqkv_ref, wo_ref, w1_ref, b1_ref, w2_ref, vecs_ref,
    out_ref, *, h, d_k, d_v,
):
    Bt, N, D = x_ref.shape
    hk, hv = h * d_k, h * d_v
    bf16, f32 = jnp.bfloat16, jnp.float32

    x3 = x_ref[...].astype(f32)                  # (Bt, N, D)
    x2 = x3.reshape(Bt * N, D)                   # leading-dim merge (cheap)

    # ------- fused QKV projection for spatial + channel attention ---------
    qkv = jnp.dot(x2.astype(bf16), wqkv_ref[...],
                  preferred_element_type=f32) + bqkv_ref[...]

    def split(off, width):
        return qkv[:, off:off + width].reshape(Bt, N, width)

    q = split(0, hk)
    k = split(hk, hk)
    v = split(2 * hk, hv)
    cq = split(2 * hk + hv, hk)
    ck = split(3 * hk + hv, hk)
    cv = split(4 * hk + hv, hv)

    heads = []

    # ------- spatial multi-head self-attention (batched over Bt) ----------
    scale_s = 1.0 / (d_k ** 0.5)
    for i in range(h):
        qh = q[:, :, i * d_k:(i + 1) * d_k].astype(bf16)
        kh = k[:, :, i * d_k:(i + 1) * d_k].astype(bf16)
        vh = v[:, :, i * d_v:(i + 1) * d_v].astype(bf16)
        s = jnp.einsum('bqd,bkd->bqk', qh, kh,
                       preferred_element_type=f32) * scale_s
        p = _softmax_last(s)                                   # (Bt, N, N)
        heads.append(jnp.einsum('bqk,bkd->bqd', p.astype(bf16), vh,
                                preferred_element_type=f32))   # (Bt, N, d_v)

    # ------- channel (cross-covariance) attention (batched over Bt) -------
    scale_c = 1.0 / (N ** 0.5)
    for i in range(h):
        qh = cq[:, :, i * d_k:(i + 1) * d_k]
        kh = ck[:, :, i * d_k:(i + 1) * d_k].astype(bf16)
        vh = cv[:, :, i * d_v:(i + 1) * d_v].astype(bf16)
        qhT = jnp.swapaxes(qh, 1, 2).astype(bf16)              # (Bt, d_k, N)
        s = jnp.einsum('bdn,bne->bde', qhT, kh,
                       preferred_element_type=f32) * scale_c   # (Bt, d_k, d_k)
        p = _softmax_last(s)
        pT = jnp.swapaxes(p, 1, 2).astype(bf16)                # (Bt, e, d)
        heads.append(jnp.einsum('bne,bed->bnd', vh, pT,
                                preferred_element_type=f32))   # (Bt, N, d_v)

    # ------- single fused output projection: att + catt in ONE matmul -----
    o_all = jnp.concatenate(heads, axis=-1).reshape(Bt * N, 2 * hv)
    att = jnp.dot(o_all.astype(bf16), wo_ref[...],
                  preferred_element_type=f32) + vecs_ref[0:1, :]  # bo + cbo

    # ------- residual + LayerNorm 1 ----------------------------------------
    y = _layer_norm(x2 + att, vecs_ref[1:2, :], vecs_ref[2:3, :])

    # ------- position-wise feed-forward (with its own LayerNorm) -----------
    h1 = jnp.dot(y.astype(bf16), w1_ref[...],
                 preferred_element_type=f32) + b1_ref[...]
    h1 = jnp.maximum(h1, 0.0)
    ff = jnp.dot(h1.astype(bf16), w2_ref[...],
                 preferred_element_type=f32) + vecs_ref[3:4, :]
    out = _layer_norm(y + ff, vecs_ref[4:5, :], vecs_ref[5:6, :])

    out_ref[...] = out.reshape(Bt, N, D).astype(out_ref.dtype)


def pack_params(params):
    """Pack 24 small arrays into 7 (weights bf16 for the MXU, the rest f32)."""
    (wq, bq, wk, bk, wv, bv, wo, bo,
     cwq, cbq, cwk, cbk, cwv, cbv, cwo, cbo,
     g1, be1, w1, b1f, w2, b2f, g2, be2) = params
    f32, bf16 = jnp.float32, jnp.bfloat16
    w_qkv = jnp.concatenate([wq, wk, wv, cwq, cwk, cwv], axis=1).astype(bf16)
    b_qkv = jnp.concatenate([bq, bk, bv, cbq, cbk, cbv], axis=1).astype(f32)
    w_o = jnp.concatenate([wo, cwo], axis=0).astype(bf16)
    vecs = jnp.concatenate([bo + cbo, g1, be1, b2f, g2, be2],
                           axis=0).astype(f32)
    return (w_qkv, b_qkv, w_o, w1.astype(bf16), b1f.astype(f32),
            w2.astype(bf16), vecs)


def encoder_layer(x, params, *, h, d_k, d_v, block_b=None):
    """x: (B, N, D) float32; params: flat list of 24 2-D arrays (torch layout)."""
    B, N, D = x.shape
    assert d_k == d_v, "channel attention (as in the reference) needs d_k == d_v"
    if block_b is None:
        block_b = B                      # toy sizes: whole batch per grid step
    assert B % block_b == 0
    packed = pack_params(params)

    kernel = functools.partial(encoder_layer_kernel, h=h, d_k=d_k, d_v=d_v)
    in_specs = [pl.BlockSpec((block_b, N, D), lambda b: (b, 0, 0))]
    in_specs += [pl.BlockSpec(p.shape, lambda b: (0, 0)) for p in packed]

    return pl.pallas_call(
        kernel,
        out_shape=jax.ShapeDtypeStruct((B, N, D), jnp.float32),
        grid=(B // block_b,),
        in_specs=in_specs,
        out_specs=pl.BlockSpec((block_b, N, D), lambda b: (b, 0, 0)),
        compiler_params=pltpu.CompilerParams(
            dimension_semantics=("parallel",)),   # v7x: shard batch over 2 TCs
    )(x, *packed)


# ----------------------------- pure-JAX reference --------------------------
def reference(x, params, *, h, d_k, d_v):
    (wq, bq, wk, bk, wv, bv, wo, bo,
     cwq, cbq, cwk, cbk, cwv, cbv, cwo, cbo,
     g1, be1, w1, b1f, w2, b2f, g2, be2) = params
    B, N, D = x.shape

    def ln(v, g, b, eps=1e-5):
        mu = jnp.mean(v, axis=-1, keepdims=True)
        var = jnp.mean((v - mu) ** 2, axis=-1, keepdims=True)
        return (v - mu) / jnp.sqrt(var + eps) * g + b

    # spatial MHA
    q = (x @ wq + bq).reshape(B, N, h, d_k).transpose(0, 2, 1, 3)
    k = (x @ wk + bk).reshape(B, N, h, d_k).transpose(0, 2, 1, 3)
    v = (x @ wv + bv).reshape(B, N, h, d_v).transpose(0, 2, 1, 3)
    s = jnp.einsum('bhqd,bhkd->bhqk', q, k) / jnp.sqrt(jnp.float32(d_k))
    p = jax.nn.softmax(s, axis=-1)
    o = jnp.einsum('bhqk,bhkd->bhqd', p, v).transpose(0, 2, 1, 3)
    att = o.reshape(B, N, h * d_v) @ wo + bo

    # channel attention
    cq = (x @ cwq + cbq).reshape(B, N, h, d_k).transpose(0, 2, 1, 3)
    ck = (x @ cwk + cbk).reshape(B, N, h, d_k).transpose(0, 2, 1, 3)
    cv = (x @ cwv + cbv).reshape(B, N, h, d_v).transpose(0, 2, 1, 3)
    cs = jnp.einsum('bhnd,bhne->bhde', cq, ck) / jnp.sqrt(jnp.float32(N))
    cp = jax.nn.softmax(cs, axis=-1)
    co = jnp.einsum('bhde,bhne->bhnd', cp, cv).transpose(0, 2, 1, 3)
    catt = co.reshape(B, N, h * d_v) @ cwo + cbo

    y = ln(x + att + catt, g1, be1)
    ff = jnp.maximum(y @ w1 + b1f, 0.0) @ w2 + b2f
    return ln(y + ff, g2, be2)


if __name__ == "__main__":
    B, N, D = 4, 8, 32
    h, d_k, d_v, d_ff = 4, 8, 8, 64

    key = jax.random.PRNGKey(0)
    keys = jax.random.split(key, 32)

    def w(kk, shape, scale=0.05):
        return scale * jax.random.normal(kk, shape, dtype=jnp.float32)

    params = [
        # MultiHeadAttention: fc_q, fc_k, fc_v, fc_o
        w(keys[0], (D, h * d_k)), w(keys[1], (1, h * d_k)),
        w(keys[2], (D, h * d_k)), w(keys[3], (1, h * d_k)),
        w(keys[4], (D, h * d_v)), w(keys[5], (1, h * d_v)),
        w(keys[6], (h * d_v, D)), w(keys[7], (1, D)),
        # ChannelAttention: fc_q, fc_k, fc_v, fc_o
        w(keys[8], (D, h * d_k)), w(keys[9], (1, h * d_k)),
        w(keys[10], (D, h * d_k)), w(keys[11], (1, h * d_k)),
        w(keys[12], (D, h * d_v)), w(keys[13], (1, h * d_v)),
        w(keys[14], (h * d_v, D)), w(keys[15], (1, D)),
        # lnorm1 (gamma, beta)
        1.0 + w(keys[16], (1, D)), w(keys[17], (1, D)),
        # pwff fc1 / fc2
        w(keys[18], (D, d_ff)), w(keys[19], (1, d_ff)),
        w(keys[20], (d_ff, D)), w(keys[21], (1, D)),
        # pwff layer_norm (gamma, beta)
        1.0 + w(keys[22], (1, D)), w(keys[23], (1, D)),
    ]

    x = jax.random.normal(keys[24], (B, N, D), dtype=jnp.float32)

    # block_b=2 -> grid of 2 "parallel" steps, 2 batch elements (16 rows) each.
    out = encoder_layer(x, params, h=h, d_k=d_k, d_v=d_v, block_b=2)
    out = jax.block_until_ready(out)

    ref = reference(x, params, h=h, d_k=d_k, d_v=d_v)
    assert out.shape == (B, N, D)
    # Tolerance loosened vs. the pure-f32 version: MXU operands are bf16
    # (f32 accumulate), so ~1e-2 absolute error vs. the f32 reference is expected.
    if not jnp.allclose(out, ref, atol=5e-2, rtol=5e-2):
        raise AssertionError(
            f"kernel/reference mismatch, max abs err "
            f"{float(jnp.max(jnp.abs(out - ref)))}")

    print("KERNEL_OK")
</pallas_src>

<mosaic_0001>
module attributes {stable_mosaic.version = 11 : i64} {
  func.func @encoder_layer_kernel(%arg0: i32, %arg1: memref<2x8x32xf32, #tpu.memory_space<vmem>>, %arg2: memref<32x192xbf16, #tpu.memory_space<vmem>>, %arg3: memref<1x192xf32, #tpu.memory_space<vmem>>, %arg4: memref<64x32xbf16, #tpu.memory_space<vmem>>, %arg5: memref<32x64xbf16, #tpu.memory_space<vmem>>, %arg6: memref<1x64xf32, #tpu.memory_space<vmem>>, %arg7: memref<64x32xbf16, #tpu.memory_space<vmem>>, %arg8: memref<6x32xf32, #tpu.memory_space<vmem>>, %arg9: memref<2x8x32xf32, #tpu.memory_space<vmem>>) attributes {dimension_semantics = [#tpu.dimension_semantics<parallel>], iteration_bounds = array<i64: 2>, scalar_prefetch = 0 : i64, scratch_operands = 0 : i64, tpu.core_type = #tpu.core_type<tc>, window_params = [{transform_indices = @transform_0, window_bounds = array<i64: 2, 8, 32>}, {pipeline_mode = #tpu.pipeline_mode<synchronous>, transform_indices = @transform_1, window_bounds = array<i64: 32, 192>}, {pipeline_mode = #tpu.pipeline_mode<synchronous>, transform_indices = @transform_2, window_bounds = array<i64: 1, 192>}, {pipeline_mode = #tpu.pipeline_mode<synchronous>, transform_indices = @transform_3, window_bounds = array<i64: 64, 32>}, {pipeline_mode = #tpu.pipeline_mode<synchronous>, transform_indices = @transform_4, window_bounds = array<i64: 32, 64>}, {pipeline_mode = #tpu.pipeline_mode<synchronous>, transform_indices = @transform_5, window_bounds = array<i64: 1, 64>}, {pipeline_mode = #tpu.pipeline_mode<synchronous>, transform_indices = @transform_6, window_bounds = array<i64: 64, 32>}, {pipeline_mode = #tpu.pipeline_mode<synchronous>, transform_indices = @transform_7, window_bounds = array<i64: 6, 32>}, {transform_indices = @transform_8, window_bounds = array<i64: 2, 8, 32>}]} {
    %c0 = arith.constant 0 : index
    %c0_0 = arith.constant 0 : index
    %c0_1 = arith.constant 0 : index
    %0 = vector.load %arg1[%c0, %c0_0, %c0_1] : memref<2x8x32xf32, #tpu.memory_space<vmem>>, vector<2x8x32xf32>
    %1 = vector.shape_cast %0 : vector<2x8x32xf32> to vector<16x32xf32>
    %2 = arith.truncf %1 : vector<16x32xf32> to vector<16x32xbf16>
    %c0_2 = arith.constant 0 : index
    %c0_3 = arith.constant 0 : index
    %3 = vector.load %arg2[%c0_2, %c0_3] : memref<32x192xbf16, #tpu.memory_space<vmem>>, vector<32x192xbf16>
    %cst = arith.constant dense<0.000000e+00> : vector<16x192xf32>
    %4 = tpu.matmul %2, %3, %cst {dimension_numbers = #tpu.dot_dimension_numbers<[1], [0], [0], [1], [0, 0, 1, 1], [], []>} : vector<16x32xbf16>, vector<32x192xbf16>, vector<16x192xf32> -> vector<16x192xf32>
    %c0_4 = arith.constant 0 : index
    %c0_5 = arith.constant 0 : index
    %5 = vector.load %arg3[%c0_4, %c0_5] : memref<1x192xf32, #tpu.memory_space<vmem>>, vector<1x192xf32>
    %6 = vector.broadcast %5 : vector<1x192xf32> to vector<16x192xf32>
    %7 = arith.addf %4, %6 : vector<16x192xf32>
    %8 = vector.extract_strided_slice %7 {offsets = [0, 0], sizes = [16, 32], strides = [1, 1]} : vector<16x192xf32> to vector<16x32xf32>
    %9 = vector.shape_cast %8 : vector<16x32xf32> to vector<2x8x32xf32>
    %10 = vector.extract_strided_slice %7 {offsets = [0, 32], sizes = [16, 32], strides = [1, 1]} : vector<16x192xf32> to vector<16x32xf32>
    %11 = vector.shape_cast %10 : vector<16x32xf32> to vector<2x8x32xf32>
    %12 = vector.extract_strided_slice %7 {offsets = [0, 64], sizes = [16, 32], strides = [1, 1]} : vector<16x192xf32> to vector<16x32xf32>
    %13 = vector.shape_cast %12 : vector<16x32xf32> to vector<2x8x32xf32>
    %14 = vector.extract_strided_slice %7 {offsets = [0, 96], sizes = [16, 32], strides = [1, 1]} : vector<16x192xf32> to vector<16x32xf32>
    %15 = vector.shape_cast %14 : vector<16x32xf32> to vector<2x8x32xf32>
    %16 = vector.extract_strided_slice %7 {offsets = [0, 128], sizes = [16, 32], strides = [1, 1]} : vector<16x192xf32> to vector<16x32xf32>
    %17 = vector.shape_cast %16 : vector<16x32xf32> to vector<2x8x32xf32>
    %18 = vector.extract_strided_slice %7 {offsets = [0, 160], sizes = [16, 32], strides = [1, 1]} : vector<16x192xf32> to vector<16x32xf32>
    %19 = vector.shape_cast %18 : vector<16x32xf32> to vector<2x8x32xf32>
    %20 = vector.extract_strided_slice %9 {offsets = [0, 0, 0], sizes = [2, 8, 8], strides = [1, 1, 1]} : vector<2x8x32xf32> to vector<2x8x8xf32>
    %21 = arith.truncf %20 : vector<2x8x8xf32> to vector<2x8x8xbf16>
    %22 = vector.extract_strided_slice %11 {offsets = [0, 0, 0], sizes = [2, 8, 8], strides = [1, 1, 1]} : vector<2x8x32xf32> to vector<2x8x8xf32>
    %23 = arith.truncf %22 : vector<2x8x8xf32> to vector<2x8x8xbf16>
    %24 = vector.extract_strided_slice %13 {offsets = [0, 0, 0], sizes = [2, 8, 8], strides = [1, 1, 1]} : vector<2x8x32xf32> to vector<2x8x8xf32>
    %25 = arith.truncf %24 : vector<2x8x8xf32> to vector<2x8x8xbf16>
    "tpu.trace_start"() <{level = 10 : i32, message = "bqd,bkd->bqk"}> : () -> ()
    %cst_6 = arith.constant dense<0.000000e+00> : vector<2x8x8xf32>
    %26 = tpu.matmul %21, %23, %cst_6 {dimension_numbers = #tpu.dot_dimension_numbers<[2], [2], [1], [1], [0, 0, 0, 1, 1, 1], [0], [0]>} : vector<2x8x8xbf16>, vector<2x8x8xbf16>, vector<2x8x8xf32> -> vector<2x8x8xf32>
    "tpu.trace_stop"() : () -> ()
    %cst_7 = arith.constant 0.353553385 : f32
    %27 = vector.broadcast %cst_7 : f32 to vector<2x8x8xf32>
    %28 = arith.mulf %26, %27 : vector<2x8x8xf32>
    %cst_8 = arith.constant dense<0xFF800000> : vector<2x8xf32>
    %29 = vector.multi_reduction <maximumf>, %28, %cst_8 [2] : vector<2x8x8xf32> to vector<2x8xf32>
    %30 = vector.shape_cast %29 : vector<2x8xf32> to vector<2x8x1xf32>
    %31 = vector.broadcast %30 : vector<2x8x1xf32> to vector<2x8x8xf32>
    %32 = arith.subf %28, %31 : vector<2x8x8xf32>
    %33 = math.exp %32 : vector<2x8x8xf32>
    %cst_9 = arith.constant dense<0.000000e+00> : vector<2x8xf32>
    %34 = vector.multi_reduction <add>, %33, %cst_9 [2] : vector<2x8x8xf32> to vector<2x8xf32>
    %35 = vector.shape_cast %34 : vector<2x8xf32> to vector<2x8x1xf32>
    %36 = tpu.reciprocal %35 {approx = true} : vector<2x8x1xf32> -> vector<2x8x1xf32>
    %37 = vector.broadcast %36 : vector<2x8x1xf32> to vector<2x8x8xf32>
    %38 = arith.mulf %33, %37 : vector<2x8x8xf32>
    %39 = arith.truncf %38 : vector<2x8x8xf32> to vector<2x8x8xbf16>
    "tpu.trace_start"() <{level = 10 : i32, message = "bqk,bkd->bqd"}> : () -> ()
    %cst_10 = arith.constant dense<0.000000e+00> : vector<2x8x8xf32>
    %40 = tpu.matmul %39, %25, %cst_10 {dimension_numbers = #tpu.dot_dimension_numbers<[2], [1], [1], [2], [0, 0, 0, 1, 1, 2], [0], [0]>} : vector<2x8x8xbf16>, vector<2x8x8xbf16>, vector<2x8x8xf32> -> vector<2x8x8xf32>
    "tpu.trace_stop"() : () -> ()
    %41 = vector.extract_strided_slice %9 {offsets = [0, 0, 8], sizes = [2, 8, 8], strides = [1, 1, 1]} : vector<2x8x32xf32> to vector<2x8x8xf32>
    %42 = arith.truncf %41 : vector<2x8x8xf32> to vector<2x8x8xbf16>
    %43 = vector.extract_strided_slice %11 {offsets = [0, 0, 8], sizes = [2, 8, 8], strides = [1, 1, 1]} : vector<2x8x32xf32> to vector<2x8x8xf32>
    %44 = arith.truncf %43 : vector<2x8x8xf32> to vector<2x8x8xbf16>
    %45 = vector.extract_strided_slice %13 {offsets = [0, 0, 8], sizes = [2, 8, 8], strides = [1, 1, 1]} : vector<2x8x32xf32> to vector<2x8x8xf32>
    %46 = arith.truncf %45 : vector<2x8x8xf32> to vector<2x8x8xbf16>
    "tpu.trace_start"() <{level = 10 : i32, message = "bqd,bkd->bqk"}> : () -> ()
    %cst_11 = arith.constant dense<0.000000e+00> : vector<2x8x8xf32>
    %47 = tpu.matmul %42, %44, %cst_11 {dimension_numbers = #tpu.dot_dimension_numbers<[2], [2], [1], [1], [0, 0, 0, 1, 1, 1], [0], [0]>} : vector<2x8x8xbf16>, vector<2x8x8xbf16>, vector<2x8x8xf32> -> vector<2x8x8xf32>
    "tpu.trace_stop"() : () -> ()
    %cst_12 = arith.constant 0.353553385 : f32
    %48 = vector.broadcast %cst_12 : f32 to vector<2x8x8xf32>
    %49 = arith.mulf %47, %48 : vector<2x8x8xf32>
    %cst_13 = arith.constant dense<0xFF800000> : vector<2x8xf32>
    %50 = vector.multi_reduction <maximumf>, %49, %cst_13 [2] : vector<2x8x8xf32> to vector<2x8xf32>
    %51 = vector.shape_cast %50 : vector<2x8xf32> to vector<2x8x1xf32>
    %52 = vector.broadcast %51 : vector<2x8x1xf32> to vector<2x8x8xf32>
    %53 = arith.subf %49, %52 : vector<2x8x8xf32>
    %54 = math.exp %53 : vector<2x8x8xf32>
    %cst_14 = arith.constant dense<0.000000e+00> : vector<2x8xf32>
    %55 = vector.multi_reduction <add>, %54, %cst_14 [2] : vector<2x8x8xf32> to vector<2x8xf32>
    %56 = vector.shape_cast %55 : vector<2x8xf32> to vector<2x8x1xf32>
    %57 = tpu.reciprocal %56 {approx = true} : vector<2x8x1xf32> -> vector<2x8x1xf32>
    %58 = vector.broadcast %57 : vector<2x8x1xf32> to vector<2x8x8xf32>
    %59 = arith.mulf %54, %58 : vector<2x8x8xf32>
    %60 = arith.truncf %59 : vector<2x8x8xf32> to vector<2x8x8xbf16>
    "tpu.trace_start"() <{level = 10 : i32, message = "bqk,bkd->bqd"}> : () -> ()
    %cst_15 = arith.constant dense<0.000000e+00> : vector<2x8x8xf32>
    %61 = tpu.matmul %60, %46, %cst_15 {dimension_numbers = #tpu.dot_dimension_numbers<[2], [1], [1], [2], [0, 0, 0, 1, 1, 2], [0], [0]>} : vector<2x8x8xbf16>, vector<2x8x8xbf16>, vector<2x8x8xf32> -> vector<2x8x8xf32>
    "tpu.trace_stop"() : () -> ()
    %62 = vector.extract_strided_slice %9 {offsets = [0, 0, 16], sizes = [2, 8, 8], strides = [1, 1, 1]} : vector<2x8x32xf32> to vector<2x8x8xf32>
    %63 = arith.truncf %62 : vector<2x8x8xf32> to vector<2x8x8xbf16>
    %64 = vector.extract_strided_slice %11 {offsets = [0, 0, 16], sizes = [2, 8, 8], strides = [1, 1, 1]} : vector<2x8x32xf32> to vector<2x8x8xf32>
    %65 = arith.truncf %64 : vector<2x8x8xf32> to vector<2x8x8xbf16>
    %66 = vector.extract_strided_slice %13 {offsets = [0, 0, 16], sizes = [2, 8, 8], strides = [1, 1, 1]} : vector<2x8x32xf32> to vector<2x8x8xf32>
    %67 = arith.truncf %66 : vector<2x8x8xf32> to vector<2x8x8xbf16>
    "tpu.trace_start"() <{level = 10 : i32, message = "bqd,bkd->bqk"}> : () -> ()
    %cst_16 = arith.constant dense<0.000000e+00> : vector<2x8x8xf32>
    %68 = tpu.matmul %63, %65, %cst_16 {dimension_numbers = #tpu.dot_dimension_numbers<[2], [2], [1], [1], [0, 0, 0, 1, 1, 1], [0], [0]>} : vector<2x8x8xbf16>, vector<2x8x8xbf16>, vector<2x8x8xf32> -> vector<2x8x8xf32>
    "tpu.trace_stop"() : () -> ()
    %cst_17 = arith.constant 0.353553385 : f32
    %69 = vector.broadcast %cst_17 : f32 to vector<2x8x8xf32>
    %70 = arith.mulf %68, %69 : vector<2x8x8xf32>
    %cst_18 = arith.constant dense<0xFF800000> : vector<2x8xf32>
    %71 = vector.multi_reduction <maximumf>, %70, %cst_18 [2] : vector<2x8x8xf32> to vector<2x8xf32>
    %72 = vector.shape_cast %71 : vector<2x8xf32> to vector<2x8x1xf32>
    %73 = vector.broadcast %72 : vector<2x8x1xf32> to vector<2x8x8xf32>
    %74 = arith.subf %70, %73 : vector<2x8x8xf32>
    %75 = math.exp %74 : vector<2x8x8xf32>
    %cst_19 = arith.constant dense<0.000000e+00> : vector<2x8xf32>
    %76 = vector.multi_reduction <add>, %75, %cst_19 [2] : vector<2x8x8xf32> to vector<2x8xf32>
    %77 = vector.shape_cast %76 : vector<2x8xf32> to vector<2x8x1xf32>
    %78 = tpu.reciprocal %77 {approx = true} : vector<2x8x1xf32> -> vector<2x8x1xf32>
    %79 = vector.broadcast %78 : vector<2x8x1xf32> to vector<2x8x8xf32>
    %80 = arith.mulf %75, %79 : vector<2x8x8xf32>
    %81 = arith.truncf %80 : vector<2x8x8xf32> to vector<2x8x8xbf16>
    "tpu.trace_start"() <{level = 10 : i32, message = "bqk,bkd->bqd"}> : () -> ()
    %cst_20 = arith.constant dense<0.000000e+00> : vector<2x8x8xf32>
    %82 = tpu.matmul %81, %67, %cst_20 {dimension_numbers = #tpu.dot_dimension_numbers<[2], [1], [1], [2], [0, 0, 0, 1, 1, 2], [0], [0]>} : vector<2x8x8xbf16>, vector<2x8x8xbf16>, vector<2x8x8xf32> -> vector<2x8x8xf32>
    "tpu.trace_stop"() : () -> ()
    %83 = vector.extract_strided_slice %9 {offsets = [0, 0, 24], sizes = [2, 8, 8], strides = [1, 1, 1]} : vector<2x8x32xf32> to vector<2x8x8xf32>
    %84 = arith.truncf %83 : vector<2x8x8xf32> to vector<2x8x8xbf16>
    %85 = vector.extract_strided_slice %11 {offsets = [0, 0, 24], sizes = [2, 8, 8], strides = [1, 1, 1]} : vector<2x8x32xf32> to vector<2x8x8xf32>
    %86 = arith.truncf %85 : vector<2x8x8xf32> to vector<2x8x8xbf16>
    %87 = vector.extract_strided_slice %13 {offsets = [0, 0, 24], sizes = [2, 8, 8], strides = [1, 1, 1]} : vector<2x8x32xf32> to vector<2x8x8xf32>
    %88 = arith.truncf %87 : vector<2x8x8xf32> to vector<2x8x8xbf16>
    "tpu.trace_start"() <{level = 10 : i32, message = "bqd,bkd->bqk"}> : () -> ()
    %cst_21 = arith.constant dense<0.000000e+00> : vector<2x8x8xf32>
    %89 = tpu.matmul %84, %86, %cst_21 {dimension_numbers = #tpu.dot_dimension_numbers<[2], [2], [1], [1], [0, 0, 0, 1, 1, 1], [0], [0]>} : vector<2x8x8xbf16>, vector<2x8x8xbf16>, vector<2x8x8xf32> -> vector<2x8x8xf32>
    "tpu.trace_stop"() : () -> ()
    %cst_22 = arith.constant 0.353553385 : f32
    %90 = vector.broadcast %cst_22 : f32 to vector<2x8x8xf32>
    %91 = arith.mulf %89, %90 : vector<2x8x8xf32>
    %cst_23 = arith.constant dense<0xFF800000> : vector<2x8xf32>
    %92 = vector.multi_reduction <maximumf>, %91, %cst_23 [2] : vector<2x8x8xf32> to vector<2x8xf32>
    %93 = vector.shape_cast %92 : vector<2x8xf32> to vector<2x8x1xf32>
    %94 = vector.broadcast %93 : vector<2x8x1xf32> to vector<2x8x8xf32>
    %95 = arith.subf %91, %94 : vector<2x8x8xf32>
    %96 = math.exp %95 : vector<2x8x8xf32>
    %cst_24 = arith.constant dense<0.000000e+00> : vector<2x8xf32>
    %97 = vector.multi_reduction <add>, %96, %cst_24 [2] : vector<2x8x8xf32> to vector<2x8xf32>
    %98 = vector.shape_cast %97 : vector<2x8xf32> to vector<2x8x1xf32>
    %99 = tpu.reciprocal %98 {approx = true} : vector<2x8x1xf32> -> vector<2x8x1xf32>
    %100 = vector.broadcast %99 : vector<2x8x1xf32> to vector<2x8x8xf32>
    %101 = arith.mulf %96, %100 : vector<2x8x8xf32>
    %102 = arith.truncf %101 : vector<2x8x8xf32> to vector<2x8x8xbf16>
    "tpu.trace_start"() <{level = 10 : i32, message = "bqk,bkd->bqd"}> : () -> ()
    %cst_25 = arith.constant dense<0.000000e+00> : vector<2x8x8xf32>
    %103 = tpu.matmul %102, %88, %cst_25 {dimension_numbers = #tpu.dot_dimension_numbers<[2], [1], [1], [2], [0, 0, 0, 1, 1, 2], [0], [0]>} : vector<2x8x8xbf16>, vector<2x8x8xbf16>, vector<2x8x8xf32> -> vector<2x8x8xf32>
    "tpu.trace_stop"() : () -> ()
    %104 = vector.extract_strided_slice %15 {offsets = [0, 0, 0], sizes = [2, 8, 8], strides = [1, 1, 1]} : vector<2x8x32xf32> to vector<2x8x8xf32>
    %105 = vector.extract_strided_slice %17 {offsets = [0, 0, 0], sizes = [2, 8, 8], strides = [1, 1, 1]} : vector<2x8x32xf32> to vector<2x8x8xf32>
    %106 = arith.truncf %105 : vector<2x8x8xf32> to vector<2x8x8xbf16>
    %107 = vector.extract_strided_slice %19 {offsets = [0, 0, 0], sizes = [2, 8, 8], strides = [1, 1, 1]} : vector<2x8x32xf32> to vector<2x8x8xf32>
    %108 = arith.truncf %107 : vector<2x8x8xf32> to vector<2x8x8xbf16>
    %109 = tpu.transpose %104, [0, 2, 1] : vector<2x8x8xf32> -> vector<2x8x8xf32>
    %110 = arith.truncf %109 : vector<2x8x8xf32> to vector<2x8x8xbf16>
    "tpu.trace_start"() <{level = 10 : i32, message = "bdn,bne->bde"}> : () -> ()
    %cst_26 = arith.constant dense<0.000000e+00> : vector<2x8x8xf32>
    %111 = tpu.matmul %110, %106, %cst_26 {dimension_numbers = #tpu.dot_dimension_numbers<[2], [1], [1], [2], [0, 0, 0, 1, 1, 2], [0], [0]>} : vector<2x8x8xbf16>, vector<2x8x8xbf16>, vector<2x8x8xf32> -> vector<2x8x8xf32>
    "tpu.trace_stop"() : () -> ()
    %cst_27 = arith.constant 0.353553385 : f32
    %112 = vector.broadcast %cst_27 : f32 to vector<2x8x8xf32>
    %113 = arith.mulf %111, %112 : vector<2x8x8xf32>
    %cst_28 = arith.constant dense<0xFF800000> : vector<2x8xf32>
    %114 = vector.multi_reduction <maximumf>, %113, %cst_28 [2] : vector<2x8x8xf32> to vector<2x8xf32>
    %115 = vector.shape_cast %114 : vector<2x8xf32> to vector<2x8x1xf32>
    %116 = vector.broadcast %115 : vector<2x8x1xf32> to vector<2x8x8xf32>
    %117 = arith.subf %113, %116 : vector<2x8x8xf32>
    %118 = math.exp %117 : vector<2x8x8xf32>
    %cst_29 = arith.constant dense<0.000000e+00> : vector<2x8xf32>
    %119 = vector.multi_reduction <add>, %118, %cst_29 [2] : vector<2x8x8xf32> to vector<2x8xf32>
    %120 = vector.shape_cast %119 : vector<2x8xf32> to vector<2x8x1xf32>
    %121 = tpu.reciprocal %120 {approx = true} : vector<2x8x1xf32> -> vector<2x8x1xf32>
    %122 = vector.broadcast %121 : vector<2x8x1xf32> to vector<2x8x8xf32>
    %123 = arith.mulf %118, %122 : vector<2x8x8xf32>
    %124 = tpu.transpose %123, [0, 2, 1] : vector<2x8x8xf32> -> vector<2x8x8xf32>
    %125 = arith.truncf %124 : vector<2x8x8xf32> to vector<2x8x8xbf16>
    "tpu.trace_start"() <{level = 10 : i32, message = "bne,bed->bnd"}> : () -> ()
    %cst_30 = arith.constant dense<0.000000e+00> : vector<2x8x8xf32>
    %126 = tpu.matmul %108, %125, %cst_30 {dimension_numbers = #tpu.dot_dimension_numbers<[2], [1], [1], [2], [0, 0, 0, 1, 1, 2], [0], [0]>} : vector<2x8x8xbf16>, vector<2x8x8xbf16>, vector<2x8x8xf32> -> vector<2x8x8xf32>
    "tpu.trace_stop"() : () -> ()
    %127 = vector.extract_strided_slice %15 {offsets = [0, 0, 8], sizes = [2, 8, 8], strides = [1, 1, 1]} : vector<2x8x32xf32> to vector<2x8x8xf32>
    %128 = vector.extract_strided_slice %17 {offsets = [0, 0, 8], sizes = [2, 8, 8], strides = [1, 1, 1]} : vector<2x8x32xf32> to vector<2x8x8xf32>
    %129 = arith.truncf %128 : vector<2x8x8xf32> to vector<2x8x8xbf16>
    %130 = vector.extract_strided_slice %19 {offsets = [0, 0, 8], sizes = [2, 8, 8], strides = [1, 1, 1]} : vector<2x8x32xf32> to vector<2x8x8xf32>
    %131 = arith.truncf %130 : vector<2x8x8xf32> to vector<2x8x8xbf16>
    %132 = tpu.transpose %127, [0, 2, 1] : vector<2x8x8xf32> -> vector<2x8x8xf32>
    %133 = arith.truncf %132 : vector<2x8x8xf32> to vector<2x8x8xbf16>
    "tpu.trace_start"() <{level = 10 : i32, message = "bdn,bne->bde"}> : () -> ()
    %cst_31 = arith.constant dense<0.000000e+00> : vector<2x8x8xf32>
    %134 = tpu.matmul %133, %129, %cst_31 {dimension_numbers = #tpu.dot_dimension_numbers<[2], [1], [1], [2], [0, 0, 0, 1, 1, 2], [0], [0]>} : vector<2x8x8xbf16>, vector<2x8x8xbf16>, vector<2x8x8xf32> -> vector<2x8x8xf32>
    "tpu.trace_stop"() : () -> ()
    %cst_32 = arith.constant 0.353553385 : f32
    %135 = vector.broadcast %cst_32 : f32 to vector<2x8x8xf32>
    %136 = arith.mulf %134, %135 : vector<2x8x8xf32>
    %cst_33 = arith.constant dense<0xFF800000> : vector<2x8xf32>
    %137 = vector.multi_reduction <maximumf>, %136, %cst_33 [2] : vector<2x8x8xf32> to vector<2x8xf32>
    %138 = vector.shape_cast %137 : vector<2x8xf32> to vector<2x8x1xf32>
    %139 = vector.broadcast %138 : vector<2x8x1xf32> to vector<2x8x8xf32>
    %140 = arith.subf %136, %139 : vector<2x8x8xf32>
    %141 = math.exp %140 : vector<2x8x8xf32>
    %cst_34 = arith.constant dense<0.000000e+00> : vector<2x8xf32>
    %142 = vector.multi_reduction <add>, %141, %cst_34 [2] : vector<2x8x8xf32> to vector<2x8xf32>
    %143 = vector.shape_cast %142 : vector<2x8xf32> to vector<2x8x1xf32>
    %144 = tpu.reciprocal %143 {approx = true} : vector<2x8x1xf32> -> vector<2x8x1xf32>
    %145 = vector.broadcast %144 : vector<2x8x1xf32> to vector<2x8x8xf32>
    %146 = arith.mulf %141, %145 : vector<2x8x8xf32>
    %147 = tpu.transpose %146, [0, 2, 1] : vector<2x8x8xf32> -> vector<2x8x8xf32>
    %148 = arith.truncf %147 : vector<2x8x8xf32> to vector<2x8x8xbf16>
    "tpu.trace_start"() <{level = 10 : i32, message = "bne,bed->bnd"}> : () -> ()
    %cst_35 = arith.constant dense<0.000000e+00> : vector<2x8x8xf32>
    %149 = tpu.matmul %131, %148, %cst_35 {dimension_numbers = #tpu.dot_dimension_numbers<[2], [1], [1], [2], [0, 0, 0, 1, 1, 2], [0], [0]>} : vector<2x8x8xbf16>, vector<2x8x8xbf16>, vector<2x8x8xf32> -> vector<2x8x8xf32>
    "tpu.trace_stop"() : () -> ()
    %150 = vector.extract_strided_slice %15 {offsets = [0, 0, 16], sizes = [2, 8, 8], strides = [1, 1, 1]} : vector<2x8x32xf32> to vector<2x8x8xf32>
    %151 = vector.extract_strided_slice %17 {offsets = [0, 0, 16], sizes = [2, 8, 8], strides = [1, 1, 1]} : vector<2x8x32xf32> to vector<2x8x8xf32>
    %152 = arith.truncf %151 : vector<2x8x8xf32> to vector<2x8x8xbf16>
    %153 = vector.extract_strided_slice %19 {offsets = [0, 0, 16], sizes = [2, 8, 8], strides = [1, 1, 1]} : vector<2x8x32xf32> to vector<2x8x8xf32>
    %154 = arith.truncf %153 : vector<2x8x8xf32> to vector<2x8x8xbf16>
    %155 = tpu.transpose %150, [0, 2, 1] : vector<2x8x8xf32> -> vector<2x8x8xf32>
    %156 = arith.truncf %155 : vector<2x8x8xf32> to vector<2x8x8xbf16>
    "tpu.trace_start"() <{level = 10 : i32, message = "bdn,bne->bde"}> : () -> ()
    %cst_36 = arith.constant dense<0.000000e+00> : vector<2x8x8xf32>
    %157 = tpu.matmul %156, %152, %cst_36 {dimension_numbers = #tpu.dot_dimension_numbers<[2], [1], [1], [2], [0, 0, 0, 1, 1, 2], [0], [0]>} : vector<2x8x8xbf16>, vector<2x8x8xbf16>, vector<2x8x8xf32> -> vector<2x8x8xf32>
    "tpu.trace_stop"() : () -> ()
    %cst_37 = arith.constant 0.353553385 : f32
    %158 = vector.broadcast %cst_37 : f32 to vector<2x8x8xf32>
    %159 = arith.mulf %157, %158 : vector<2x8x8xf32>
    %cst_38 = arith.constant dense<0xFF800000> : vector<2x8xf32>
    %160 = vector.multi_reduction <maximumf>, %159, %cst_38 [2] : vector<2x8x8xf32> to vector<2x8xf32>
    %161 = vector.shape_cast %160 : vector<2x8xf32> to vector<2x8x1xf32>
    %162 = vector.broadcast %161 : vector<2x8x1xf32> to vector<2x8x8xf32>
    %163 = arith.subf %159, %162 : vector<2x8x8xf32>
    %164 = math.exp %163 : vector<2x8x8xf32>
    %cst_39 = arith.constant dense<0.000000e+00> : vector<2x8xf32>
    %165 = vector.multi_reduction <add>, %164, %cst_39 [2] : vector<2x8x8xf32> to vector<2x8xf32>
    %166 = vector.shape_cast %165 : vector<2x8xf32> to vector<2x8x1xf32>
    %167 = tpu.reciprocal %166 {approx = true} : vector<2x8x1xf32> -> vector<2x8x1xf32>
    %168 = vector.broadcast %167 : vector<2x8x1xf32> to vector<2x8x8xf32>
    %169 = arith.mulf %164, %168 : vector<2x8x8xf32>
    %170 = tpu.transpose %169, [0, 2, 1] : vector<2x8x8xf32> -> vector<2x8x8xf32>
    %171 = arith.truncf %170 : vector<2x8x8xf32> to vector<2x8x8xbf16>
    "tpu.trace_start"() <{level = 10 : i32, message = "bne,bed->bnd"}> : () -> ()
    %cst_40 = arith.constant dense<0.000000e+00> : vector<2x8x8xf32>
    %172 = tpu.matmul %154, %171, %cst_40 {dimension_numbers = #tpu.dot_dimension_numbers<[2], [1], [1], [2], [0, 0, 0, 1, 1, 2], [0], [0]>} : vector<2x8x8xbf16>, vector<2x8x8xbf16>, vector<2x8x8xf32> -> vector<2x8x8xf32>
    "tpu.trace_stop"() : () -> ()
    %173 = vector.extract_strided_slice %15 {offsets = [0, 0, 24], sizes = [2, 8, 8], strides = [1, 1, 1]} : vector<2x8x32xf32> to vector<2x8x8xf32>
    %174 = vector.extract_strided_slice %17 {offsets = [0, 0, 24], sizes = [2, 8, 8], strides = [1, 1, 1]} : vector<2x8x32xf32> to vector<2x8x8xf32>
    %175 = arith.truncf %174 : vector<2x8x8xf32> to vector<2x8x8xbf16>
    %176 = vector.extract_strided_slice %19 {offsets = [0, 0, 24], sizes = [2, 8, 8], strides = [1, 1, 1]} : vector<2x8x32xf32> to vector<2x8x8xf32>
    %177 = arith.truncf %176 : vector<2x8x8xf32> to vector<2x8x8xbf16>
    %178 = tpu.transpose %173, [0, 2, 1] : vector<2x8x8xf32> -> vector<2x8x8xf32>
    %179 = arith.truncf %178 : vector<2x8x8xf32> to vector<2x8x8xbf16>
    "tpu.trace_start"() <{level = 10 : i32, message = "bdn,bne->bde"}> : () -> ()
    %cst_41 = arith.constant dense<0.000000e+00> : vector<2x8x8xf32>
    %180 = tpu.matmul %179, %175, %cst_41 {dimension_numbers = #tpu.dot_dimension_numbers<[2], [1], [1], [2], [0, 0, 0, 1, 1, 2], [0], [0]>} : vector<2x8x8xbf16>, vector<2x8x8xbf16>, vector<2x8x8xf32> -> vector<2x8x8xf32>
    "tpu.trace_stop"() : () -> ()
    %cst_42 = arith.constant 0.353553385 : f32
    %181 = vector.broadcast %cst_42 : f32 to vector<2x8x8xf32>
    %182 = arith.mulf %180, %181 : vector<2x8x8xf32>
    %cst_43 = arith.constant dense<0xFF800000> : vector<2x8xf32>
    %183 = vector.multi_reduction <maximumf>, %182, %cst_43 [2] : vector<2x8x8xf32> to vector<2x8xf32>
    %184 = vector.shape_cast %183 : vector<2x8xf32> to vector<2x8x1xf32>
    %185 = vector.broadcast %184 : vector<2x8x1xf32> to vector<2x8x8xf32>
    %186 = arith.subf %182, %185 : vector<2x8x8xf32>
    %187 = math.exp %186 : vector<2x8x8xf32>
    %cst_44 = arith.constant dense<0.000000e+00> : vector<2x8xf32>
    %188 = vector.multi_reduction <add>, %187, %cst_44 [2] : vector<2x8x8xf32> to vector<2x8xf32>
    %189 = vector.shape_cast %188 : vector<2x8xf32> to vector<2x8x1xf32>
    %190 = tpu.reciprocal %189 {approx = true} : vector<2x8x1xf32> -> vector<2x8x1xf32>
    %191 = vector.broadcast %190 : vector<2x8x1xf32> to vector<2x8x8xf32>
    %192 = arith.mulf %187, %191 : vector<2x8x8xf32>
    %193 = tpu.transpose %192, [0, 2, 1] : vector<2x8x8xf32> -> vector<2x8x8xf32>
    %194 = arith.truncf %193 : vector<2x8x8xf32> to vector<2x8x8xbf16>
    "tpu.trace_start"() <{level = 10 : i32, message = "bne,bed->bnd"}> : () -> ()
    %cst_45 = arith.constant dense<0.000000e+00> : vector<2x8x8xf32>
    %195 = tpu.matmul %177, %194, %cst_45 {dimension_numbers = #tpu.dot_dimension_numbers<[2], [1], [1], [2], [0, 0, 0, 1, 1, 2], [0], [0]>} : vector<2x8x8xbf16>, vector<2x8x8xbf16>, vector<2x8x8xf32> -> vector<2x8x8xf32>
    "tpu.trace_stop"() : () -> ()
    %196 = tpu.concatenate %40, %61, %82, %103, %126, %149, %172, %195 in 2 : vector<2x8x8xf32>, vector<2x8x8xf32>, vector<2x8x8xf32>, vector<2x8x8xf32>, vector<2x8x8xf32>, vector<2x8x8xf32>, vector<2x8x8xf32>, vector<2x8x8xf32> -> vector<2x8x64xf32>
    %197 = vector.shape_cast %196 : vector<2x8x64xf32> to vector<16x64xf32>
    %198 = arith.truncf %197 : vector<16x64xf32> to vector<16x64xbf16>
    %c0_46 = arith.constant 0 : index
    %c0_47 = arith.constant 0 : index
    %199 = vector.load %arg4[%c0_46, %c0_47] : memref<64x32xbf16, #tpu.memory_space<vmem>>, vector<64x32xbf16>
    %cst_48 = arith.constant dense<0.000000e+00> : vector<16x32xf32>
    %200 = tpu.matmul %198, %199, %cst_48 {dimension_numbers = #tpu.dot_dimension_numbers<[1], [0], [0], [1], [0, 0, 1, 1], [], []>} : vector<16x64xbf16>, vector<64x32xbf16>, vector<16x32xf32> -> vector<16x32xf32>
    %c0_49 = arith.constant 0 : index
    %c0_50 = arith.constant 0 : index
    %201 = vector.load %arg8[%c0_49, %c0_50] : memref<6x32xf32, #tpu.memory_space<vmem>>, vector<1x32xf32>
    %202 = vector.broadcast %201 : vector<1x32xf32> to vector<16x32xf32>
    %203 = arith.addf %200, %202 : vector<16x32xf32>
    %204 = arith.addf %1, %203 : vector<16x32xf32>
    %c1 = arith.constant 1 : index
    %c0_51 = arith.constant 0 : index
    %205 = vector.load %arg8[%c1, %c0_51] : memref<6x32xf32, #tpu.memory_space<vmem>>, vector<1x32xf32>
    %c2 = arith.constant 2 : index
    %c0_52 = arith.constant 0 : index
    %206 = vector.load %arg8[%c2, %c0_52] : memref<6x32xf32, #tpu.memory_space<vmem>>, vector<1x32xf32>
    %cst_53 = arith.constant dense<0.000000e+00> : vector<16xf32>
    %207 = vector.multi_reduction <add>, %204, %cst_53 [1] : vector<16x32xf32> to vector<16xf32>
    %208 = vector.shape_cast %207 : vector<16xf32> to vector<16x1xf32>
    %cst_54 = arith.constant 3.200000e+01 : f32
    %209 = vector.broadcast %cst_54 : f32 to vector<16x1xf32>
    %210 = arith.divf %208, %209 : vector<16x1xf32>
    %211 = vector.broadcast %210 : vector<16x1xf32> to vector<16x32xf32>
    %212 = arith.subf %204, %211 : vector<16x32xf32>
    %213 = arith.mulf %212, %212 : vector<16x32xf32>
    %cst_55 = arith.constant dense<0.000000e+00> : vector<16xf32>
    %214 = vector.multi_reduction <add>, %213, %cst_55 [1] : vector<16x32xf32> to vector<16xf32>
    %215 = vector.shape_cast %214 : vector<16xf32> to vector<16x1xf32>
    %cst_56 = arith.constant 3.200000e+01 : f32
    %216 = vector.broadcast %cst_56 : f32 to vector<16x1xf32>
    %217 = arith.divf %215, %216 : vector<16x1xf32>
    %cst_57 = arith.constant 9.99999974E-6 : f32
    %218 = vector.broadcast %cst_57 : f32 to vector<16x1xf32>
    %219 = arith.addf %217, %218 : vector<16x1xf32>
    %220 = math.rsqrt %219 : vector<16x1xf32>
    %221 = vector.broadcast %220 : vector<16x1xf32> to vector<16x32xf32>
    %222 = arith.mulf %212, %221 : vector<16x32xf32>
    %223 = vector.broadcast %205 : vector<1x32xf32> to vector<16x32xf32>
    %224 = arith.mulf %222, %223 : vector<16x32xf32>
    %225 = vector.broadcast %206 : vector<1x32xf32> to vector<16x32xf32>
    %226 = arith.addf %224, %225 : vector<16x32xf32>
    %227 = arith.truncf %226 : vector<16x32xf32> to vector<16x32xbf16>
    %c0_58 = arith.constant 0 : index
    %c0_59 = arith.constant 0 : index
    %228 = vector.load %arg5[%c0_58, %c0_59] : memref<32x64xbf16, #tpu.memory_space<vmem>>, vector<32x64xbf16>
    %cst_60 = arith.constant dense<0.000000e+00> : vector<16x64xf32>
    %229 = tpu.matmul %227, %228, %cst_60 {dimension_numbers = #tpu.dot_dimension_numbers<[1], [0], [0], [1], [0, 0, 1, 1], [], []>} : vector<16x32xbf16>, vector<32x64xbf16>, vector<16x64xf32> -> vector<16x64xf32>
    %c0_61 = arith.constant 0 : index
    %c0_62 = arith.constant 0 : index
    %230 = vector.load %arg6[%c0_61, %c0_62] : memref<1x64xf32, #tpu.memory_space<vmem>>, vector<1x64xf32>
    %231 = vector.broadcast %230 : vector<1x64xf32> to vector<16x64xf32>
    %232 = arith.addf %229, %231 : vector<16x64xf32>
    %cst_63 = arith.constant 0.000000e+00 : f32
    %233 = vector.broadcast %cst_63 : f32 to vector<16x64xf32>
    %234 = arith.maximumf %232, %233 : vector<16x64xf32>
    %235 = arith.truncf %234 : vector<16x64xf32> to vector<16x64xbf16>
    %c0_64 = arith.constant 0 : index
    %c0_65 = arith.constant 0 : index
    %236 = vector.load %arg7[%c0_64, %c0_65] : memref<64x32xbf16, #tpu.memory_space<vmem>>, vector<64x32xbf16>
    %cst_66 = arith.constant dense<0.000000e+00> : vector<16x32xf32>
    %237 = tpu.matmul %235, %236, %cst_66 {dimension_numbers = #tpu.dot_dimension_numbers<[1], [0], [0], [1], [0, 0, 1, 1], [], []>} : vector<16x64xbf16>, vector<64x32xbf16>, vector<16x32xf32> -> vector<16x32xf32>
    %c3 = arith.constant 3 : index
    %c0_67 = arith.constant 0 : index
    %238 = vector.load %arg8[%c3, %c0_67] : memref<6x32xf32, #tpu.memory_space<vmem>>, vector<1x32xf32>
    %239 = vector.broadcast %238 : vector<1x32xf32> to vector<16x32xf32>
    %240 = arith.addf %237, %239 : vector<16x32xf32>
    %241 = arith.addf %226, %240 : vector<16x32xf32>
    %c4 = arith.constant 4 : index
    %c0_68 = arith.constant 0 : index
    %242 = vector.load %arg8[%c4, %c0_68] : memref<6x32xf32, #tpu.memory_space<vmem>>, vector<1x32xf32>
    %c5 = arith.constant 5 : index
    %c0_69 = arith.constant 0 : index
    %243 = vector.load %arg8[%c5, %c0_69] : memref<6x32xf32, #tpu.memory_space<vmem>>, vector<1x32xf32>
    %cst_70 = arith.constant dense<0.000000e+00> : vector<16xf32>
    %244 = vector.multi_reduction <add>, %241, %cst_70 [1] : vector<16x32xf32> to vector<16xf32>
    %245 = vector.shape_cast %244 : vector<16xf32> to vector<16x1xf32>
    %cst_71 = arith.constant 3.200000e+01 : f32
    %246 = vector.broadcast %cst_71 : f32 to vector<16x1xf32>
    %247 = arith.divf %245, %246 : vector<16x1xf32>
    %248 = vector.broadcast %247 : vector<16x1xf32> to vector<16x32xf32>
    %249 = arith.subf %241, %248 : vector<16x32xf32>
    %250 = arith.mulf %249, %249 : vector<16x32xf32>
    %cst_72 = arith.constant dense<0.000000e+00> : vector<16xf32>
    %251 = vector.multi_reduction <add>, %250, %cst_72 [1] : vector<16x32xf32> to vector<16xf32>
    %252 = vector.shape_cast %251 : vector<16xf32> to vector<16x1xf32>
    %cst_73 = arith.constant 3.200000e+01 : f32
    %253 = vector.broadcast %cst_73 : f32 to vector<16x1xf32>
    %254 = arith.divf %252, %253 : vector<16x1xf32>
    %cst_74 = arith.constant 9.99999974E-6 : f32
    %255 = vector.broadcast %cst_74 : f32 to vector<16x1xf32>
    %256 = arith.addf %254, %255 : vector<16x1xf32>
    %257 = math.rsqrt %256 : vector<16x1xf32>
    %258 = vector.broadcast %257 : vector<16x1xf32> to vector<16x32xf32>
    %259 = arith.mulf %249, %258 : vector<16x32xf32>
    %260 = vector.broadcast %242 : vector<1x32xf32> to vector<16x32xf32>
    %261 = arith.mulf %259, %260 : vector<16x32xf32>
    %262 = vector.broadcast %243 : vector<1x32xf32> to vector<16x32xf32>
    %263 = arith.addf %261, %262 : vector<16x32xf32>
    %264 = vector.shape_cast %263 : vector<16x32xf32> to vector<2x8x32xf32>
    %c0_75 = arith.constant 0 : index
    %c0_76 = arith.constant 0 : index
    %c0_77 = arith.constant 0 : index
    %265 = vector.load %arg9[%c0_75, %c0_76, %c0_77] : memref<2x8x32xf32, #tpu.memory_space<vmem>>, vector<2x8x32xf32>
    tpu.vector_store %arg9[%c0_75, %c0_76, %c0_77], %264 {strides = array<i32>} : memref<2x8x32xf32, #tpu.memory_space<vmem>>, vector<2x8x32xf32>,
    return
  }
  func.func @transform_0(%arg0: i32) -> (i32, i32, i32) {
    %c0_i32 = arith.constant 0 : i32
    %c0_i32_0 = arith.constant 0 : i32
    %c0_i32_1 = arith.constant 0 : i32
    return %arg0, %c0_i32, %c0_i32_0 : i32, i32, i32
  }
  func.func @transform_1(%arg0: i32) -> (i32, i32) {
    %c0_i32 = arith.constant 0 : i32
    %c0_i32_0 = arith.constant 0 : i32
    %c0_i32_1 = arith.constant 0 : i32
    return %c0_i32, %c0_i32_0 : i32, i32
  }
  func.func @transform_2(%arg0: i32) -> (i32, i32) {
    %c0_i32 = arith.constant 0 : i32
    %c0_i32_0 = arith.constant 0 : i32
    %c0_i32_1 = arith.constant 0 : i32
    return %c0_i32, %c0_i32_0 : i32, i32
  }
  func.func @transform_3(%arg0: i32) -> (i32, i32) {
    %c0_i32 = arith.constant 0 : i32
    %c0_i32_0 = arith.constant 0 : i32
    %c0_i32_1 = arith.constant 0 : i32
    return %c0_i32, %c0_i32_0 : i32, i32
  }
  func.func @transform_4(%arg0: i32) -> (i32, i32) {
    %c0_i32 = arith.constant 0 : i32
    %c0_i32_0 = arith.constant 0 : i32
    %c0_i32_1 = arith.constant 0 : i32
    return %c0_i32, %c0_i32_0 : i32, i32
  }
  func.func @transform_5(%arg0: i32) -> (i32, i32) {
    %c0_i32 = arith.constant 0 : i32
    %c0_i32_0 = arith.constant 0 : i32
    %c0_i32_1 = arith.constant 0 : i32
    return %c0_i32, %c0_i32_0 : i32, i32
  }
  func.func @transform_6(%arg0: i32) -> (i32, i32) {
    %c0_i32 = arith.constant 0 : i32
    %c0_i32_0 = arith.constant 0 : i32
    %c0_i32_1 = arith.constant 0 : i32
    return %c0_i32, %c0_i32_0 : i32, i32
  }
  func.func @transform_7(%arg0: i32) -> (i32, i32) {
    %c0_i32 = arith.constant 0 : i32
    %c0_i32_0 = arith.constant 0 : i32
    %c0_i32_1 = arith.constant 0 : i32
    return %c0_i32, %c0_i32_0 : i32, i32
  }
  func.func @transform_8(%arg0: i32) -> (i32, i32, i32) {
    %c0_i32 = arith.constant 0 : i32
    %c0_i32_0 = arith.constant 0 : i32
    %c0_i32_1 = arith.constant 0 : i32
    return %arg0, %c0_i32, %c0_i32_0 : i32, i32, i32
  }
}

</mosaic_0001>

<llo_original>
// kernel: tpu_custom_call.1
$region0: #{tpu_custom_call.1}
  #allocation0 [shape = 'u32[]', space=smem, size = 0x4, offset = 0x4, fixed_abs, tag = 'smem constant byte address 0x4 - core index']
  #allocation1 [shape = 'u32[144,128]{1,0:T(1,128)}', space=vmem, size = 0x12000, scoped, tag = 'internal scratch']
  %s0 = inlined_call_operand.vmem [shape: f32[4,8,32], index: 0, kind: input, shape index: {}]
  %s1 = inlined_call_operand.vmem [shape: bf16[32,192], index: 1, kind: input, shape index: {}]
  %s2 = inlined_call_operand.vmem [shape: f32[1,192], index: 2, kind: input, shape index: {}]
  %s3 = inlined_call_operand.vmem [shape: bf16[64,32], index: 3, kind: input, shape index: {}]
  %s4 = inlined_call_operand.vmem [shape: bf16[32,64], index: 4, kind: input, shape index: {}]
  %s5 = inlined_call_operand.vmem [shape: f32[1,64], index: 5, kind: input, shape index: {}]
  %s6 = inlined_call_operand.vmem [shape: bf16[64,32], index: 6, kind: input, shape index: {}]
  %s7 = inlined_call_operand.vmem [shape: f32[6,32], index: 7, kind: input, shape index: {}]
  %s8 = inlined_call_operand.hbm [shape: f32[4,8,32], index: 8, kind: output, shape index: {}]
  %s9 = sld [smem:[#allocation0]]
  $region65: #{tpu_custom_call.1} parent=0
    _
  %s11 = ssub.s32 1, %s9
  %s12 = scalar_select 0, %s11, %s9
  $region1: #{tpu_custom_call.1} parent=0
    #allocation2 [shape = 'u8[16384]{0}', space=vmem, size = 0x4000, scoped, tag = 'output window, operand 0']
    #allocation3 [shape = 's32[2]{0}', space=sflag, size = 0x8, scoped, tag = 'scoped memory for tpu_custom_call.1']
    %13 = vsyncpa [#allocation3], 0
    %s14 = scalar_lea.sflag [#allocation3], 1
    %15 = vsyncpa %s14, 0
    loop: start=0, step=1, limit=4
    $region2: #{tpu_custom_call.1} parent=1 // loop_pre_header
      _
    $region3: #{tpu_custom_call.1} parent=1 // loop_header
      %s17 = sphi 0, %s21
      %p18 = scmp.ge.s32.totalorder %s17, 4
      %s27 = sphi 0, %s29
      %s30 = sphi 0, %s27
      %s31 = sphi 0, %s30
      %s47 = sphi 0, %s31
      %s51 = sphi 0, %s51
      %s53 = sphi 0, %s51
      %s54 = sphi 0, %s53
      %s68 = sphi 0, %s54
      %s72 = sphi 0, %s72
      %s74 = sphi 0, %s72
      %s75 = sphi 0, %s74
      %s89 = sphi 0, %s75
      %s93 = sphi 0, %s93
      %s95 = sphi 0, %s93
      %s96 = sphi 0, %s95
      %s110 = sphi 0, %s96
      %s114 = sphi 0, %s114
      %s116 = sphi 0, %s114
      %s117 = sphi 0, %s116
      %s131 = sphi 0, %s117
      %s135 = sphi 0, %s135
      %s137 = sphi 0, %s135
      %s138 = sphi 0, %s137
      %s152 = sphi 0, %s138
      %s156 = sphi 0, %s156
      %s158 = sphi 0, %s156
      %s159 = sphi 0, %s158
      %s173 = sphi 0, %s159
      %s177 = sphi 0, %s177
      %s179 = sphi 0, %s177
      %s180 = sphi 0, %s179
      %s194 = sphi 0, %s180
      %s200 = sphi 0, %s202
      %s203 = sphi 0, %s200
      %s204 = sphi 0, %s203
      %s220 = sphi 0, %s204
    $region4: #{tpu_custom_call.1} parent=1 // loop_header_branch
      %20 = sbr.rel (%p18) target = $region8
    $region5: #{tpu_custom_call.1} parent=1 // loop_body
      %s22 = ssub.s32 %s17, 1
      %s23 = ssub.s32 %s17, 2
      %s24 = sadd.s32 %s17, 1
      %s25 = ssub.s32 %s17, %s24
      %p26 = scmp.eq.s32.totalorder %s25, 0
      %s28 = sadd.s32 %s27, 1
      %s29 = scalar_select %p26, %s27, %s28
      %p32 = pneg %p26
      %p33 = scmp.eq.s32.totalorder %s17, 1
      %p34 = por %p32, %p33
      %p35 = scmp.ne.s32.totalorder %s27, %s30
      %p36 = scmp.eq.s32.totalorder %s17, 0
      %p37 = por %p35, %p36
      %p38 = scmp.ne.s32.totalorder %s27, %s30
      %p39 = scmp.eq.s32.totalorder %s22, 1
      %p40 = por %p38, %p39
      %p41 = scmp.ne.s32.totalorder %s30, %s31
      %p42 = scmp.eq.s32.totalorder %s22, 0
      %p43 = por %p41, %p42
      %p44 = scmp.ne.s32.totalorder %s30, %s31
      %p45 = scmp.eq.s32.totalorder %s23, 1
      %p46 = por %p44, %p45
      %p48 = scmp.ne.s32.totalorder %s31, %s47
      %p49 = scmp.eq.s32.totalorder %s23, 0
      %p50 = por %p48, %p49
      %s52 = sadd.s32 %s51, 1
      %p55 = scmp.eq.s32.totalorder %s17, 1
      %p56 = scmp.ne.s32.totalorder %s51, %s53
      %p57 = scmp.eq.s32.totalorder %s17, 0
      %p58 = por %p56, %p57
      %p59 = scmp.ne.s32.totalorder %s51, %s53
      %p60 = scmp.eq.s32.totalorder %s22, 1
      %p61 = por %p59, %p60
      %p62 = scmp.ne.s32.totalorder %s53, %s54
      %p63 = scmp.eq.s32.totalorder %s22, 0
      %p64 = por %p62, %p63
      %p65 = scmp.ne.s32.totalorder %s53, %s54
      %p66 = scmp.eq.s32.totalorder %s23, 1
      %p67 = por %p65, %p66
      %p69 = scmp.ne.s32.totalorder %s54, %s68
      %p70 = scmp.eq.s32.totalorder %s23, 0
      %p71 = por %p69, %p70
      %s73 = sadd.s32 %s72, 1
      %p76 = scmp.eq.s32.totalorder %s17, 1
      %p77 = scmp.ne.s32.totalorder %s72, %s74
      %p78 = scmp.eq.s32.totalorder %s17, 0
      %p79 = por %p77, %p78
      %p80 = scmp.ne.s32.totalorder %s72, %s74
      %p81 = scmp.eq.s32.totalorder %s22, 1
      %p82 = por %p80, %p81
      %p83 = scmp.ne.s32.totalorder %s74, %s75
      %p84 = scmp.eq.s32.totalorder %s22, 0
      %p85 = por %p83, %p84
      %p86 = scmp.ne.s32.totalorder %s74, %s75
      %p87 = scmp.eq.s32.totalorder %s23, 1
      %p88 = por %p86, %p87
      %p90 = scmp.ne.s32.totalorder %s75, %s89
      %p91 = scmp.eq.s32.totalorder %s23, 0
      %p92 = por %p90, %p91
      %s94 = sadd.s32 %s93, 1
      %p97 = scmp.eq.s32.totalorder %s17, 1
      %p98 = scmp.ne.s32.totalorder %s93, %s95
      %p99 = scmp.eq.s32.totalorder %s17, 0
      %p100 = por %p98, %p99
      %p101 = scmp.ne.s32.totalorder %s93, %s95
      %p102 = scmp.eq.s32.totalorder %s22, 1
      %p103 = por %p101, %p102
      %p104 = scmp.ne.s32.totalorder %s95, %s96
      %p105 = scmp.eq.s32.totalorder %s22, 0
      %p106 = por %p104, %p105
      %p107 = scmp.ne.s32.totalorder %s95, %s96
      %p108 = scmp.eq.s32.totalorder %s23, 1
      %p109 = por %p107, %p108
      %p111 = scmp.ne.s32.totalorder %s96, %s110
      %p112 = scmp.eq.s32.totalorder %s23, 0
      %p113 = por %p111, %p112
      %s115 = sadd.s32 %s114, 1
      %p118 = scmp.eq.s32.totalorder %s17, 1
      %p119 = scmp.ne.s32.totalorder %s114, %s116
      %p120 = scmp.eq.s32.totalorder %s17, 0
      %p121 = por %p119, %p120
      %p122 = scmp.ne.s32.totalorder %s114, %s116
      %p123 = scmp.eq.s32.totalorder %s22, 1
      %p124 = por %p122, %p123
      %p125 = scmp.ne.s32.totalorder %s116, %s117
      %p126 = scmp.eq.s32.totalorder %s22, 0
      %p127 = por %p125, %p126
      %p128 = scmp.ne.s32.totalorder %s116, %s117
      %p129 = scmp.eq.s32.totalorder %s23, 1
      %p130 = por %p128, %p129
      %p132 = scmp.ne.s32.totalorder %s117, %s131
      %p133 = scmp.eq.s32.totalorder %s23, 0
      %p134 = por %p132, %p133
      %s136 = sadd.s32 %s135, 1
      %p139 = scmp.eq.s32.totalorder %s17, 1
      %p140 = scmp.ne.s32.totalorder %s135, %s137
      %p141 = scmp.eq.s32.totalorder %s17, 0
      %p142 = por %p140, %p141
      %p143 = scmp.ne.s32.totalorder %s135, %s137
      %p144 = scmp.eq.s32.totalorder %s22, 1
      %p145 = por %p143, %p144
      %p146 = scmp.ne.s32.totalorder %s137, %s138
      %p147 = scmp.eq.s32.totalorder %s22, 0
      %p148 = por %p146, %p147
      %p149 = scmp.ne.s32.totalorder %s137, %s138
      %p150 = scmp.eq.s32.totalorder %s23, 1
      %p151 = por %p149, %p150
      %p153 = scmp.ne.s32.totalorder %s138, %s152
      %p154 = scmp.eq.s32.totalorder %s23, 0
      %p155 = por %p153, %p154
      %s157 = sadd.s32 %s156, 1
      %p160 = scmp.eq.s32.totalorder %s17, 1
      %p161 = scmp.ne.s32.totalorder %s156, %s158
      %p162 = scmp.eq.s32.totalorder %s17, 0
      %p163 = por %p161, %p162
      %p164 = scmp.ne.s32.totalorder %s156, %s158
      %p165 = scmp.eq.s32.totalorder %s22, 1
      %p166 = por %p164, %p165
      %p167 = scmp.ne.s32.totalorder %s158, %s159
      %p168 = scmp.eq.s32.totalorder %s22, 0
      %p169 = por %p167, %p168
      %p170 = scmp.ne.s32.totalorder %s158, %s159
      %p171 = scmp.eq.s32.totalorder %s23, 1
      %p172 = por %p170, %p171
      %p174 = scmp.ne.s32.totalorder %s159, %s173
      %p175 = scmp.eq.s32.totalorder %s23, 0
      %p176 = por %p174, %p175
      %s178 = sadd.s32 %s177, 1
      %p181 = scmp.eq.s32.totalorder %s17, 1
      %p182 = scmp.ne.s32.totalorder %s177, %s179
      %p183 = scmp.eq.s32.totalorder %s17, 0
      %p184 = por %p182, %p183
      %p185 = scmp.ne.s32.totalorder %s177, %s179
      %p186 = scmp.eq.s32.totalorder %s22, 1
      %p187 = por %p185, %p186
      %p188 = scmp.ne.s32.totalorder %s179, %s180
      %p189 = scmp.eq.s32.totalorder %s22, 0
      %p190 = por %p188, %p189
      %p191 = scmp.ne.s32.totalorder %s179, %s180
      %p192 = scmp.eq.s32.totalorder %s23, 1
      %p193 = por %p191, %p192
      %p195 = scmp.ne.s32.totalorder %s180, %s194
      %p196 = scmp.eq.s32.totalorder %s23, 0
      %p197 = por %p195, %p196
      %s198 = ssub.s32 %s17, %s24
      %p199 = scmp.eq.s32.totalorder %s198, 0
      %s201 = sadd.s32 %s200, 1
      %s202 = scalar_select %p199, %s200, %s201
      %p205 = pneg %p199
      %p206 = scmp.eq.s32.totalorder %s17, 1
      %p207 = por %p205, %p206
      %p208 = scmp.ne.s32.totalorder %s200, %s203
      %p209 = scmp.eq.s32.totalorder %s17, 0
      %p210 = por %p208, %p209
      %p211 = scmp.ne.s32.totalorder %s200, %s203
      %p212 = scmp.eq.s32.totalorder %s22, 1
      %p213 = por %p211, %p212
      %p214 = scmp.ne.s32.totalorder %s203, %s204
      %p215 = scmp.eq.s32.totalorder %s22, 0
      %p216 = por %p214, %p215
      %p217 = scmp.ne.s32.totalorder %s203, %s204
      %p218 = scmp.eq.s32.totalorder %s23, 1
      %p219 = por %p217, %p218
      %p221 = scmp.ne.s32.totalorder %s204, %s220
      %p222 = scmp.eq.s32.totalorder %s23, 0
      %p223 = por %p221, %p222
      %p224 = scmp.le.s32.totalorder 1, %s17
      %p225 = scmp.lt.s32.totalorder %s17, 3
      %p226 = pnand %p224, %p225
      %p227 = pneg %p226
      // Predicated region
      $region9: #{tpu_custom_call.1} parent=5 // pred_check
        _
      $region10: #{tpu_custom_call.1} parent=5 // pred_check_branch
        %229 = sbr.rel (%p226) target = $region12
      $region11: #{tpu_custom_call.1} parent=5 // pred_region
        %s230 = ssub.s32 %s17, 1
        // Predicated region
        $region13: #{tpu_custom_call.1} parent=11 // pred_check
          %p231 = pneg %p64
        $region14: #{tpu_custom_call.1} parent=11 // pred_check_branch
          %233 = sbr.rel (%p231) target = $region16
        $region15: #{tpu_custom_call.1} parent=11 // pred_region
          _
        $region16: #{tpu_custom_call.1} parent=11 // pred_fallthru
          _
        // Predicated region
        $region17: #{tpu_custom_call.1} parent=11 // pred_check
          %p234 = pneg %p85
        $region18: #{tpu_custom_call.1} parent=11 // pred_check_branch
          %236 = sbr.rel (%p234) target = $region20
        $region19: #{tpu_custom_call.1} parent=11 // pred_region
          _
        $region20: #{tpu_custom_call.1} parent=11 // pred_fallthru
          _
        // Predicated region
        $region21: #{tpu_custom_call.1} parent=11 // pred_check
          %p237 = pneg %p106
        $region22: #{tpu_custom_call.1} parent=11 // pred_check_branch
          %239 = sbr.rel (%p237) target = $region24
        $region23: #{tpu_custom_call.1} parent=11 // pred_region
          _
        $region24: #{tpu_custom_call.1} parent=11 // pred_fallthru
          _
        // Predicated region
        $region25: #{tpu_custom_call.1} parent=11 // pred_check
          %p240 = pneg %p127
        $region26: #{tpu_custom_call.1} parent=11 // pred_check_branch
          %242 = sbr.rel (%p240) target = $region28
        $region27: #{tpu_custom_call.1} parent=11 // pred_region
          _
        $region28: #{tpu_custom_call.1} parent=11 // pred_fallthru
          _
        // Predicated region
        $region29: #{tpu_custom_call.1} parent=11 // pred_check
          %p243 = pneg %p148
        $region30: #{tpu_custom_call.1} parent=11 // pred_check_branch
          %245 = sbr.rel (%p243) target = $region32
        $region31: #{tpu_custom_call.1} parent=11 // pred_region
          _
        $region32: #{tpu_custom_call.1} parent=11 // pred_fallthru
          _
        // Predicated region
        $region33: #{tpu_custom_call.1} parent=11 // pred_check
          %p246 = pneg %p169
        $region34: #{tpu_custom_call.1} parent=11 // pred_check_branch
          %248 = sbr.rel (%p246) target = $region36
        $region35: #{tpu_custom_call.1} parent=11 // pred_region
          _
        $region36: #{tpu_custom_call.1} parent=11 // pred_fallthru
          _
        // Predicated region
        $region37: #{tpu_custom_call.1} parent=11 // pred_check
          %p249 = pneg %p190
        $region38: #{tpu_custom_call.1} parent=11 // pred_check_branch
          %251 = sbr.rel (%p249) target = $region40
        $region39: #{tpu_custom_call.1} parent=11 // pred_region
          _
        $region40: #{tpu_custom_call.1} parent=11 // pred_fallthru
          _
      $region12: #{tpu_custom_call.1} parent=5 // pred_fallthru
        _
      %p252 = scmp.lt.s32.totalorder %s17, 2
      // Predicated region
      $region41: #{tpu_custom_call.1} parent=5 // pred_check
        %p253 = pneg %p252
      $region42: #{tpu_custom_call.1} parent=5 // pred_check_branch
        %255 = sbr.rel (%p253) target = $region44
      $region43: #{tpu_custom_call.1} parent=5 // pred_region
        // Predicated region
        $region45: #{tpu_custom_call.1} parent=43 // pred_check
          %p256 = pneg %p37
        $region46: #{tpu_custom_call.1} parent=43 // pred_check_branch
          %258 = sbr.rel (%p256) target = $region48
        $region47: #{tpu_custom_call.1} parent=43 // pred_region
          %s259 = smul.u32 2, %s17
          %p260 = scmp.lt.s32.totalorder %s259, 3
          %s261 = scalar_select %p260, %s259, 3
          %s262 = smul.addr %s261, 8
          %s263 = scalar_lea.vmem %s0, %s262
          %s264 = smul.u32 2, %s17
        $region48: #{tpu_custom_call.1} parent=43 // pred_fallthru
          _
      $region44: #{tpu_custom_call.1} parent=5 // pred_fallthru
        _
      %p265 = scmp.le.s32.totalorder 1, %s17
      %p266 = scmp.lt.s32.totalorder %s17, 3
      %p267 = pnand %p265, %p266
      %p268 = pneg %p267
      // Predicated region
      $region49: #{tpu_custom_call.1} parent=5 // pred_check
        _
      $region50: #{tpu_custom_call.1} parent=5 // pred_check_branch
        %270 = sbr.rel (%p267) target = $region52
      $region51: #{tpu_custom_call.1} parent=5 // pred_region
        %s271 = ssub.s32 %s17, 1
        %s272 = smul.u32 2, %s22
        %p273 = scmp.lt.s32.totalorder %s272, 3
        %s274 = scalar_select %p273, %s272, 3
        %s275 = smul.addr %s274, 8
        %s276 = scalar_lea.vmem %s0, %s275
        %p277 = pneg %p43
        %p278 = pneg %p40
        %p279 = pneg %p64
        %p280 = pneg %p61
        %p281 = pneg %p85
        %p282 = pneg %p82
        %p283 = pneg %p106
        %p284 = pneg %p103
        %p285 = pneg %p127
        %p286 = pneg %p124
        %p287 = pneg %p148
        %p288 = pneg %p145
        %p289 = pneg %p169
        %p290 = pneg %p166
        %p291 = pneg %p190
        %p292 = pneg %p187
        %p293 = pneg %p216
        %p294 = pneg %p213
        %s295 = sand.u32 %s203, 1
        %s296 = scalar_lea.sflag [#allocation3], %s295
        %s297 = sand.u32 %s203, 1
        %s298 = smul.addr %s297, 16
        %s299 = scalar_lea.vmem [#allocation2], %s298
        %s300 = smul.u32 2, %s22
        %p301 = scmp.lt.s32.totalorder %s300, 3
        %s302 = scalar_select %p301, %s300, 3
        %s303 = smul.addr %s302, 8
        %s304 = scalar_lea.vmem %s0, %s303
        %s305 = smul.u32 2, %s22
        %s306 = smul.u32 2, %s22
        %v308 = vld [vmem:[%s304] sm:$0xff]
        %v309 = vld [vmem:[%s304 + $0x8] sm:$0xff]
        %v310 = vpack.c.bf16 %v309, %v308
        %v311 = vld [vmem:[%s1] sm:$0xff]
        %v312 = vld [vmem:[%s1 + $0x8] sm:$0xff]
        %v313 = vld [vmem:[%s1 + $0x10] sm:$0xff]
        %v314 = vld [vmem:[%s1 + $0x18] sm:$0xff]
        %v315 = vld [vmem:[%s2] sm:$0x3]
        %v317 = vlaneseq
        %v318 = vshrl.u32 %v317, 7
        %v319 = vsub.s32 0, %v318
        %v320 = vrot.slane %v315, %v319
        %v321 = vlaneseq
        %v322 = vshrl.u32 %v321, 7
        %v323 = vsub.s32 1, %v322
        %v324 = vrot.slane %v315, %v323
        %v331 = vunpack.c.l.b16 %v311
        %v332 = vunpack.c.h.b16 %v311
        %v333 = vunpack.c.l.b16 %v312
        %v334 = vunpack.c.h.b16 %v312
        %v335 = vunpack.c.l.b16 %v313
        %v336 = vunpack.c.h.b16 %v313
        %v337 = vunpack.c.l.b16 %v314
        %v338 = vunpack.c.h.b16 %v314
        %v339 = vpack.c.b16 %v333, %v331
        %v340 = vpack.c.b16 %v334, %v332
        %v341 = vpack.c.b16 %v337, %v335
        %v342 = vpack.c.b16 %v338, %v336
        %vm347 = vcmask 261120
        %v349 = vsel %vm347, %v310, 0
        %351 = vmatprep.subr.bf16.mxu0 %v340
        %352 = vmatpush1.bf16.msra.mxu0 %v339
        %353 = vmatprep.subr.bf16.mxu0 %v342
        %354 = vmatpush1.bf16.msra.mxu0 %v341
        %355 = vmatprep.subr.bf16.mxu0 0
        %356 = vmatpush1.bf16.msra.mxu0 0
        %357 = vmatprep.subr.bf16.mxu0 0
        %358 = vmatpush1.bf16.msra.mxu0 0
        %359 = vmatprep.subr.bf16.mxu0 0
        %360 = vmatpush1.bf16.msra.mxu0 0
        %361 = vmatprep.subr.bf16.mxu0 0
        %362 = vmatpush1.bf16.msra.mxu0 0
        %363 = vmatprep.subr.bf16.mxu0 0
        %364 = vmatpush1.bf16.msra.mxu0 0
        %365 = vmatprep.subr.bf16.mxu0 0
        %366 = vmatpush1.bf16.msra.mxu0 0
        %367 = vmatprep.subr.bf16.mxu0 0
        %368 = vmatpush1.bf16.msra.mxu0 0
        %369 = vmatprep.subr.bf16.mxu0 0
        %370 = vmatpush1.bf16.msra.mxu0 0
        %371 = vmatprep.subr.bf16.mxu0 0
        %372 = vmatpush1.bf16.msra.mxu0 0
        %373 = vmatprep.subr.bf16.mxu0 0
        %374 = vmatpush1.bf16.msra.mxu0 0
        %375 = vmatprep.subr.bf16.mxu0 0
        %376 = vmatpush1.bf16.msra.mxu0 0
        %377 = vmatprep.subr.bf16.mxu0 0
        %378 = vmatpush1.bf16.msra.mxu0 0
        %379 = vmatprep.subr.bf16.mxu0 0
        %380 = vmatpush1.bf16.msra.mxu0 0
        %381 = vmatprep.subr.bf16.mxu0 0
        %382 = vmatpush1.bf16.msra.mxu0 0
        %383 = vmatprep.mubr.bf16.mxu0 0
        %384 = vmatmul.mubr.bf16.gmra.mrb[0].mxu0 %v349
        %v385 = vpop.f32.mrb[0].mxu0
        %v386 = vadd.f32 %v320, %v385
        %v387 = vpop.f32.mrb[0].mxu0
        %v388 = vadd.f32 %v324, %v387
        %v389 = vpop.f32.mrb[0].mxu0
        %v390 = vadd.f32 %v320, %v389
        %v391 = vpop.f32.mrb[0].mxu0
        %v392 = vadd.f32 %v324, %v391
        %393 = vdwg.mxu0
        %v394 = vpack.c.bf16 %v386, %v386
        %v395 = vpack.c.bf16 %v390, %v390
        %397 = vrot.lane.b32.xlu0 %v394, 96
        %v398 = vpop.permute.xlu0 %397
        %vm399 = vcmask 64512
        %v401 = vsel %vm399, %v394, 0
        %v404 = vsel %vm399, %v398, 0
        %406 = vmatprep.subr.bf16.mxu0 0
        %407 = vmatpush1.bf16.xpose.msra.mxu0 %v404
        %408 = vmatprep.subr.bf16.mxu0 0
        %409 = vmatpush1.bf16.xpose.msra.mxu0 0
        %410 = vmatprep.subr.bf16.mxu0 0
        %411 = vmatpush1.bf16.xpose.msra.mxu0 0
        %412 = vmatprep.subr.bf16.mxu0 0
        %413 = vmatpush1.bf16.xpose.msra.mxu0 0
        %414 = vmatprep.subr.bf16.mxu0 0
        %415 = vmatpush1.bf16.xpose.msra.mxu0 0
        %416 = vmatprep.subr.bf16.mxu0 0
        %417 = vmatpush1.bf16.xpose.msra.mxu0 0
        %418 = vmatprep.subr.bf16.mxu0 0
        %419 = vmatpush1.bf16.xpose.msra.mxu0 0
        %420 = vmatprep.subr.bf16.mxu0 0
        %421 = vmatpush1.bf16.xpose.msra.mxu0 0
        %422 = vmatprep.subr.bf16.mxu0 0
        %423 = vmatpush1.bf16.xpose.msra.mxu0 0
        %424 = vmatprep.subr.bf16.mxu0 0
        %425 = vmatpush1.bf16.xpose.msra.mxu0 0
        %426 = vmatprep.subr.bf16.mxu0 0
        %427 = vmatpush1.bf16.xpose.msra.mxu0 0
        %428 = vmatprep.subr.bf16.mxu0 0
        %429 = vmatpush1.bf16.xpose.msra.mxu0 0
        %430 = vmatprep.subr.bf16.mxu0 0
        %431 = vmatpush1.bf16.xpose.msra.mxu0 0
        %432 = vmatprep.subr.bf16.mxu0 0
        %433 = vmatpush1.bf16.xpose.msra.mxu0 0
        %434 = vmatprep.subr.bf16.mxu0 0
        %435 = vmatpush1.bf16.xpose.msra.mxu0 0
        %436 = vmatprep.subr.bf16.mxu0 0
        %437 = vmatpush1.bf16.xpose.msra.mxu0 0
        %438 = vmatprep.mubr.bf16.mxu0 0
        %439 = vmatmul.mubr.bf16.gmra.mrb[0].mxu0 %v401
        %v440 = vpop.f32.mrb[0].mxu0
        %v441 = vadd.f32 0.0, %v440
        %v442 = vpop.f32.mrb[0].mxu0
        %v443 = vpop.f32.mrb[0].mxu0
        %v444 = vpop.f32.mrb[0].mxu0
        %445 = vdwg.mxu0
        %447 = vrot.lane.b32.xlu0 %v395, 96
        %v448 = vpop.permute.xlu0 %447
        %v450 = vsel %vm399, %v395, 0
        %v453 = vsel %vm399, %v448, 0
        %455 = vmatprep.subr.bf16.mxu0 0
        %456 = vmatpush1.bf16.xpose.msra.mxu0 %v453
        %457 = vmatprep.subr.bf16.mxu0 0
        %458 = vmatpush1.bf16.xpose.msra.mxu0 0
        %459 = vmatprep.subr.bf16.mxu0 0
        %460 = vmatpush1.bf16.xpose.msra.mxu0 0
        %461 = vmatprep.subr.bf16.mxu0 0
        %462 = vmatpush1.bf16.xpose.msra.mxu0 0
        %463 = vmatprep.subr.bf16.mxu0 0
        %464 = vmatpush1.bf16.xpose.msra.mxu0 0
        %465 = vmatprep.subr.bf16.mxu0 0
        %466 = vmatpush1.bf16.xpose.msra.mxu0 0
        %467 = vmatprep.subr.bf16.mxu0 0
        %468 = vmatpush1.bf16.xpose.msra.mxu0 0
        %469 = vmatprep.subr.bf16.mxu0 0
        %470 = vmatpush1.bf16.xpose.msra.mxu0 0
        %471 = vmatprep.subr.bf16.mxu0 0
        %472 = vmatpush1.bf16.xpose.msra.mxu0 0
        %473 = vmatprep.subr.bf16.mxu0 0
        %474 = vmatpush1.bf16.xpose.msra.mxu0 0
        %475 = vmatprep.subr.bf16.mxu0 0
        %476 = vmatpush1.bf16.xpose.msra.mxu0 0
        %477 = vmatprep.subr.bf16.mxu0 0
        %478 = vmatpush1.bf16.xpose.msra.mxu0 0
        %479 = vmatprep.subr.bf16.mxu0 0
        %480 = vmatpush1.bf16.xpose.msra.mxu0 0
        %481 = vmatprep.subr.bf16.mxu0 0
        %482 = vmatpush1.bf16.xpose.msra.mxu0 0
        %483 = vmatprep.subr.bf16.mxu0 0
        %484 = vmatpush1.bf16.xpose.msra.mxu0 0
        %485 = vmatprep.subr.bf16.mxu0 0
        %486 = vmatpush1.bf16.xpose.msra.mxu0 0
        %487 = vmatprep.mubr.bf16.mxu0 0
        %488 = vmatmul.mubr.bf16.gmra.mrb[0].mxu0 %v450
        %v489 = vpop.f32.mrb[0].mxu0
        %v490 = vadd.f32 0.0, %v489
        %v491 = vpop.f32.mrb[0].mxu0
        %v492 = vpop.f32.mrb[0].mxu0
        %v493 = vpop.f32.mrb[0].mxu0
        %494 = vdwg.mxu0
        %v495 = vmul.f32 %v441, 0.35355338
        %v496 = vmul.f32 %v490, 0.35355338
        %v497 = vsel %vm399, %v495, -inf
        %498 = vmax.xlane.f32.xlu0 %v497
        %v499 = vpop.xlane.xlu0 %498
        %v500 = vsel %vm399, %v496, -inf
        %501 = vmax.xlane.f32.xlu0 %v500
        %v502 = vpop.xlane.xlu0 %501
        %v503 = vsub.f32 %v495, %v499
        %v504 = vsub.f32 %v496, %v502
        %v505 = vmul.f32 %v503, 1.442695
        %v506 = vpow.pop %v505
        %v507 = vmul.f32 %v504, 1.442695
        %v508 = vpow.pop %v507
        %v509 = vsel %vm399, %v506, 0.0
        %510 = vadd.xlane.f32.xlu0 %v509
        %v511 = vpop.xlane.xlu0 %510
        %v512 = vsel %vm399, %v508, 0.0
        %513 = vadd.xlane.f32.xlu0 %v512
        %v514 = vpop.xlane.xlu0 %513
        %v515 = vrcp.pop %v511
        %v516 = vrcp.pop %v514
        %v517 = vmul.f32 %v506, %v515
        %v518 = vmul.f32 %v508, %v516
        %v519 = vpack.c.bf16 %v517, %v517
        %v520 = vpack.c.bf16 %v518, %v518
        %521 = vrot.lane.b32.xlu0 %v394, 64
        %v522 = vpop.permute.xlu0 %521
        %v524 = vsel %vm399, %v519, 0
        %vm526 = vcmask 1043456
        %v528 = vsel %vm526, %v522, 0
        %530 = vmatprep.subr.bf16.mxu0 0
        %531 = vmatpush1.bf16.msra.mxu0 %v528
        %532 = vmatprep.subr.bf16.mxu0 0
        %533 = vmatpush1.bf16.msra.mxu0 0
        %534 = vmatprep.subr.bf16.mxu0 0
        %535 = vmatpush1.bf16.msra.mxu0 0
        %536 = vmatprep.subr.bf16.mxu0 0
        %537 = vmatpush1.bf16.msra.mxu0 0
        %538 = vmatprep.subr.bf16.mxu0 0
        %539 = vmatpush1.bf16.msra.mxu0 0
        %540 = vmatprep.subr.bf16.mxu0 0
        %541 = vmatpush1.bf16.msra.mxu0 0
        %542 = vmatprep.subr.bf16.mxu0 0
        %543 = vmatpush1.bf16.msra.mxu0 0
        %544 = vmatprep.subr.bf16.mxu0 0
        %545 = vmatpush1.bf16.msra.mxu0 0
        %546 = vmatprep.subr.bf16.mxu0 0
        %547 = vmatpush1.bf16.msra.mxu0 0
        %548 = vmatprep.subr.bf16.mxu0 0
        %549 = vmatpush1.bf16.msra.mxu0 0
        %550 = vmatprep.subr.bf16.mxu0 0
        %551 = vmatpush1.bf16.msra.mxu0 0
        %552 = vmatprep.subr.bf16.mxu0 0
        %553 = vmatpush1.bf16.msra.mxu0 0
        %554 = vmatprep.subr.bf16.mxu0 0
        %555 = vmatpush1.bf16.msra.mxu0 0
        %556 = vmatprep.subr.bf16.mxu0 0
        %557 = vmatpush1.bf16.msra.mxu0 0
        %558 = vmatprep.subr.bf16.mxu0 0
        %559 = vmatpush1.bf16.msra.mxu0 0
        %560 = vmatprep.subr.bf16.mxu0 0
        %561 = vmatpush1.bf16.msra.mxu0 0
        %562 = vmatprep.mubr.bf16.mxu0 0
        %563 = vmatmul.mubr.bf16.gmra.mrb[0].mxu0 %v524
        %v564 = vpop.f32.mrb[0].mxu0
        %v565 = vadd.f32 0.0, %v564
        %v566 = vpop.f32.mrb[0].mxu0
        %v567 = vpop.f32.mrb[0].mxu0
        %v568 = vpop.f32.mrb[0].mxu0
        %569 = vdwg.mxu0
        %570 = vrot.lane.b32.xlu0 %v395, 64
        %v571 = vpop.permute.xlu0 %570
        %v573 = vsel %vm399, %v520, 0
        %v576 = vsel %vm526, %v571, 0
        %578 = vmatprep.subr.bf16.mxu0 0
        %579 = vmatpush1.bf16.msra.mxu0 %v576
        %580 = vmatprep.subr.bf16.mxu0 0
        %581 = vmatpush1.bf16.msra.mxu0 0
        %582 = vmatprep.subr.bf16.mxu0 0
        %583 = vmatpush1.bf16.msra.mxu0 0
        %584 = vmatprep.subr.bf16.mxu0 0
        %585 = vmatpush1.bf16.msra.mxu0 0
        %586 = vmatprep.subr.bf16.mxu0 0
        %587 = vmatpush1.bf16.msra.mxu0 0
        %588 = vmatprep.subr.bf16.mxu0 0
        %589 = vmatpush1.bf16.msra.mxu0 0
        %590 = vmatprep.subr.bf16.mxu0 0
        %591 = vmatpush1.bf16.msra.mxu0 0
        %592 = vmatprep.subr.bf16.mxu0 0
        %593 = vmatpush1.bf16.msra.mxu0 0
        %594 = vmatprep.subr.bf16.mxu0 0
        %595 = vmatpush1.bf16.msra.mxu0 0
        %596 = vmatprep.subr.bf16.mxu0 0
        %597 = vmatpush1.bf16.msra.mxu0 0
        %598 = vmatprep.subr.bf16.mxu0 0
        %599 = vmatpush1.bf16.msra.mxu0 0
        %600 = vmatprep.subr.bf16.mxu0 0
        %601 = vmatpush1.bf16.msra.mxu0 0
        %602 = vmatprep.subr.bf16.mxu0 0
        %603 = vmatpush1.bf16.msra.mxu0 0
        %604 = vmatprep.subr.bf16.mxu0 0
        %605 = vmatpush1.bf16.msra.mxu0 0
        %606 = vmatprep.subr.bf16.mxu0 0
        %607 = vmatpush1.bf16.msra.mxu0 0
        %608 = vmatprep.subr.bf16.mxu0 0
        %609 = vmatpush1.bf16.msra.mxu0 0
        %610 = vmatprep.mubr.bf16.mxu0 0
        %611 = vmatmul.mubr.bf16.gmra.mrb[0].mxu0 %v573
        %v612 = vpop.f32.mrb[0].mxu0
        %v613 = vadd.f32 0.0, %v612
        %v614 = vpop.f32.mrb[0].mxu0
        %v615 = vpop.f32.mrb[0].mxu0
        %v616 = vpop.f32.mrb[0].mxu0
        %617 = vdwg.mxu0
        %618 = vrot.lane.b32.xlu0 %v394, 120
        %v619 = vpop.permute.xlu0 %618
        %620 = vrot.lane.b32.xlu0 %v394, 88
        %v621 = vpop.permute.xlu0 %620
        %v623 = vsel %vm399, %v619, 0
        %v626 = vsel %vm399, %v621, 0
        %628 = vmatprep.subr.bf16.mxu0 0
        %629 = vmatpush1.bf16.xpose.msra.mxu0 %v626
        %630 = vmatprep.subr.bf16.mxu0 0
        %631 = vmatpush1.bf16.xpose.msra.mxu0 0
        %632 = vmatprep.subr.bf16.mxu0 0
        %633 = vmatpush1.bf16.xpose.msra.mxu0 0
        %634 = vmatprep.subr.bf16.mxu0 0
        %635 = vmatpush1.bf16.xpose.msra.mxu0 0
        %636 = vmatprep.subr.bf16.mxu0 0
        %637 = vmatpush1.bf16.xpose.msra.mxu0 0
        %638 = vmatprep.subr.bf16.mxu0 0
        %639 = vmatpush1.bf16.xpose.msra.mxu0 0
        %640 = vmatprep.subr.bf16.mxu0 0
        %641 = vmatpush1.bf16.xpose.msra.mxu0 0
        %642 = vmatprep.subr.bf16.mxu0 0
        %643 = vmatpush1.bf16.xpose.msra.mxu0 0
        %644 = vmatprep.subr.bf16.mxu0 0
        %645 = vmatpush1.bf16.xpose.msra.mxu0 0
        %646 = vmatprep.subr.bf16.mxu0 0
        %647 = vmatpush1.bf16.xpose.msra.mxu0 0
        %648 = vmatprep.subr.bf16.mxu0 0
        %649 = vmatpush1.bf16.xpose.msra.mxu0 0
        %650 = vmatprep.subr.bf16.mxu0 0
        %651 = vmatpush1.bf16.xpose.msra.mxu0 0
        %652 = vmatprep.subr.bf16.mxu0 0
        %653 = vmatpush1.bf16.xpose.msra.mxu0 0
        %654 = vmatprep.subr.bf16.mxu0 0
        %655 = vmatpush1.bf16.xpose.msra.mxu0 0
        %656 = vmatprep.subr.bf16.mxu0 0
        %657 = vmatpush1.bf16.xpose.msra.mxu0 0
        %658 = vmatprep.subr.bf16.mxu0 0
        %659 = vmatpush1.bf16.xpose.msra.mxu0 0
        %660 = vmatprep.mubr.bf16.mxu0 0
        %661 = vmatmul.mubr.bf16.gmra.mrb[0].mxu0 %v623
        %v662 = vpop.f32.mrb[0].mxu0
        %v663 = vadd.f32 0.0, %v662
        %v664 = vpop.f32.mrb[0].mxu0
        %v665 = vpop.f32.mrb[0].mxu0
        %v666 = vpop.f32.mrb[0].mxu0
        %667 = vdwg.mxu0
        %668 = vrot.lane.b32.xlu0 %v395, 120
        %v669 = vpop.permute.xlu0 %668
        %670 = vrot.lane.b32.xlu0 %v395, 88
        %v671 = vpop.permute.xlu0 %670
        %v673 = vsel %vm399, %v669, 0
        %v676 = vsel %vm399, %v671, 0
        %678 = vmatprep.subr.bf16.mxu0 0
        %679 = vmatpush1.bf16.xpose.msra.mxu0 %v676
        %680 = vmatprep.subr.bf16.mxu0 0
        %681 = vmatpush1.bf16.xpose.msra.mxu0 0
        %682 = vmatprep.subr.bf16.mxu0 0
        %683 = vmatpush1.bf16.xpose.msra.mxu0 0
        %684 = vmatprep.subr.bf16.mxu0 0
        %685 = vmatpush1.bf16.xpose.msra.mxu0 0
        %686 = vmatprep.subr.bf16.mxu0 0
        %687 = vmatpush1.bf16.xpose.msra.mxu0 0
        %688 = vmatprep.subr.bf16.mxu0 0
        %689 = vmatpush1.bf16.xpose.msra.mxu0 0
        %690 = vmatprep.subr.bf16.mxu0 0
        %691 = vmatpush1.bf16.xpose.msra.mxu0 0
        %692 = vmatprep.subr.bf16.mxu0 0
        %693 = vmatpush1.bf16.xpose.msra.mxu0 0
        %694 = vmatprep.subr.bf16.mxu0 0
        %695 = vmatpush1.bf16.xpose.msra.mxu0 0
        %696 = vmatprep.subr.bf16.mxu0 0
        %697 = vmatpush1.bf16.xpose.msra.mxu0 0
        %698 = vmatprep.subr.bf16.mxu0 0
        %699 = vmatpush1.bf16.xpose.msra.mxu0 0
        %700 = vmatprep.subr.bf16.mxu0 0
        %701 = vmatpush1.bf16.xpose.msra.mxu0 0
        %702 = vmatprep.subr.bf16.mxu0 0
        %703 = vmatpush1.bf16.xpose.msra.mxu0 0
        %704 = vmatprep.subr.bf16.mxu0 0
        %705 = vmatpush1.bf16.xpose.msra.mxu0 0
        %706 = vmatprep.subr.bf16.mxu0 0
        %707 = vmatpush1.bf16.xpose.msra.mxu0 0
        %708 = vmatprep.subr.bf16.mxu0 0
        %709 = vmatpush1.bf16.xpose.msra.mxu0 0
        %710 = vmatprep.mubr.bf16.mxu0 0
        %711 = vmatmul.mubr.bf16.gmra.mrb[0].mxu0 %v673
        %v712 = vpop.f32.mrb[0].mxu0
        %v713 = vadd.f32 0.0, %v712
        %v714 = vpop.f32.mrb[0].mxu0
        %v715 = vpop.f32.mrb[0].mxu0
        %v716 = vpop.f32.mrb[0].mxu0
        %717 = vdwg.mxu0
        %v718 = vmul.f32 %v663, 0.35355338
        %v719 = vmul.f32 %v713, 0.35355338
        %v720 = vsel %vm399, %v718, -inf
        %721 = vmax.xlane.f32.xlu0 %v720
        %v722 = vpop.xlane.xlu0 %721
        %v723 = vsel %vm399, %v719, -inf
        %724 = vmax.xlane.f32.xlu0 %v723
        %v725 = vpop.xlane.xlu0 %724
        %v726 = vsub.f32 %v718, %v722
        %v727 = vsub.f32 %v719, %v725
        %v728 = vmul.f32 %v726, 1.442695
        %v729 = vpow.pop %v728
        %v730 = vmul.f32 %v727, 1.442695
        %v731 = vpow.pop %v730
        %v732 = vsel %vm399, %v729, 0.0
        %733 = vadd.xlane.f32.xlu0 %v732
        %v734 = vpop.xlane.xlu0 %733
        %v735 = vsel %vm399, %v731, 0.0
        %736 = vadd.xlane.f32.xlu0 %v735
        %v737 = vpop.xlane.xlu0 %736
        %v738 = vrcp.pop %v734
        %v739 = vrcp.pop %v737
        %v740 = vmul.f32 %v729, %v738
        %v741 = vmul.f32 %v731, %v739
        %v742 = vpack.c.bf16 %v740, %v740
        %v743 = vpack.c.bf16 %v741, %v741
        %744 = vrot.lane.b32.xlu0 %v394, 56
        %v745 = vpop.permute.xlu0 %744
        %v747 = vsel %vm399, %v742, 0
        %v750 = vsel %vm526, %v745, 0
        %752 = vmatprep.subr.bf16.mxu0 0
        %753 = vmatpush1.bf16.msra.mxu0 %v750
        %754 = vmatprep.subr.bf16.mxu0 0
        %755 = vmatpush1.bf16.msra.mxu0 0
        %756 = vmatprep.subr.bf16.mxu0 0
        %757 = vmatpush1.bf16.msra.mxu0 0
        %758 = vmatprep.subr.bf16.mxu0 0
        %759 = vmatpush1.bf16.msra.mxu0 0
        %760 = vmatprep.subr.bf16.mxu0 0
        %761 = vmatpush1.bf16.msra.mxu0 0
        %762 = vmatprep.subr.bf16.mxu0 0
        %763 = vmatpush1.bf16.msra.mxu0 0
        %764 = vmatprep.subr.bf16.mxu0 0
        %765 = vmatpush1.bf16.msra.mxu0 0
        %766 = vmatprep.subr.bf16.mxu0 0
        %767 = vmatpush1.bf16.msra.mxu0 0
        %768 = vmatprep.subr.bf16.mxu0 0
        %769 = vmatpush1.bf16.msra.mxu0 0
        %770 = vmatprep.subr.bf16.mxu0 0
        %771 = vmatpush1.bf16.msra.mxu0 0
        %772 = vmatprep.subr.bf16.mxu0 0
        %773 = vmatpush1.bf16.msra.mxu0 0
        %774 = vmatprep.subr.bf16.mxu0 0
        %775 = vmatpush1.bf16.msra.mxu0 0
        %776 = vmatprep.subr.bf16.mxu0 0
        %777 = vmatpush1.bf16.msra.mxu0 0
        %778 = vmatprep.subr.bf16.mxu0 0
        %779 = vmatpush1.bf16.msra.mxu0 0
        %780 = vmatprep.subr.bf16.mxu0 0
        %781 = vmatpush1.bf16.msra.mxu0 0
        %782 = vmatprep.subr.bf16.mxu0 0
        %783 = vmatpush1.bf16.msra.mxu0 0
        %784 = vmatprep.mubr.bf16.mxu0 0
        %785 = vmatmul.mubr.bf16.gmra.mrb[0].mxu0 %v747
        %v786 = vpop.f32.mrb[0].mxu0
        %v787 = vadd.f32 0.0, %v786
        %v788 = vpop.f32.mrb[0].mxu0
        %v789 = vpop.f32.mrb[0].mxu0
        %v790 = vpop.f32.mrb[0].mxu0
        %791 = vdwg.mxu0
        %792 = vrot.lane.b32.xlu0 %v395, 56
        %v793 = vpop.permute.xlu0 %792
        %v795 = vsel %vm399, %v743, 0
        %v798 = vsel %vm526, %v793, 0
        %800 = vmatprep.subr.bf16.mxu0 0
        %801 = vmatpush1.bf16.msra.mxu0 %v798
        %802 = vmatprep.subr.bf16.mxu0 0
        %803 = vmatpush1.bf16.msra.mxu0 0
        %804 = vmatprep.subr.bf16.mxu0 0
        %805 = vmatpush1.bf16.msra.mxu0 0
        %806 = vmatprep.subr.bf16.mxu0 0
        %807 = vmatpush1.bf16.msra.mxu0 0
        %808 = vmatprep.subr.bf16.mxu0 0
        %809 = vmatpush1.bf16.msra.mxu0 0
        %810 = vmatprep.subr.bf16.mxu0 0
        %811 = vmatpush1.bf16.msra.mxu0 0
        %812 = vmatprep.subr.bf16.mxu0 0
        %813 = vmatpush1.bf16.msra.mxu0 0
        %814 = vmatprep.subr.bf16.mxu0 0
        %815 = vmatpush1.bf16.msra.mxu0 0
        %816 = vmatprep.subr.bf16.mxu0 0
        %817 = vmatpush1.bf16.msra.mxu0 0
        %818 = vmatprep.subr.bf16.mxu0 0
        %819 = vmatpush1.bf16.msra.mxu0 0
        %820 = vmatprep.subr.bf16.mxu0 0
        %821 = vmatpush1.bf16.msra.mxu0 0
        %822 = vmatprep.subr.bf16.mxu0 0
        %823 = vmatpush1.bf16.msra.mxu0 0
        %824 = vmatprep.subr.bf16.mxu0 0
        %825 = vmatpush1.bf16.msra.mxu0 0
        %826 = vmatprep.subr.bf16.mxu0 0
        %827 = vmatpush1.bf16.msra.mxu0 0
        %828 = vmatprep.subr.bf16.mxu0 0
        %829 = vmatpush1.bf16.msra.mxu0 0
        %830 = vmatprep.subr.bf16.mxu0 0
        %831 = vmatpush1.bf16.msra.mxu0 0
        %832 = vmatprep.mubr.bf16.mxu0 0
        %833 = vmatmul.mubr.bf16.gmra.mrb[0].mxu0 %v795
        %v834 = vpop.f32.mrb[0].mxu0
        %v835 = vadd.f32 0.0, %v834
        %v836 = vpop.f32.mrb[0].mxu0
        %v837 = vpop.f32.mrb[0].mxu0
        %v838 = vpop.f32.mrb[0].mxu0
        %839 = vdwg.mxu0
        %840 = vrot.lane.b32.xlu0 %v394, 112
        %v841 = vpop.permute.xlu0 %840
        %842 = vrot.lane.b32.xlu0 %v394, 80
        %v843 = vpop.permute.xlu0 %842
        %v845 = vsel %vm399, %v841, 0
        %v848 = vsel %vm399, %v843, 0
        %850 = vmatprep.subr.bf16.mxu0 0
        %851 = vmatpush1.bf16.xpose.msra.mxu0 %v848
        %852 = vmatprep.subr.bf16.mxu0 0
        %853 = vmatpush1.bf16.xpose.msra.mxu0 0
        %854 = vmatprep.subr.bf16.mxu0 0
        %855 = vmatpush1.bf16.xpose.msra.mxu0 0
        %856 = vmatprep.subr.bf16.mxu0 0
        %857 = vmatpush1.bf16.xpose.msra.mxu0 0
        %858 = vmatprep.subr.bf16.mxu0 0
        %859 = vmatpush1.bf16.xpose.msra.mxu0 0
        %860 = vmatprep.subr.bf16.mxu0 0
        %861 = vmatpush1.bf16.xpose.msra.mxu0 0
        %862 = vmatprep.subr.bf16.mxu0 0
        %863 = vmatpush1.bf16.xpose.msra.mxu0 0
        %864 = vmatprep.subr.bf16.mxu0 0
        %865 = vmatpush1.bf16.xpose.msra.mxu0 0
        %866 = vmatprep.subr.bf16.mxu0 0
        %867 = vmatpush1.bf16.xpose.msra.mxu0 0
        %868 = vmatprep.subr.bf16.mxu0 0
        %869 = vmatpush1.bf16.xpose.msra.mxu0 0
        %870 = vmatprep.subr.bf16.mxu0 0
        %871 = vmatpush1.bf16.xpose.msra.mxu0 0
        %872 = vmatprep.subr.bf16.mxu0 0
        %873 = vmatpush1.bf16.xpose.msra.mxu0 0
        %874 = vmatprep.subr.bf16.mxu0 0
        %875 = vmatpush1.bf16.xpose.msra.mxu0 0
        %876 = vmatprep.subr.bf16.mxu0 0
        %877 = vmatpush1.bf16.xpose.msra.mxu0 0
        %878 = vmatprep.subr.bf16.mxu0 0
        %879 = vmatpush1.bf16.xpose.msra.mxu0 0
        %880 = vmatprep.subr.bf16.mxu0 0
        %881 = vmatpush1.bf16.xpose.msra.mxu0 0
        %882 = vmatprep.mubr.bf16.mxu0 0
        %883 = vmatmul.mubr.bf16.gmra.mrb[0].mxu0 %v845
        %v884 = vpop.f32.mrb[0].mxu0
        %v885 = vadd.f32 0.0, %v884
        %v886 = vpop.f32.mrb[0].mxu0
        %v887 = vpop.f32.mrb[0].mxu0
        %v888 = vpop.f32.mrb[0].mxu0
        %889 = vdwg.mxu0
        %890 = vrot.lane.b32.xlu0 %v395, 112
        %v891 = vpop.permute.xlu0 %890
        %892 = vrot.lane.b32.xlu0 %v395, 80
        %v893 = vpop.permute.xlu0 %892
        %v895 = vsel %vm399, %v891, 0
        %v898 = vsel %vm399, %v893, 0
        %900 = vmatprep.subr.bf16.mxu0 0
        %901 = vmatpush1.bf16.xpose.msra.mxu0 %v898
        %902 = vmatprep.subr.bf16.mxu0 0
        %903 = vmatpush1.bf16.xpose.msra.mxu0 0
        %904 = vmatprep.subr.bf16.mxu0 0
        %905 = vmatpush1.bf16.xpose.msra.mxu0 0
        %906 = vmatprep.subr.bf16.mxu0 0
        %907 = vmatpush1.bf16.xpose.msra.mxu0 0
        %908 = vmatprep.subr.bf16.mxu0 0
        %909 = vmatpush1.bf16.xpose.msra.mxu0 0
        %910 = vmatprep.subr.bf16.mxu0 0
        %911 = vmatpush1.bf16.xpose.msra.mxu0 0
        %912 = vmatprep.subr.bf16.mxu0 0
        %913 = vmatpush1.bf16.xpose.msra.mxu0 0
        %914 = vmatprep.subr.bf16.mxu0 0
        %915 = vmatpush1.bf16.xpose.msra.mxu0 0
        %916 = vmatprep.subr.bf16.mxu0 0
        %917 = vmatpush1.bf16.xpose.msra.mxu0 0
        %918 = vmatprep.subr.bf16.mxu0 0
        %919 = vmatpush1.bf16.xpose.msra.mxu0 0
        %920 = vmatprep.subr.bf16.mxu0 0
        %921 = vmatpush1.bf16.xpose.msra.mxu0 0
        %922 = vmatprep.subr.bf16.mxu0 0
        %923 = vmatpush1.bf16.xpose.msra.mxu0 0
        %924 = vmatprep.subr.bf16.mxu0 0
        %925 = vmatpush1.bf16.xpose.msra.mxu0 0
        %926 = vmatprep.subr.bf16.mxu0 0
        %927 = vmatpush1.bf16.xpose.msra.mxu0 0
        %928 = vmatprep.subr.bf16.mxu0 0
        %929 = vmatpush1.bf16.xpose.msra.mxu0 0
        %930 = vmatprep.subr.bf16.mxu0 0
        %931 = vmatpush1.bf16.xpose.msra.mxu0 0
        %932 = vmatprep.mubr.bf16.mxu0 0
        %933 = vmatmul.mubr.bf16.gmra.mrb[0].mxu0 %v895
        %v934 = vpop.f32.mrb[0].mxu0
        %v935 = vadd.f32 0.0, %v934
        %v936 = vpop.f32.mrb[0].mxu0
        %v937 = vpop.f32.mrb[0].mxu0
        %v938 = vpop.f32.mrb[0].mxu0
        %939 = vdwg.mxu0
        %v940 = vmul.f32 %v885, 0.35355338
        %v941 = vmul.f32 %v935, 0.35355338
        %v942 = vsel %vm399, %v940, -inf
        %943 = vmax.xlane.f32.xlu0 %v942
        %v944 = vpop.xlane.xlu0 %943
        %v945 = vsel %vm399, %v941, -inf
        %946 = vmax.xlane.f32.xlu0 %v945
        %v947 = vpop.xlane.xlu0 %946
        %v948 = vsub.f32 %v940, %v944
        %v949 = vsub.f32 %v941, %v947
        %v950 = vmul.f32 %v948, 1.442695
        %v951 = vpow.pop %v950
        %v952 = vmul.f32 %v949, 1.442695
        %v953 = vpow.pop %v952
        %v954 = vsel %vm399, %v951, 0.0
        %955 = vadd.xlane.f32.xlu0 %v954
        %v956 = vpop.xlane.xlu0 %955
        %v957 = vsel %vm399, %v953, 0.0
        %958 = vadd.xlane.f32.xlu0 %v957
        %v959 = vpop.xlane.xlu0 %958
        %v960 = vrcp.pop %v956
        %v961 = vrcp.pop %v959
        %v962 = vmul.f32 %v951, %v960
        %v963 = vmul.f32 %v953, %v961
        %v964 = vpack.c.bf16 %v962, %v962
        %v965 = vpack.c.bf16 %v963, %v963
        %966 = vrot.lane.b32.xlu0 %v394, 48
        %v967 = vpop.permute.xlu0 %966
        %v969 = vsel %vm399, %v964, 0
        %v972 = vsel %vm526, %v967, 0
        %974 = vmatprep.subr.bf16.mxu0 0
        %975 = vmatpush1.bf16.msra.mxu0 %v972
        %976 = vmatprep.subr.bf16.mxu0 0
        %977 = vmatpush1.bf16.msra.mxu0 0
        %978 = vmatprep.subr.bf16.mxu0 0
        %979 = vmatpush1.bf16.msra.mxu0 0
        %980 = vmatprep.subr.bf16.mxu0 0
        %981 = vmatpush1.bf16.msra.mxu0 0
        %982 = vmatprep.subr.bf16.mxu0 0
        %983 = vmatpush1.bf16.msra.mxu0 0
        %984 = vmatprep.subr.bf16.mxu0 0
        %985 = vmatpush1.bf16.msra.mxu0 0
        %986 = vmatprep.subr.bf16.mxu0 0
        %987 = vmatpush1.bf16.msra.mxu0 0
        %988 = vmatprep.subr.bf16.mxu0 0
        %989 = vmatpush1.bf16.msra.mxu0 0
        %990 = vmatprep.subr.bf16.mxu0 0
        %991 = vmatpush1.bf16.msra.mxu0 0
        %992 = vmatprep.subr.bf16.mxu0 0
        %993 = vmatpush1.bf16.msra.mxu0 0
        %994 = vmatprep.subr.bf16.mxu0 0
        %995 = vmatpush1.bf16.msra.mxu0 0
        %996 = vmatprep.subr.bf16.mxu0 0
        %997 = vmatpush1.bf16.msra.mxu0 0
        %998 = vmatprep.subr.bf16.mxu0 0
        %999 = vmatpush1.bf16.msra.mxu0 0
        %1000 = vmatprep.subr.bf16.mxu0 0
        %1001 = vmatpush1.bf16.msra.mxu0 0
        %1002 = vmatprep.subr.bf16.mxu0 0
        %1003 = vmatpush1.bf16.msra.mxu0 0
        %1004 = vmatprep.subr.bf16.mxu0 0
        %1005 = vmatpush1.bf16.msra.mxu0 0
        %1006 = vmatprep.mubr.bf16.mxu0 0
        %1007 = vmatmul.mubr.bf16.gmra.mrb[0].mxu0 %v969
        %v1008 = vpop.f32.mrb[0].mxu0
        %v1009 = vadd.f32 0.0, %v1008
        %v1010 = vpop.f32.mrb[0].mxu0
        %v1011 = vpop.f32.mrb[0].mxu0
        %v1012 = vpop.f32.mrb[0].mxu0
        %1013 = vdwg.mxu0
        %1014 = vrot.lane.b32.xlu0 %v395, 48
        %v1015 = vpop.permute.xlu0 %1014
        %v1017 = vsel %vm399, %v965, 0
        %v1020 = vsel %vm526, %v1015, 0
        %1022 = vmatprep.subr.bf16.mxu0 0
        %1023 = vmatpush1.bf16.msra.mxu0 %v1020
        %1024 = vmatprep.subr.bf16.mxu0 0
        %1025 = vmatpush1.bf16.msra.mxu0 0
        %1026 = vmatprep.subr.bf16.mxu0 0
        %1027 = vmatpush1.bf16.msra.mxu0 0
        %1028 = vmatprep.subr.bf16.mxu0 0
        %1029 = vmatpush1.bf16.msra.mxu0 0
        %1030 = vmatprep.subr.bf16.mxu0 0
        %1031 = vmatpush1.bf16.msra.mxu0 0
        %1032 = vmatprep.subr.bf16.mxu0 0
        %1033 = vmatpush1.bf16.msra.mxu0 0
        %1034 = vmatprep.subr.bf16.mxu0 0
        %1035 = vmatpush1.bf16.msra.mxu0 0
        %1036 = vmatprep.subr.bf16.mxu0 0
        %1037 = vmatpush1.bf16.msra.mxu0 0
        %1038 = vmatprep.subr.bf16.mxu0 0
        %1039 = vmatpush1.bf16.msra.mxu0 0
        %1040 = vmatprep.subr.bf16.mxu0 0
        %1041 = vmatpush1.bf16.msra.mxu0 0
        %1042 = vmatprep.subr.bf16.mxu0 0
        %1043 = vmatpush1.bf16.msra.mxu0 0
        %1044 = vmatprep.subr.bf16.mxu0 0
        %1045 = vmatpush1.bf16.msra.mxu0 0
        %1046 = vmatprep.subr.bf16.mxu0 0
        %1047 = vmatpush1.bf16.msra.mxu0 0
        %1048 = vmatprep.subr.bf16.mxu0 0
        %1049 = vmatpush1.bf16.msra.mxu0 0
        %1050 = vmatprep.subr.bf16.mxu0 0
        %1051 = vmatpush1.bf16.msra.mxu0 0
        %1052 = vmatprep.subr.bf16.mxu0 0
        %1053 = vmatpush1.bf16.msra.mxu0 0
        %1054 = vmatprep.mubr.bf16.mxu0 0
        %1055 = vmatmul.mubr.bf16.gmra.mrb[0].mxu0 %v1017
        %v1056 = vpop.f32.mrb[0].mxu0
        %v1057 = vadd.f32 0.0, %v1056
        %v1058 = vpop.f32.mrb[0].mxu0
        %v1059 = vpop.f32.mrb[0].mxu0
        %v1060 = vpop.f32.mrb[0].mxu0
        %1061 = vdwg.mxu0
        %1062 = vrot.lane.b32.xlu0 %v394, 104
        %v1063 = vpop.permute.xlu0 %1062
        %1064 = vrot.lane.b32.xlu0 %v394, 72
        %v1065 = vpop.permute.xlu0 %1064
        %v1067 = vsel %vm399, %v1063, 0
        %v1070 = vsel %vm399, %v1065, 0
        %1072 = vmatprep.subr.bf16.mxu0 0
        %1073 = vmatpush1.bf16.xpose.msra.mxu0 %v1070
        %1074 = vmatprep.subr.bf16.mxu0 0
        %1075 = vmatpush1.bf16.xpose.msra.mxu0 0
        %1076 = vmatprep.subr.bf16.mxu0 0
        %1077 = vmatpush1.bf16.xpose.msra.mxu0 0
        %1078 = vmatprep.subr.bf16.mxu0 0
        %1079 = vmatpush1.bf16.xpose.msra.mxu0 0
        %1080 = vmatprep.subr.bf16.mxu0 0
        %1081 = vmatpush1.bf16.xpose.msra.mxu0 0
        %1082 = vmatprep.subr.bf16.mxu0 0
        %1083 = vmatpush1.bf16.xpose.msra.mxu0 0
        %1084 = vmatprep.subr.bf16.mxu0 0
        %1085 = vmatpush1.bf16.xpose.msra.mxu0 0
        %1086 = vmatprep.subr.bf16.mxu0 0
        %1087 = vmatpush1.bf16.xpose.msra.mxu0 0
        %1088 = vmatprep.subr.bf16.mxu0 0
        %1089 = vmatpush1.bf16.xpose.msra.mxu0 0
        %1090 = vmatprep.subr.bf16.mxu0 0
        %1091 = vmatpush1.bf16.xpose.msra.mxu0 0
        %1092 = vmatprep.subr.bf16.mxu0 0
        %1093 = vmatpush1.bf16.xpose.msra.mxu0 0
        %1094 = vmatprep.subr.bf16.mxu0 0
        %1095 = vmatpush1.bf16.xpose.msra.mxu0 0
        %1096 = vmatprep.subr.bf16.mxu0 0
        %1097 = vmatpush1.bf16.xpose.msra.mxu0 0
        %1098 = vmatprep.subr.bf16.mxu0 0
        %1099 = vmatpush1.bf16.xpose.msra.mxu0 0
        %1100 = vmatprep.subr.bf16.mxu0 0
        %1101 = vmatpush1.bf16.xpose.msra.mxu0 0
        %1102 = vmatprep.subr.bf16.mxu0 0
        %1103 = vmatpush1.bf16.xpose.msra.mxu0 0
        %1104 = vmatprep.mubr.bf16.mxu0 0
        %1105 = vmatmul.mubr.bf16.gmra.mrb[0].mxu0 %v1067
        %v1106 = vpop.f32.mrb[0].mxu0
        %v1107 = vadd.f32 0.0, %v1106
        %v1108 = vpop.f32.mrb[0].mxu0
        %v1109 = vpop.f32.mrb[0].mxu0
        %v1110 = vpop.f32.mrb[0].mxu0
        %1111 = vdwg.mxu0
        %1112 = vrot.lane.b32.xlu0 %v395, 104
        %v1113 = vpop.permute.xlu0 %1112
        %1114 = vrot.lane.b32.xlu0 %v395, 72
        %v1115 = vpop.permute.xlu0 %1114
        %v1117 = vsel %vm399, %v1113, 0
        %v1120 = vsel %vm399, %v1115, 0
        %1122 = vmatprep.subr.bf16.mxu0 0
        %1123 = vmatpush1.bf16.xpose.msra.mxu0 %v1120
        %1124 = vmatprep.subr.bf16.mxu0 0
        %1125 = vmatpush1.bf16.xpose.msra.mxu0 0
        %1126 = vmatprep.subr.bf16.mxu0 0
        %1127 = vmatpush1.bf16.xpose.msra.mxu0 0
        %1128 = vmatprep.subr.bf16.mxu0 0
        %1129 = vmatpush1.bf16.xpose.msra.mxu0 0
        %1130 = vmatprep.subr.bf16.mxu0 0
        %1131 = vmatpush1.bf16.xpose.msra.mxu0 0
        %1132 = vmatprep.subr.bf16.mxu0 0
        %1133 = vmatpush1.bf16.xpose.msra.mxu0 0
        %1134 = vmatprep.subr.bf16.mxu0 0
        %1135 = vmatpush1.bf16.xpose.msra.mxu0 0
        %1136 = vmatprep.subr.bf16.mxu0 0
        %1137 = vmatpush1.bf16.xpose.msra.mxu0 0
        %1138 = vmatprep.subr.bf16.mxu0 0
        %1139 = vmatpush1.bf16.xpose.msra.mxu0 0
        %1140 = vmatprep.subr.bf16.mxu0 0
        %1141 = vmatpush1.bf16.xpose.msra.mxu0 0
        %1142 = vmatprep.subr.bf16.mxu0 0
        %1143 = vmatpush1.bf16.xpose.msra.mxu0 0
        %1144 = vmatprep.subr.bf16.mxu0 0
        %1145 = vmatpush1.bf16.xpose.msra.mxu0 0
        %1146 = vmatprep.subr.bf16.mxu0 0
        %1147 = vmatpush1.bf16.xpose.msra.mxu0 0
        %1148 = vmatprep.subr.bf16.mxu0 0
        %1149 = vmatpush1.bf16.xpose.msra.mxu0 0
        %1150 = vmatprep.subr.bf16.mxu0 0
        %1151 = vmatpush1.bf16.xpose.msra.mxu0 0
        %1152 = vmatprep.subr.bf16.mxu0 0
        %1153 = vmatpush1.bf16.xpose.msra.mxu0 0
        %1154 = vmatprep.mubr.bf16.mxu0 0
        %1155 = vmatmul.mubr.bf16.gmra.mrb[0].mxu0 %v1117
        %v1156 = vpop.f32.mrb[0].mxu0
        %v1157 = vadd.f32 0.0, %v1156
        %v1158 = vpop.f32.mrb[0].mxu0
        %v1159 = vpop.f32.mrb[0].mxu0
        %v1160 = vpop.f32.mrb[0].mxu0
        %1161 = vdwg.mxu0
        %v1162 = vmul.f32 %v1107, 0.35355338
        %v1163 = vmul.f32 %v1157, 0.35355338
        %v1164 = vsel %vm399, %v1162, -inf
        %1165 = vmax.xlane.f32.xlu0 %v1164
        %v1166 = vpop.xlane.xlu0 %1165
        %v1167 = vsel %vm399, %v1163, -inf
        %1168 = vmax.xlane.f32.xlu0 %v1167
        %v1169 = vpop.xlane.xlu0 %1168
        %v1170 = vsub.f32 %v1162, %v1166
        %v1171 = vsub.f32 %v1163, %v1169
        %v1172 = vmul.f32 %v1170, 1.442695
        %v1173 = vpow.pop %v1172
        %v1174 = vmul.f32 %v1171, 1.442695
        %v1175 = vpow.pop %v1174
        %v1176 = vsel %vm399, %v1173, 0.0
        %1177 = vadd.xlane.f32.xlu0 %v1176
        %v1178 = vpop.xlane.xlu0 %1177
        %v1179 = vsel %vm399, %v1175, 0.0
        %1180 = vadd.xlane.f32.xlu0 %v1179
        %v1181 = vpop.xlane.xlu0 %1180
        %v1182 = vrcp.pop %v1178
        %v1183 = vrcp.pop %v1181
        %v1184 = vmul.f32 %v1173, %v1182
        %v1185 = vmul.f32 %v1175, %v1183
        %v1186 = vpack.c.bf16 %v1184, %v1184
        %v1187 = vpack.c.bf16 %v1185, %v1185
        %1188 = vrot.lane.b32.xlu0 %v394, 40
        %v1189 = vpop.permute.xlu0 %1188
        %v1191 = vsel %vm399, %v1186, 0
        %v1194 = vsel %vm526, %v1189, 0
        %1196 = vmatprep.subr.bf16.mxu0 0
        %1197 = vmatpush1.bf16.msra.mxu0 %v1194
        %1198 = vmatprep.subr.bf16.mxu0 0
        %1199 = vmatpush1.bf16.msra.mxu0 0
        %1200 = vmatprep.subr.bf16.mxu0 0
        %1201 = vmatpush1.bf16.msra.mxu0 0
        %1202 = vmatprep.subr.bf16.mxu0 0
        %1203 = vmatpush1.bf16.msra.mxu0 0
        %1204 = vmatprep.subr.bf16.mxu0 0
        %1205 = vmatpush1.bf16.msra.mxu0 0
        %1206 = vmatprep.subr.bf16.mxu0 0
        %1207 = vmatpush1.bf16.msra.mxu0 0
        %1208 = vmatprep.subr.bf16.mxu0 0
        %1209 = vmatpush1.bf16.msra.mxu0 0
        %1210 = vmatprep.subr.bf16.mxu0 0
        %1211 = vmatpush1.bf16.msra.mxu0 0
        %1212 = vmatprep.subr.bf16.mxu0 0
        %1213 = vmatpush1.bf16.msra.mxu0 0
        %1214 = vmatprep.subr.bf16.mxu0 0
        %1215 = vmatpush1.bf16.msra.mxu0 0
        %1216 = vmatprep.subr.bf16.mxu0 0
        %1217 = vmatpush1.bf16.msra.mxu0 0
        %1218 = vmatprep.subr.bf16.mxu0 0
        %1219 = vmatpush1.bf16.msra.mxu0 0
        %1220 = vmatprep.subr.bf16.mxu0 0
        %1221 = vmatpush1.bf16.msra.mxu0 0
        %1222 = vmatprep.subr.bf16.mxu0 0
        %1223 = vmatpush1.bf16.msra.mxu0 0
        %1224 = vmatprep.subr.bf16.mxu0 0
        %1225 = vmatpush1.bf16.msra.mxu0 0
        %1226 = vmatprep.subr.bf16.mxu0 0
        %1227 = vmatpush1.bf16.msra.mxu0 0
        %1228 = vmatprep.mubr.bf16.mxu0 0
        %1229 = vmatmul.mubr.bf16.gmra.mrb[0].mxu0 %v1191
        %v1230 = vpop.f32.mrb[0].mxu0
        %v1231 = vadd.f32 0.0, %v1230
        %v1232 = vpop.f32.mrb[0].mxu0
        %v1233 = vpop.f32.mrb[0].mxu0
        %v1234 = vpop.f32.mrb[0].mxu0
        %1235 = vdwg.mxu0
        %1236 = vrot.lane.b32.xlu0 %v395, 40
        %v1237 = vpop.permute.xlu0 %1236
        %v1239 = vsel %vm399, %v1187, 0
        %v1242 = vsel %vm526, %v1237, 0
        %1244 = vmatprep.subr.bf16.mxu0 0
        %1245 = vmatpush1.bf16.msra.mxu0 %v1242
        %1246 = vmatprep.subr.bf16.mxu0 0
        %1247 = vmatpush1.bf16.msra.mxu0 0
        %1248 = vmatprep.subr.bf16.mxu0 0
        %1249 = vmatpush1.bf16.msra.mxu0 0
        %1250 = vmatprep.subr.bf16.mxu0 0
        %1251 = vmatpush1.bf16.msra.mxu0 0
        %1252 = vmatprep.subr.bf16.mxu0 0
        %1253 = vmatpush1.bf16.msra.mxu0 0
        %1254 = vmatprep.subr.bf16.mxu0 0
        %1255 = vmatpush1.bf16.msra.mxu0 0
        %1256 = vmatprep.subr.bf16.mxu0 0
        %1257 = vmatpush1.bf16.msra.mxu0 0
        %1258 = vmatprep.subr.bf16.mxu0 0
        %1259 = vmatpush1.bf16.msra.mxu0 0
        %1260 = vmatprep.subr.bf16.mxu0 0
        %1261 = vmatpush1.bf16.msra.mxu0 0
        %1262 = vmatprep.subr.bf16.mxu0 0
        %1263 = vmatpush1.bf16.msra.mxu0 0
        %1264 = vmatprep.subr.bf16.mxu0 0
        %1265 = vmatpush1.bf16.msra.mxu0 0
        %1266 = vmatprep.subr.bf16.mxu0 0
        %1267 = vmatpush1.bf16.msra.mxu0 0
        %1268 = vmatprep.subr.bf16.mxu0 0
        %1269 = vmatpush1.bf16.msra.mxu0 0
        %1270 = vmatprep.subr.bf16.mxu0 0
        %1271 = vmatpush1.bf16.msra.mxu0 0
        %1272 = vmatprep.subr.bf16.mxu0 0
        %1273 = vmatpush1.bf16.msra.mxu0 0
        %1274 = vmatprep.subr.bf16.mxu0 0
        %1275 = vmatpush1.bf16.msra.mxu0 0
        %1276 = vmatprep.mubr.bf16.mxu0 0
        %1277 = vmatmul.mubr.bf16.gmra.mrb[0].mxu0 %v1239
        %v1278 = vpop.f32.mrb[0].mxu0
        %v1279 = vadd.f32 0.0, %v1278
        %v1280 = vpop.f32.mrb[0].mxu0
        %v1281 = vpop.f32.mrb[0].mxu0
        %v1282 = vpop.f32.mrb[0].mxu0
        %1283 = vdwg.mxu0
        %v1284 = vpack.c.bf16 %v388, %v388
        %v1285 = vpack.c.bf16 %v392, %v392
        %1288 = vrot.lane.b32.xlu0 %v386, 32
        %v1289 = vpop.permute.xlu0 %1288
        %1290 = vrot.lane.b32.xlu0 %v390, 32
        %v1291 = vpop.permute.xlu0 %1290
        %1294 = vxpose.xlu0.b32.start [1/16] %v1289, 128
        %1295 = vxpose.xlu0.b32.cont [2/16] 0.0, 128
        %1296 = vxpose.xlu0.b32.cont [3/16] 0.0, 128
        %1297 = vxpose.xlu0.b32.cont [4/16] 0.0, 128
        %1298 = vxpose.xlu0.b32.cont [5/16] 0.0, 128
        %1299 = vxpose.xlu0.b32.cont [6/16] 0.0, 128
        %1300 = vxpose.xlu0.b32.cont [7/16] 0.0, 128
        %1301 = vxpose.xlu0.b32.cont [8/16] 0.0, 128
        %1302 = vxpose.xlu0.b32.cont [9/16] 0.0, 128
        %1303 = vxpose.xlu0.b32.cont [10/16] 0.0, 128
        %1304 = vxpose.xlu0.b32.cont [11/16] 0.0, 128
        %1305 = vxpose.xlu0.b32.cont [12/16] 0.0, 128
        %1306 = vxpose.xlu0.b32.cont [13/16] 0.0, 128
        %1307 = vxpose.xlu0.b32.cont [14/16] 0.0, 128
        %1308 = vxpose.xlu0.b32.cont [15/16] 0.0, 128
        %1309 = vxpose.xlu0.b32.end [16/16] 0.0, 128
        %v1310 = vpop.trf.xlu0
        %v1311 = vpop.trf.xlu0
        %v1312 = vpop.trf.xlu0
        %v1313 = vpop.trf.xlu0
        %v1314 = vpop.trf.xlu0
        %v1315 = vpop.trf.xlu0
        %v1316 = vpop.trf.xlu0
        %v1317 = vpop.trf.xlu0
        %v1318 = vpop.trf.xlu0
        %v1319 = vpop.trf.xlu0
        %v1320 = vpop.trf.xlu0
        %v1321 = vpop.trf.xlu0
        %v1322 = vpop.trf.xlu0
        %v1323 = vpop.trf.xlu0
        %v1324 = vpop.trf.xlu0
        %v1325 = vpop.trf.xlu0
        %1326 = vxpose.xlu0.b32.start [1/16] %v1291, 128
        %1327 = vxpose.xlu0.b32.cont [2/16] 0.0, 128
        %1328 = vxpose.xlu0.b32.cont [3/16] 0.0, 128
        %1329 = vxpose.xlu0.b32.cont [4/16] 0.0, 128
        %1330 = vxpose.xlu0.b32.cont [5/16] 0.0, 128
        %1331 = vxpose.xlu0.b32.cont [6/16] 0.0, 128
        %1332 = vxpose.xlu0.b32.cont [7/16] 0.0, 128
        %1333 = vxpose.xlu0.b32.cont [8/16] 0.0, 128
        %1334 = vxpose.xlu0.b32.cont [9/16] 0.0, 128
        %1335 = vxpose.xlu0.b32.cont [10/16] 0.0, 128
        %1336 = vxpose.xlu0.b32.cont [11/16] 0.0, 128
        %1337 = vxpose.xlu0.b32.cont [12/16] 0.0, 128
        %1338 = vxpose.xlu0.b32.cont [13/16] 0.0, 128
        %1339 = vxpose.xlu0.b32.cont [14/16] 0.0, 128
        %1340 = vxpose.xlu0.b32.cont [15/16] 0.0, 128
        %1341 = vxpose.xlu0.b32.end [16/16] 0.0, 128
        %v1342 = vpop.trf.xlu0
        %v1343 = vpop.trf.xlu0
        %v1344 = vpop.trf.xlu0
        %v1345 = vpop.trf.xlu0
        %v1346 = vpop.trf.xlu0
        %v1347 = vpop.trf.xlu0
        %v1348 = vpop.trf.xlu0
        %v1349 = vpop.trf.xlu0
        %v1350 = vpop.trf.xlu0
        %v1351 = vpop.trf.xlu0
        %v1352 = vpop.trf.xlu0
        %v1353 = vpop.trf.xlu0
        %v1354 = vpop.trf.xlu0
        %v1355 = vpop.trf.xlu0
        %v1356 = vpop.trf.xlu0
        %v1357 = vpop.trf.xlu0
        %v1358 = vpack.c.bf16 %v1310, %v1310
        %v1359 = vpack.c.bf16 %v1342, %v1342
        %v1361 = vsel %vm399, %v1358, 0
        %v1364 = vsel %vm526, %v1284, 0
        %1366 = vmatprep.subr.bf16.mxu0 0
        %1367 = vmatpush1.bf16.msra.mxu0 %v1364
        %1368 = vmatprep.subr.bf16.mxu0 0
        %1369 = vmatpush1.bf16.msra.mxu0 0
        %1370 = vmatprep.subr.bf16.mxu0 0
        %1371 = vmatpush1.bf16.msra.mxu0 0
        %1372 = vmatprep.subr.bf16.mxu0 0
        %1373 = vmatpush1.bf16.msra.mxu0 0
        %1374 = vmatprep.subr.bf16.mxu0 0
        %1375 = vmatpush1.bf16.msra.mxu0 0
        %1376 = vmatprep.subr.bf16.mxu0 0
        %1377 = vmatpush1.bf16.msra.mxu0 0
        %1378 = vmatprep.subr.bf16.mxu0 0
        %1379 = vmatpush1.bf16.msra.mxu0 0
        %1380 = vmatprep.subr.bf16.mxu0 0
        %1381 = vmatpush1.bf16.msra.mxu0 0
        %1382 = vmatprep.subr.bf16.mxu0 0
        %1383 = vmatpush1.bf16.msra.mxu0 0
        %1384 = vmatprep.subr.bf16.mxu0 0
        %1385 = vmatpush1.bf16.msra.mxu0 0
        %1386 = vmatprep.subr.bf16.mxu0 0
        %1387 = vmatpush1.bf16.msra.mxu0 0
        %1388 = vmatprep.subr.bf16.mxu0 0
        %1389 = vmatpush1.bf16.msra.mxu0 0
        %1390 = vmatprep.subr.bf16.mxu0 0
        %1391 = vmatpush1.bf16.msra.mxu0 0
        %1392 = vmatprep.subr.bf16.mxu0 0
        %1393 = vmatpush1.bf16.msra.mxu0 0
        %1394 = vmatprep.subr.bf16.mxu0 0
        %1395 = vmatpush1.bf16.msra.mxu0 0
        %1396 = vmatprep.subr.bf16.mxu0 0
        %1397 = vmatpush1.bf16.msra.mxu0 0
        %1398 = vmatprep.mubr.bf16.mxu0 0
        %1399 = vmatmul.mubr.bf16.gmra.mrb[0].mxu0 %v1361
        %v1400 = vpop.f32.mrb[0].mxu0
        %v1401 = vadd.f32 0.0, %v1400
        %v1402 = vpop.f32.mrb[0].mxu0
        %v1403 = vpop.f32.mrb[0].mxu0
        %v1404 = vpop.f32.mrb[0].mxu0
        %1405 = vdwg.mxu0
        %v1407 = vsel %vm399, %v1359, 0
        %v1410 = vsel %vm526, %v1285, 0
        %1412 = vmatprep.subr.bf16.mxu0 0
        %1413 = vmatpush1.bf16.msra.mxu0 %v1410
        %1414 = vmatprep.subr.bf16.mxu0 0
        %1415 = vmatpush1.bf16.msra.mxu0 0
        %1416 = vmatprep.subr.bf16.mxu0 0
        %1417 = vmatpush1.bf16.msra.mxu0 0
        %1418 = vmatprep.subr.bf16.mxu0 0
        %1419 = vmatpush1.bf16.msra.mxu0 0
        %1420 = vmatprep.subr.bf16.mxu0 0
        %1421 = vmatpush1.bf16.msra.mxu0 0
        %1422 = vmatprep.subr.bf16.mxu0 0
        %1423 = vmatpush1.bf16.msra.mxu0 0
        %1424 = vmatprep.subr.bf16.mxu0 0
        %1425 = vmatpush1.bf16.msra.mxu0 0
        %1426 = vmatprep.subr.bf16.mxu0 0
        %1427 = vmatpush1.bf16.msra.mxu0 0
        %1428 = vmatprep.subr.bf16.mxu0 0
        %1429 = vmatpush1.bf16.msra.mxu0 0
        %1430 = vmatprep.subr.bf16.mxu0 0
        %1431 = vmatpush1.bf16.msra.mxu0 0
        %1432 = vmatprep.subr.bf16.mxu0 0
        %1433 = vmatpush1.bf16.msra.mxu0 0
        %1434 = vmatprep.subr.bf16.mxu0 0
        %1435 = vmatpush1.bf16.msra.mxu0 0
        %1436 = vmatprep.subr.bf16.mxu0 0
        %1437 = vmatpush1.bf16.msra.mxu0 0
        %1438 = vmatprep.subr.bf16.mxu0 0
        %1439 = vmatpush1.bf16.msra.mxu0 0
        %1440 = vmatprep.subr.bf16.mxu0 0
        %1441 = vmatpush1.bf16.msra.mxu0 0
        %1442 = vmatprep.subr.bf16.mxu0 0
        %1443 = vmatpush1.bf16.msra.mxu0 0
        %1444 = vmatprep.mubr.bf16.mxu0 0
        %1445 = vmatmul.mubr.bf16.gmra.mrb[0].mxu0 %v1407
        %v1446 = vpop.f32.mrb[0].mxu0
        %v1447 = vadd.f32 0.0, %v1446
        %v1448 = vpop.f32.mrb[0].mxu0
        %v1449 = vpop.f32.mrb[0].mxu0
        %v1450 = vpop.f32.mrb[0].mxu0
        %1451 = vdwg.mxu0
        %v1452 = vmul.f32 %v1401, 0.35355338
        %v1453 = vmul.f32 %v1447, 0.35355338
        %v1454 = vsel %vm399, %v1452, -inf
        %1455 = vmax.xlane.f32.xlu0 %v1454
        %v1456 = vpop.xlane.xlu0 %1455
        %v1457 = vsel %vm399, %v1453, -inf
        %1458 = vmax.xlane.f32.xlu0 %v1457
        %v1459 = vpop.xlane.xlu0 %1458
        %v1460 = vsub.f32 %v1452, %v1456
        %v1461 = vsub.f32 %v1453, %v1459
        %v1462 = vmul.f32 %v1460, 1.442695
        %v1463 = vpow.pop %v1462
        %v1464 = vmul.f32 %v1461, 1.442695
        %v1465 = vpow.pop %v1464
        %v1466 = vsel %vm399, %v1463, 0.0
        %1467 = vadd.xlane.f32.xlu0 %v1466
        %v1468 = vpop.xlane.xlu0 %1467
        %v1469 = vsel %vm399, %v1465, 0.0
        %1470 = vadd.xlane.f32.xlu0 %v1469
        %v1471 = vpop.xlane.xlu0 %1470
        %v1472 = vrcp.pop %v1468
        %v1473 = vrcp.pop %v1471
        %v1474 = vmul.f32 %v1463, %v1472
        %v1475 = vmul.f32 %v1465, %v1473
        %1476 = vxpose.xlu0.b32.start [1/16] %v1474, 128
        %1477 = vxpose.xlu0.b32.cont [2/16] 0.0, 128
        %1478 = vxpose.xlu0.b32.cont [3/16] 0.0, 128
        %1479 = vxpose.xlu0.b32.cont [4/16] 0.0, 128
        %1480 = vxpose.xlu0.b32.cont [5/16] 0.0, 128
        %1481 = vxpose.xlu0.b32.cont [6/16] 0.0, 128
        %1482 = vxpose.xlu0.b32.cont [7/16] 0.0, 128
        %1483 = vxpose.xlu0.b32.cont [8/16] 0.0, 128
        %1484 = vxpose.xlu0.b32.cont [9/16] 0.0, 128
        %1485 = vxpose.xlu0.b32.cont [10/16] 0.0, 128
        %1486 = vxpose.xlu0.b32.cont [11/16] 0.0, 128
        %1487 = vxpose.xlu0.b32.cont [12/16] 0.0, 128
        %1488 = vxpose.xlu0.b32.cont [13/16] 0.0, 128
        %1489 = vxpose.xlu0.b32.cont [14/16] 0.0, 128
        %1490 = vxpose.xlu0.b32.cont [15/16] 0.0, 128
        %1491 = vxpose.xlu0.b32.end [16/16] 0.0, 128
        %v1492 = vpop.trf.xlu0
        %v1493 = vpop.trf.xlu0
        %v1494 = vpop.trf.xlu0
        %v1495 = vpop.trf.xlu0
        %v1496 = vpop.trf.xlu0
        %v1497 = vpop.trf.xlu0
        %v1498 = vpop.trf.xlu0
        %v1499 = vpop.trf.xlu0
        %v1500 = vpop.trf.xlu0
        %v1501 = vpop.trf.xlu0
        %v1502 = vpop.trf.xlu0
        %v1503 = vpop.trf.xlu0
        %v1504 = vpop.trf.xlu0
        %v1505 = vpop.trf.xlu0
        %v1506 = vpop.trf.xlu0
        %v1507 = vpop.trf.xlu0
        %1508 = vxpose.xlu0.b32.start [1/16] %v1475, 128
        %1509 = vxpose.xlu0.b32.cont [2/16] 0.0, 128
        %1510 = vxpose.xlu0.b32.cont [3/16] 0.0, 128
        %1511 = vxpose.xlu0.b32.cont [4/16] 0.0, 128
        %1512 = vxpose.xlu0.b32.cont [5/16] 0.0, 128
        %1513 = vxpose.xlu0.b32.cont [6/16] 0.0, 128
        %1514 = vxpose.xlu0.b32.cont [7/16] 0.0, 128
        %1515 = vxpose.xlu0.b32.cont [8/16] 0.0, 128
        %1516 = vxpose.xlu0.b32.cont [9/16] 0.0, 128
        %1517 = vxpose.xlu0.b32.cont [10/16] 0.0, 128
        %1518 = vxpose.xlu0.b32.cont [11/16] 0.0, 128
        %1519 = vxpose.xlu0.b32.cont [12/16] 0.0, 128
        %1520 = vxpose.xlu0.b32.cont [13/16] 0.0, 128
        %1521 = vxpose.xlu0.b32.cont [14/16] 0.0, 128
        %1522 = vxpose.xlu0.b32.cont [15/16] 0.0, 128
        %1523 = vxpose.xlu0.b32.end [16/16] 0.0, 128
        %v1524 = vpop.trf.xlu0
        %v1525 = vpop.trf.xlu0
        %v1526 = vpop.trf.xlu0
        %v1527 = vpop.trf.xlu0
        %v1528 = vpop.trf.xlu0
        %v1529 = vpop.trf.xlu0
        %v1530 = vpop.trf.xlu0
        %v1531 = vpop.trf.xlu0
        %v1532 = vpop.trf.xlu0
        %v1533 = vpop.trf.xlu0
        %v1534 = vpop.trf.xlu0
        %v1535 = vpop.trf.xlu0
        %v1536 = vpop.trf.xlu0
        %v1537 = vpop.trf.xlu0
        %v1538 = vpop.trf.xlu0
        %v1539 = vpop.trf.xlu0
        %v1540 = vpack.c.bf16 %v1492, %v1492
        %v1541 = vpack.c.bf16 %v1524, %v1524
        %1543 = vrot.lane.b32.xlu0 %v1284, 96
        %v1544 = vpop.permute.xlu0 %1543
        %v1546 = vsel %vm399, %v1544, 0
        %v1549 = vsel %vm526, %v1540, 0
        %1551 = vmatprep.subr.bf16.mxu0 0
        %1552 = vmatpush1.bf16.msra.mxu0 %v1549
        %1553 = vmatprep.subr.bf16.mxu0 0
        %1554 = vmatpush1.bf16.msra.mxu0 0
        %1555 = vmatprep.subr.bf16.mxu0 0
        %1556 = vmatpush1.bf16.msra.mxu0 0
        %1557 = vmatprep.subr.bf16.mxu0 0
        %1558 = vmatpush1.bf16.msra.mxu0 0
        %1559 = vmatprep.subr.bf16.mxu0 0
        %1560 = vmatpush1.bf16.msra.mxu0 0
        %1561 = vmatprep.subr.bf16.mxu0 0
        %1562 = vmatpush1.bf16.msra.mxu0 0
        %1563 = vmatprep.subr.bf16.mxu0 0
        %1564 = vmatpush1.bf16.msra.mxu0 0
        %1565 = vmatprep.subr.bf16.mxu0 0
        %1566 = vmatpush1.bf16.msra.mxu0 0
        %1567 = vmatprep.subr.bf16.mxu0 0
        %1568 = vmatpush1.bf16.msra.mxu0 0
        %1569 = vmatprep.subr.bf16.mxu0 0
        %1570 = vmatpush1.bf16.msra.mxu0 0
        %1571 = vmatprep.subr.bf16.mxu0 0
        %1572 = vmatpush1.bf16.msra.mxu0 0
        %1573 = vmatprep.subr.bf16.mxu0 0
        %1574 = vmatpush1.bf16.msra.mxu0 0
        %1575 = vmatprep.subr.bf16.mxu0 0
        %1576 = vmatpush1.bf16.msra.mxu0 0
        %1577 = vmatprep.subr.bf16.mxu0 0
        %1578 = vmatpush1.bf16.msra.mxu0 0
        %1579 = vmatprep.subr.bf16.mxu0 0
        %1580 = vmatpush1.bf16.msra.mxu0 0
        %1581 = vmatprep.subr.bf16.mxu0 0
        %1582 = vmatpush1.bf16.msra.mxu0 0
        %1583 = vmatprep.mubr.bf16.mxu0 0
        %1584 = vmatmul.mubr.bf16.gmra.mrb[0].mxu0 %v1546
        %v1585 = vpop.f32.mrb[0].mxu0
        %v1586 = vadd.f32 0.0, %v1585
        %v1587 = vpop.f32.mrb[0].mxu0
        %v1588 = vpop.f32.mrb[0].mxu0
        %v1589 = vpop.f32.mrb[0].mxu0
        %1590 = vdwg.mxu0
        %1592 = vrot.lane.b32.xlu0 %v1285, 96
        %v1593 = vpop.permute.xlu0 %1592
        %v1595 = vsel %vm399, %v1593, 0
        %v1598 = vsel %vm526, %v1541, 0
        %1600 = vmatprep.subr.bf16.mxu0 0
        %1601 = vmatpush1.bf16.msra.mxu0 %v1598
        %1602 = vmatprep.subr.bf16.mxu0 0
        %1603 = vmatpush1.bf16.msra.mxu0 0
        %1604 = vmatprep.subr.bf16.mxu0 0
        %1605 = vmatpush1.bf16.msra.mxu0 0
        %1606 = vmatprep.subr.bf16.mxu0 0
        %1607 = vmatpush1.bf16.msra.mxu0 0
        %1608 = vmatprep.subr.bf16.mxu0 0
        %1609 = vmatpush1.bf16.msra.mxu0 0
        %1610 = vmatprep.subr.bf16.mxu0 0
        %1611 = vmatpush1.bf16.msra.mxu0 0
        %1612 = vmatprep.subr.bf16.mxu0 0
        %1613 = vmatpush1.bf16.msra.mxu0 0
        %1614 = vmatprep.subr.bf16.mxu0 0
        %1615 = vmatpush1.bf16.msra.mxu0 0
        %1616 = vmatprep.subr.bf16.mxu0 0
        %1617 = vmatpush1.bf16.msra.mxu0 0
        %1618 = vmatprep.subr.bf16.mxu0 0
        %1619 = vmatpush1.bf16.msra.mxu0 0
        %1620 = vmatprep.subr.bf16.mxu0 0
        %1621 = vmatpush1.bf16.msra.mxu0 0
        %1622 = vmatprep.subr.bf16.mxu0 0
        %1623 = vmatpush1.bf16.msra.mxu0 0
        %1624 = vmatprep.subr.bf16.mxu0 0
        %1625 = vmatpush1.bf16.msra.mxu0 0
        %1626 = vmatprep.subr.bf16.mxu0 0
        %1627 = vmatpush1.bf16.msra.mxu0 0
        %1628 = vmatprep.subr.bf16.mxu0 0
        %1629 = vmatpush1.bf16.msra.mxu0 0
        %1630 = vmatprep.subr.bf16.mxu0 0
        %1631 = vmatpush1.bf16.msra.mxu0 0
        %1632 = vmatprep.mubr.bf16.mxu0 0
        %1633 = vmatmul.mubr.bf16.gmra.mrb[0].mxu0 %v1595
        %v1634 = vpop.f32.mrb[0].mxu0
        %v1635 = vadd.f32 0.0, %v1634
        %v1636 = vpop.f32.mrb[0].mxu0
        %v1637 = vpop.f32.mrb[0].mxu0
        %v1638 = vpop.f32.mrb[0].mxu0
        %1639 = vdwg.mxu0
        %1640 = vrot.lane.b32.xlu0 %v386, 24
        %v1641 = vpop.permute.xlu0 %1640
        %1642 = vrot.lane.b32.xlu0 %v390, 24
        %v1643 = vpop.permute.xlu0 %1642
        %1646 = vxpose.xlu0.b32.start [1/16] %v1641, 128
        %1647 = vxpose.xlu0.b32.cont [2/16] 0.0, 128
        %1648 = vxpose.xlu0.b32.cont [3/16] 0.0, 128
        %1649 = vxpose.xlu0.b32.cont [4/16] 0.0, 128
        %1650 = vxpose.xlu0.b32.cont [5/16] 0.0, 128
        %1651 = vxpose.xlu0.b32.cont [6/16] 0.0, 128
        %1652 = vxpose.xlu0.b32.cont [7/16] 0.0, 128
        %1653 = vxpose.xlu0.b32.cont [8/16] 0.0, 128
        %1654 = vxpose.xlu0.b32.cont [9/16] 0.0, 128
        %1655 = vxpose.xlu0.b32.cont [10/16] 0.0, 128
        %1656 = vxpose.xlu0.b32.cont [11/16] 0.0, 128
        %1657 = vxpose.xlu0.b32.cont [12/16] 0.0, 128
        %1658 = vxpose.xlu0.b32.cont [13/16] 0.0, 128
        %1659 = vxpose.xlu0.b32.cont [14/16] 0.0, 128
        %1660 = vxpose.xlu0.b32.cont [15/16] 0.0, 128
        %1661 = vxpose.xlu0.b32.end [16/16] 0.0, 128
        %v1662 = vpop.trf.xlu0
        %v1663 = vpop.trf.xlu0
        %v1664 = vpop.trf.xlu0
        %v1665 = vpop.trf.xlu0
        %v1666 = vpop.trf.xlu0
        %v1667 = vpop.trf.xlu0
        %v1668 = vpop.trf.xlu0
        %v1669 = vpop.trf.xlu0
        %v1670 = vpop.trf.xlu0
        %v1671 = vpop.trf.xlu0
        %v1672 = vpop.trf.xlu0
        %v1673 = vpop.trf.xlu0
        %v1674 = vpop.trf.xlu0
        %v1675 = vpop.trf.xlu0
        %v1676 = vpop.trf.xlu0
        %v1677 = vpop.trf.xlu0
        %1678 = vxpose.xlu0.b32.start [1/16] %v1643, 128
        %1679 = vxpose.xlu0.b32.cont [2/16] 0.0, 128
        %1680 = vxpose.xlu0.b32.cont [3/16] 0.0, 128
        %1681 = vxpose.xlu0.b32.cont [4/16] 0.0, 128
        %1682 = vxpose.xlu0.b32.cont [5/16] 0.0, 128
        %1683 = vxpose.xlu0.b32.cont [6/16] 0.0, 128
        %1684 = vxpose.xlu0.b32.cont [7/16] 0.0, 128
        %1685 = vxpose.xlu0.b32.cont [8/16] 0.0, 128
        %1686 = vxpose.xlu0.b32.cont [9/16] 0.0, 128
        %1687 = vxpose.xlu0.b32.cont [10/16] 0.0, 128
        %1688 = vxpose.xlu0.b32.cont [11/16] 0.0, 128
        %1689 = vxpose.xlu0.b32.cont [12/16] 0.0, 128
        %1690 = vxpose.xlu0.b32.cont [13/16] 0.0, 128
        %1691 = vxpose.xlu0.b32.cont [14/16] 0.0, 128
        %1692 = vxpose.xlu0.b32.cont [15/16] 0.0, 128
        %1693 = vxpose.xlu0.b32.end [16/16] 0.0, 128
        %v1694 = vpop.trf.xlu0
        %v1695 = vpop.trf.xlu0
        %v1696 = vpop.trf.xlu0
        %v1697 = vpop.trf.xlu0
        %v1698 = vpop.trf.xlu0
        %v1699 = vpop.trf.xlu0
        %v1700 = vpop.trf.xlu0
        %v1701 = vpop.trf.xlu0
        %v1702 = vpop.trf.xlu0
        %v1703 = vpop.trf.xlu0
        %v1704 = vpop.trf.xlu0
        %v1705 = vpop.trf.xlu0
        %v1706 = vpop.trf.xlu0
        %v1707 = vpop.trf.xlu0
        %v1708 = vpop.trf.xlu0
        %v1709 = vpop.trf.xlu0
        %v1710 = vpack.c.bf16 %v1662, %v1662
        %v1711 = vpack.c.bf16 %v1694, %v1694
        %1712 = vrot.lane.b32.xlu0 %v1284, 120
        %v1713 = vpop.permute.xlu0 %1712
        %v1715 = vsel %vm399, %v1710, 0
        %v1718 = vsel %vm526, %v1713, 0
        %1720 = vmatprep.subr.bf16.mxu0 0
        %1721 = vmatpush1.bf16.msra.mxu0 %v1718
        %1722 = vmatprep.subr.bf16.mxu0 0
        %1723 = vmatpush1.bf16.msra.mxu0 0
        %1724 = vmatprep.subr.bf16.mxu0 0
        %1725 = vmatpush1.bf16.msra.mxu0 0
        %1726 = vmatprep.subr.bf16.mxu0 0
        %1727 = vmatpush1.bf16.msra.mxu0 0
        %1728 = vmatprep.subr.bf16.mxu0 0
        %1729 = vmatpush1.bf16.msra.mxu0 0
        %1730 = vmatprep.subr.bf16.mxu0 0
        %1731 = vmatpush1.bf16.msra.mxu0 0
        %1732 = vmatprep.subr.bf16.mxu0 0
        %1733 = vmatpush1.bf16.msra.mxu0 0
        %1734 = vmatprep.subr.bf16.mxu0 0
        %1735 = vmatpush1.bf16.msra.mxu0 0
        %1736 = vmatprep.subr.bf16.mxu0 0
        %1737 = vmatpush1.bf16.msra.mxu0 0
        %1738 = vmatprep.subr.bf16.mxu0 0
        %1739 = vmatpush1.bf16.msra.mxu0 0
        %1740 = vmatprep.subr.bf16.mxu0 0
        %1741 = vmatpush1.bf16.msra.mxu0 0
        %1742 = vmatprep.subr.bf16.mxu0 0
        %1743 = vmatpush1.bf16.msra.mxu0 0
        %1744 = vmatprep.subr.bf16.mxu0 0
        %1745 = vmatpush1.bf16.msra.mxu0 0
        %1746 = vmatprep.subr.bf16.mxu0 0
        %1747 = vmatpush1.bf16.msra.mxu0 0
        %1748 = vmatprep.subr.bf16.mxu0 0
        %1749 = vmatpush1.bf16.msra.mxu0 0
        %1750 = vmatprep.subr.bf16.mxu0 0
        %1751 = vmatpush1.bf16.msra.mxu0 0
        %1752 = vmatprep.mubr.bf16.mxu0 0
        %1753 = vmatmul.mubr.bf16.gmra.mrb[0].mxu0 %v1715
        %v1754 = vpop.f32.mrb[0].mxu0
        %v1755 = vadd.f32 0.0, %v1754
        %v1756 = vpop.f32.mrb[0].mxu0
        %v1757 = vpop.f32.mrb[0].mxu0
        %v1758 = vpop.f32.mrb[0].mxu0
        %1759 = vdwg.mxu0
        %1760 = vrot.lane.b32.xlu0 %v1285, 120
        %v1761 = vpop.permute.xlu0 %1760
        %v1763 = vsel %vm399, %v1711, 0
        %v1766 = vsel %vm526, %v1761, 0
        %1768 = vmatprep.subr.bf16.mxu0 0
        %1769 = vmatpush1.bf16.msra.mxu0 %v1766
        %1770 = vmatprep.subr.bf16.mxu0 0
        %1771 = vmatpush1.bf16.msra.mxu0 0
        %1772 = vmatprep.subr.bf16.mxu0 0
        %1773 = vmatpush1.bf16.msra.mxu0 0
        %1774 = vmatprep.subr.bf16.mxu0 0
        %1775 = vmatpush1.bf16.msra.mxu0 0
        %1776 = vmatprep.subr.bf16.mxu0 0
        %1777 = vmatpush1.bf16.msra.mxu0 0
        %1778 = vmatprep.subr.bf16.mxu0 0
        %1779 = vmatpush1.bf16.msra.mxu0 0
        %1780 = vmatprep.subr.bf16.mxu0 0
        %1781 = vmatpush1.bf16.msra.mxu0 0
        %1782 = vmatprep.subr.bf16.mxu0 0
        %1783 = vmatpush1.bf16.msra.mxu0 0
        %1784 = vmatprep.subr.bf16.mxu0 0
        %1785 = vmatpush1.bf16.msra.mxu0 0
        %1786 = vmatprep.subr.bf16.mxu0 0
        %1787 = vmatpush1.bf16.msra.mxu0 0
        %1788 = vmatprep.subr.bf16.mxu0 0
        %1789 = vmatpush1.bf16.msra.mxu0 0
        %1790 = vmatprep.subr.bf16.mxu0 0
        %1791 = vmatpush1.bf16.msra.mxu0 0
        %1792 = vmatprep.subr.bf16.mxu0 0
        %1793 = vmatpush1.bf16.msra.mxu0 0
        %1794 = vmatprep.subr.bf16.mxu0 0
        %1795 = vmatpush1.bf16.msra.mxu0 0
        %1796 = vmatprep.subr.bf16.mxu0 0
        %1797 = vmatpush1.bf16.msra.mxu0 0
        %1798 = vmatprep.subr.bf16.mxu0 0
        %1799 = vmatpush1.bf16.msra.mxu0 0
        %1800 = vmatprep.mubr.bf16.mxu0 0
        %1801 = vmatmul.mubr.bf16.gmra.mrb[0].mxu0 %v1763
        %v1802 = vpop.f32.mrb[0].mxu0
        %v1803 = vadd.f32 0.0, %v1802
        %v1804 = vpop.f32.mrb[0].mxu0
        %v1805 = vpop.f32.mrb[0].mxu0
        %v1806 = vpop.f32.mrb[0].mxu0
        %1807 = vdwg.mxu0
        %v1808 = vmul.f32 %v1755, 0.35355338
        %v1809 = vmul.f32 %v1803, 0.35355338
        %v1810 = vsel %vm399, %v1808, -inf
        %1811 = vmax.xlane.f32.xlu0 %v1810
        %v1812 = vpop.xlane.xlu0 %1811
        %v1813 = vsel %vm399, %v1809, -inf
        %1814 = vmax.xlane.f32.xlu0 %v1813
        %v1815 = vpop.xlane.xlu0 %1814
        %v1816 = vsub.f32 %v1808, %v1812
        %v1817 = vsub.f32 %v1809, %v1815
        %v1818 = vmul.f32 %v1816, 1.442695
        %v1819 = vpow.pop %v1818
        %v1820 = vmul.f32 %v1817, 1.442695
        %v1821 = vpow.pop %v1820
        %v1822 = vsel %vm399, %v1819, 0.0
        %1823 = vadd.xlane.f32.xlu0 %v1822
        %v1824 = vpop.xlane.xlu0 %1823
        %v1825 = vsel %vm399, %v1821, 0.0
        %1826 = vadd.xlane.f32.xlu0 %v1825
        %v1827 = vpop.xlane.xlu0 %1826
        %v1828 = vrcp.pop %v1824
        %v1829 = vrcp.pop %v1827
        %v1830 = vmul.f32 %v1819, %v1828
        %v1831 = vmul.f32 %v1821, %v1829
        %1832 = vxpose.xlu0.b32.start [1/16] %v1830, 128
        %1833 = vxpose.xlu0.b32.cont [2/16] 0.0, 128
        %1834 = vxpose.xlu0.b32.cont [3/16] 0.0, 128
        %1835 = vxpose.xlu0.b32.cont [4/16] 0.0, 128
        %1836 = vxpose.xlu0.b32.cont [5/16] 0.0, 128
        %1837 = vxpose.xlu0.b32.cont [6/16] 0.0, 128
        %1838 = vxpose.xlu0.b32.cont [7/16] 0.0, 128
        %1839 = vxpose.xlu0.b32.cont [8/16] 0.0, 128
        %1840 = vxpose.xlu0.b32.cont [9/16] 0.0, 128
        %1841 = vxpose.xlu0.b32.cont [10/16] 0.0, 128
        %1842 = vxpose.xlu0.b32.cont [11/16] 0.0, 128
        %1843 = vxpose.xlu0.b32.cont [12/16] 0.0, 128
        %1844 = vxpose.xlu0.b32.cont [13/16] 0.0, 128
        %1845 = vxpose.xlu0.b32.cont [14/16] 0.0, 128
        %1846 = vxpose.xlu0.b32.cont [15/16] 0.0, 128
        %1847 = vxpose.xlu0.b32.end [16/16] 0.0, 128
        %v1848 = vpop.trf.xlu0
        %v1849 = vpop.trf.xlu0
        %v1850 = vpop.trf.xlu0
        %v1851 = vpop.trf.xlu0
        %v1852 = vpop.trf.xlu0
        %v1853 = vpop.trf.xlu0
        %v1854 = vpop.trf.xlu0
        %v1855 = vpop.trf.xlu0
        %v1856 = vpop.trf.xlu0
        %v1857 = vpop.trf.xlu0
        %v1858 = vpop.trf.xlu0
        %v1859 = vpop.trf.xlu0
        %v1860 = vpop.trf.xlu0
        %v1861 = vpop.trf.xlu0
        %v1862 = vpop.trf.xlu0
        %v1863 = vpop.trf.xlu0
        %1864 = vxpose.xlu0.b32.start [1/16] %v1831, 128
        %1865 = vxpose.xlu0.b32.cont [2/16] 0.0, 128
        %1866 = vxpose.xlu0.b32.cont [3/16] 0.0, 128
        %1867 = vxpose.xlu0.b32.cont [4/16] 0.0, 128
        %1868 = vxpose.xlu0.b32.cont [5/16] 0.0, 128
        %1869 = vxpose.xlu0.b32.cont [6/16] 0.0, 128
        %1870 = vxpose.xlu0.b32.cont [7/16] 0.0, 128
        %1871 = vxpose.xlu0.b32.cont [8/16] 0.0, 128
        %1872 = vxpose.xlu0.b32.cont [9/16] 0.0, 128
        %1873 = vxpose.xlu0.b32.cont [10/16] 0.0, 128
        %1874 = vxpose.xlu0.b32.cont [11/16] 0.0, 128
        %1875 = vxpose.xlu0.b32.cont [12/16] 0.0, 128
        %1876 = vxpose.xlu0.b32.cont [13/16] 0.0, 128
        %1877 = vxpose.xlu0.b32.cont [14/16] 0.0, 128
        %1878 = vxpose.xlu0.b32.cont [15/16] 0.0, 128
        %1879 = vxpose.xlu0.b32.end [16/16] 0.0, 128
        %v1880 = vpop.trf.xlu0
        %v1881 = vpop.trf.xlu0
        %v1882 = vpop.trf.xlu0
        %v1883 = vpop.trf.xlu0
        %v1884 = vpop.trf.xlu0
        %v1885 = vpop.trf.xlu0
        %v1886 = vpop.trf.xlu0
        %v1887 = vpop.trf.xlu0
        %v1888 = vpop.trf.xlu0
        %v1889 = vpop.trf.xlu0
        %v1890 = vpop.trf.xlu0
        %v1891 = vpop.trf.xlu0
        %v1892 = vpop.trf.xlu0
        %v1893 = vpop.trf.xlu0
        %v1894 = vpop.trf.xlu0
        %v1895 = vpop.trf.xlu0
        %v1896 = vpack.c.bf16 %v1848, %v1848
        %v1897 = vpack.c.bf16 %v1880, %v1880
        %1898 = vrot.lane.b32.xlu0 %v1284, 88
        %v1899 = vpop.permute.xlu0 %1898
        %v1901 = vsel %vm399, %v1899, 0
        %v1904 = vsel %vm526, %v1896, 0
        %1906 = vmatprep.subr.bf16.mxu0 0
        %1907 = vmatpush1.bf16.msra.mxu0 %v1904
        %1908 = vmatprep.subr.bf16.mxu0 0
        %1909 = vmatpush1.bf16.msra.mxu0 0
        %1910 = vmatprep.subr.bf16.mxu0 0
        %1911 = vmatpush1.bf16.msra.mxu0 0
        %1912 = vmatprep.subr.bf16.mxu0 0
        %1913 = vmatpush1.bf16.msra.mxu0 0
        %1914 = vmatprep.subr.bf16.mxu0 0
        %1915 = vmatpush1.bf16.msra.mxu0 0
        %1916 = vmatprep.subr.bf16.mxu0 0
        %1917 = vmatpush1.bf16.msra.mxu0 0
        %1918 = vmatprep.subr.bf16.mxu0 0
        %1919 = vmatpush1.bf16.msra.mxu0 0
        %1920 = vmatprep.subr.bf16.mxu0 0
        %1921 = vmatpush1.bf16.msra.mxu0 0
        %1922 = vmatprep.subr.bf16.mxu0 0
        %1923 = vmatpush1.bf16.msra.mxu0 0
        %1924 = vmatprep.subr.bf16.mxu0 0
        %1925 = vmatpush1.bf16.msra.mxu0 0
        %1926 = vmatprep.subr.bf16.mxu0 0
        %1927 = vmatpush1.bf16.msra.mxu0 0
        %1928 = vmatprep.subr.bf16.mxu0 0
        %1929 = vmatpush1.bf16.msra.mxu0 0
        %1930 = vmatprep.subr.bf16.mxu0 0
        %1931 = vmatpush1.bf16.msra.mxu0 0
        %1932 = vmatprep.subr.bf16.mxu0 0
        %1933 = vmatpush1.bf16.msra.mxu0 0
        %1934 = vmatprep.subr.bf16.mxu0 0
        %1935 = vmatpush1.bf16.msra.mxu0 0
        %1936 = vmatprep.subr.bf16.mxu0 0
        %1937 = vmatpush1.bf16.msra.mxu0 0
        %1938 = vmatprep.mubr.bf16.mxu0 0
        %1939 = vmatmul.mubr.bf16.gmra.mrb[0].mxu0 %v1901
        %v1940 = vpop.f32.mrb[0].mxu0
        %v1941 = vadd.f32 0.0, %v1940
        %v1942 = vpop.f32.mrb[0].mxu0
        %v1943 = vpop.f32.mrb[0].mxu0
        %v1944 = vpop.f32.mrb[0].mxu0
        %1945 = vdwg.mxu0
        %1946 = vrot.lane.b32.xlu0 %v1285, 88
        %v1947 = vpop.permute.xlu0 %1946
        %v1949 = vsel %vm399, %v1947, 0
        %v1952 = vsel %vm526, %v1897, 0
        %1954 = vmatprep.subr.bf16.mxu0 0
        %1955 = vmatpush1.bf16.msra.mxu0 %v1952
        %1956 = vmatprep.subr.bf16.mxu0 0
        %1957 = vmatpush1.bf16.msra.mxu0 0
        %1958 = vmatprep.subr.bf16.mxu0 0
        %1959 = vmatpush1.bf16.msra.mxu0 0
        %1960 = vmatprep.subr.bf16.mxu0 0
        %1961 = vmatpush1.bf16.msra.mxu0 0
        %1962 = vmatprep.subr.bf16.mxu0 0
        %1963 = vmatpush1.bf16.msra.mxu0 0
        %1964 = vmatprep.subr.bf16.mxu0 0
        %1965 = vmatpush1.bf16.msra.mxu0 0
        %1966 = vmatprep.subr.bf16.mxu0 0
        %1967 = vmatpush1.bf16.msra.mxu0 0
        %1968 = vmatprep.subr.bf16.mxu0 0
        %1969 = vmatpush1.bf16.msra.mxu0 0
        %1970 = vmatprep.subr.bf16.mxu0 0
        %1971 = vmatpush1.bf16.msra.mxu0 0
        %1972 = vmatprep.subr.bf16.mxu0 0
        %1973 = vmatpush1.bf16.msra.mxu0 0
        %1974 = vmatprep.subr.bf16.mxu0 0
        %1975 = vmatpush1.bf16.msra.mxu0 0
        %1976 = vmatprep.subr.bf16.mxu0 0
        %1977 = vmatpush1.bf16.msra.mxu0 0
        %1978 = vmatprep.subr.bf16.mxu0 0
        %1979 = vmatpush1.bf16.msra.mxu0 0
        %1980 = vmatprep.subr.bf16.mxu0 0
        %1981 = vmatpush1.bf16.msra.mxu0 0
        %1982 = vmatprep.subr.bf16.mxu0 0
        %1983 = vmatpush1.bf16.msra.mxu0 0
        %1984 = vmatprep.subr.bf16.mxu0 0
        %1985 = vmatpush1.bf16.msra.mxu0 0
        %1986 = vmatprep.mubr.bf16.mxu0 0
        %1987 = vmatmul.mubr.bf16.gmra.mrb[0].mxu0 %v1949
        %v1988 = vpop.f32.mrb[0].mxu0
        %v1989 = vadd.f32 0.0, %v1988
        %v1990 = vpop.f32.mrb[0].mxu0
        %v1991 = vpop.f32.mrb[0].mxu0
        %v1992 = vpop.f32.mrb[0].mxu0
        %1993 = vdwg.mxu0
        %1994 = vrot.lane.b32.xlu0 %v386, 16
        %v1995 = vpop.permute.xlu0 %1994
        %1996 = vrot.lane.b32.xlu0 %v390, 16
        %v1997 = vpop.permute.xlu0 %1996
        %2000 = vxpose.xlu0.b32.start [1/16] %v1995, 128
        %2001 = vxpose.xlu0.b32.cont [2/16] 0.0, 128
        %2002 = vxpose.xlu0.b32.cont [3/16] 0.0, 128
        %2003 = vxpose.xlu0.b32.cont [4/16] 0.0, 128
        %2004 = vxpose.xlu0.b32.cont [5/16] 0.0, 128
        %2005 = vxpose.xlu0.b32.cont [6/16] 0.0, 128
        %2006 = vxpose.xlu0.b32.cont [7/16] 0.0, 128
        %2007 = vxpose.xlu0.b32.cont [8/16] 0.0, 128
        %2008 = vxpose.xlu0.b32.cont [9/16] 0.0, 128
        %2009 = vxpose.xlu0.b32.cont [10/16] 0.0, 128
        %2010 = vxpose.xlu0.b32.cont [11/16] 0.0, 128
        %2011 = vxpose.xlu0.b32.cont [12/16] 0.0, 128
        %2012 = vxpose.xlu0.b32.cont [13/16] 0.0, 128
        %2013 = vxpose.xlu0.b32.cont [14/16] 0.0, 128
        %2014 = vxpose.xlu0.b32.cont [15/16] 0.0, 128
        %2015 = vxpose.xlu0.b32.end [16/16] 0.0, 128
        %v2016 = vpop.trf.xlu0
        %v2017 = vpop.trf.xlu0
        %v2018 = vpop.trf.xlu0
        %v2019 = vpop.trf.xlu0
        %v2020 = vpop.trf.xlu0
        %v2021 = vpop.trf.xlu0
        %v2022 = vpop.trf.xlu0
        %v2023 = vpop.trf.xlu0
        %v2024 = vpop.trf.xlu0
        %v2025 = vpop.trf.xlu0
        %v2026 = vpop.trf.xlu0
        %v2027 = vpop.trf.xlu0
        %v2028 = vpop.trf.xlu0
        %v2029 = vpop.trf.xlu0
        %v2030 = vpop.trf.xlu0
        %v2031 = vpop.trf.xlu0
        %2032 = vxpose.xlu0.b32.start [1/16] %v1997, 128
        %2033 = vxpose.xlu0.b32.cont [2/16] 0.0, 128
        %2034 = vxpose.xlu0.b32.cont [3/16] 0.0, 128
        %2035 = vxpose.xlu0.b32.cont [4/16] 0.0, 128
        %2036 = vxpose.xlu0.b32.cont [5/16] 0.0, 128
        %2037 = vxpose.xlu0.b32.cont [6/16] 0.0, 128
        %2038 = vxpose.xlu0.b32.cont [7/16] 0.0, 128
        %2039 = vxpose.xlu0.b32.cont [8/16] 0.0, 128
        %2040 = vxpose.xlu0.b32.cont [9/16] 0.0, 128
        %2041 = vxpose.xlu0.b32.cont [10/16] 0.0, 128
        %2042 = vxpose.xlu0.b32.cont [11/16] 0.0, 128
        %2043 = vxpose.xlu0.b32.cont [12/16] 0.0, 128
        %2044 = vxpose.xlu0.b32.cont [13/16] 0.0, 128
        %2045 = vxpose.xlu0.b32.cont [14/16] 0.0, 128
        %2046 = vxpose.xlu0.b32.cont [15/16] 0.0, 128
        %2047 = vxpose.xlu0.b32.end [16/16] 0.0, 128
        %v2048 = vpop.trf.xlu0
        %v2049 = vpop.trf.xlu0
        %v2050 = vpop.trf.xlu0
        %v2051 = vpop.trf.xlu0
        %v2052 = vpop.trf.xlu0
        %v2053 = vpop.trf.xlu0
        %v2054 = vpop.trf.xlu0
        %v2055 = vpop.trf.xlu0
        %v2056 = vpop.trf.xlu0
        %v2057 = vpop.trf.xlu0
        %v2058 = vpop.trf.xlu0
        %v2059 = vpop.trf.xlu0
        %v2060 = vpop.trf.xlu0
        %v2061 = vpop.trf.xlu0
        %v2062 = vpop.trf.xlu0
        %v2063 = vpop.trf.xlu0
        %v2064 = vpack.c.bf16 %v2016, %v2016
        %v2065 = vpack.c.bf16 %v2048, %v2048
        %2066 = vrot.lane.b32.xlu0 %v1284, 112
        %v2067 = vpop.permute.xlu0 %2066
        %v2069 = vsel %vm399, %v2064, 0
        %v2072 = vsel %vm526, %v2067, 0
        %2074 = vmatprep.subr.bf16.mxu0 0
        %2075 = vmatpush1.bf16.msra.mxu0 %v2072
        %2076 = vmatprep.subr.bf16.mxu0 0
        %2077 = vmatpush1.bf16.msra.mxu0 0
        %2078 = vmatprep.subr.bf16.mxu0 0
        %2079 = vmatpush1.bf16.msra.mxu0 0
        %2080 = vmatprep.subr.bf16.mxu0 0
        %2081 = vmatpush1.bf16.msra.mxu0 0
        %2082 = vmatprep.subr.bf16.mxu0 0
        %2083 = vmatpush1.bf16.msra.mxu0 0
        %2084 = vmatprep.subr.bf16.mxu0 0
        %2085 = vmatpush1.bf16.msra.mxu0 0
        %2086 = vmatprep.subr.bf16.mxu0 0
        %2087 = vmatpush1.bf16.msra.mxu0 0
        %2088 = vmatprep.subr.bf16.mxu0 0
        %2089 = vmatpush1.bf16.msra.mxu0 0
        %2090 = vmatprep.subr.bf16.mxu0 0
        %2091 = vmatpush1.bf16.msra.mxu0 0
        %2092 = vmatprep.subr.bf16.mxu0 0
        %2093 = vmatpush1.bf16.msra.mxu0 0
        %2094 = vmatprep.subr.bf16.mxu0 0
        %2095 = vmatpush1.bf16.msra.mxu0 0
        %2096 = vmatprep.subr.bf16.mxu0 0
        %2097 = vmatpush1.bf16.msra.mxu0 0
        %2098 = vmatprep.subr.bf16.mxu0 0
        %2099 = vmatpush1.bf16.msra.mxu0 0
        %2100 = vmatprep.subr.bf16.mxu0 0
        %2101 = vmatpush1.bf16.msra.mxu0 0
        %2102 = vmatprep.subr.bf16.mxu0 0
        %2103 = vmatpush1.bf16.msra.mxu0 0
        %2104 = vmatprep.subr.bf16.mxu0 0
        %2105 = vmatpush1.bf16.msra.mxu0 0
        %2106 = vmatprep.mubr.bf16.mxu0 0
        %2107 = vmatmul.mubr.bf16.gmra.mrb[0].mxu0 %v2069
        %v2108 = vpop.f32.mrb[0].mxu0
        %v2109 = vadd.f32 0.0, %v2108
        %v2110 = vpop.f32.mrb[0].mxu0
        %v2111 = vpop.f32.mrb[0].mxu0
        %v2112 = vpop.f32.mrb[0].mxu0
        %2113 = vdwg.mxu0
        %2114 = vrot.lane.b32.xlu0 %v1285, 112
        %v2115 = vpop.permute.xlu0 %2114
        %v2117 = vsel %vm399, %v2065, 0
        %v2120 = vsel %vm526, %v2115, 0
        %2122 = vmatprep.subr.bf16.mxu0 0
        %2123 = vmatpush1.bf16.msra.mxu0 %v2120
        %2124 = vmatprep.subr.bf16.mxu0 0
        %2125 = vmatpush1.bf16.msra.mxu0 0
        %2126 = vmatprep.subr.bf16.mxu0 0
        %2127 = vmatpush1.bf16.msra.mxu0 0
        %2128 = vmatprep.subr.bf16.mxu0 0
        %2129 = vmatpush1.bf16.msra.mxu0 0
        %2130 = vmatprep.subr.bf16.mxu0 0
        %2131 = vmatpush1.bf16.msra.mxu0 0
        %2132 = vmatprep.subr.bf16.mxu0 0
        %2133 = vmatpush1.bf16.msra.mxu0 0
        %2134 = vmatprep.subr.bf16.mxu0 0
        %2135 = vmatpush1.bf16.msra.mxu0 0
        %2136 = vmatprep.subr.bf16.mxu0 0
        %2137 = vmatpush1.bf16.msra.mxu0 0
        %2138 = vmatprep.subr.bf16.mxu0 0
        %2139 = vmatpush1.bf16.msra.mxu0 0
        %2140 = vmatprep.subr.bf16.mxu0 0
        %2141 = vmatpush1.bf16.msra.mxu0 0
        %2142 = vmatprep.subr.bf16.mxu0 0
        %2143 = vmatpush1.bf16.msra.mxu0 0
        %2144 = vmatprep.subr.bf16.mxu0 0
        %2145 = vmatpush1.bf16.msra.mxu0 0
        %2146 = vmatprep.subr.bf16.mxu0 0
        %2147 = vmatpush1.bf16.msra.mxu0 0
        %2148 = vmatprep.subr.bf16.mxu0 0
        %2149 = vmatpush1.bf16.msra.mxu0 0
        %2150 = vmatprep.subr.bf16.mxu0 0
        %2151 = vmatpush1.bf16.msra.mxu0 0
        %2152 = vmatprep.subr.bf16.mxu0 0
        %2153 = vmatpush1.bf16.msra.mxu0 0
        %2154 = vmatprep.mubr.bf16.mxu0 0
        %2155 = vmatmul.mubr.bf16.gmra.mrb[0].mxu0 %v2117
        %v2156 = vpop.f32.mrb[0].mxu0
        %v2157 = vadd.f32 0.0, %v2156
        %v2158 = vpop.f32.mrb[0].mxu0
        %v2159 = vpop.f32.mrb[0].mxu0
        %v2160 = vpop.f32.mrb[0].mxu0
        %2161 = vdwg.mxu0
        %v2162 = vmul.f32 %v2109, 0.35355338
        %v2163 = vmul.f32 %v2157, 0.35355338
        %v2164 = vsel %vm399, %v2162, -inf
        %2165 = vmax.xlane.f32.xlu0 %v2164
        %v2166 = vpop.xlane.xlu0 %2165
        %v2167 = vsel %vm399, %v2163, -inf
        %2168 = vmax.xlane.f32.xlu0 %v2167
        %v2169 = vpop.xlane.xlu0 %2168
        %v2170 = vsub.f32 %v2162, %v2166
        %v2171 = vsub.f32 %v2163, %v2169
        %v2172 = vmul.f32 %v2170, 1.442695
        %v2173 = vpow.pop %v2172
        %v2174 = vmul.f32 %v2171, 1.442695
        %v2175 = vpow.pop %v2174
        %v2176 = vsel %vm399, %v2173, 0.0
        %2177 = vadd.xlane.f32.xlu0 %v2176
        %v2178 = vpop.xlane.xlu0 %2177
        %v2179 = vsel %vm399, %v2175, 0.0
        %2180 = vadd.xlane.f32.xlu0 %v2179
        %v2181 = vpop.xlane.xlu0 %2180
        %v2182 = vrcp.pop %v2178
        %v2183 = vrcp.pop %v2181
        %v2184 = vmul.f32 %v2173, %v2182
        %v2185 = vmul.f32 %v2175, %v2183
        %2186 = vxpose.xlu0.b32.start [1/16] %v2184, 128
        %2187 = vxpose.xlu0.b32.cont [2/16] 0.0, 128
        %2188 = vxpose.xlu0.b32.cont [3/16] 0.0, 128
        %2189 = vxpose.xlu0.b32.cont [4/16] 0.0, 128
        %2190 = vxpose.xlu0.b32.cont [5/16] 0.0, 128
        %2191 = vxpose.xlu0.b32.cont [6/16] 0.0, 128
        %2192 = vxpose.xlu0.b32.cont [7/16] 0.0, 128
        %2193 = vxpose.xlu0.b32.cont [8/16] 0.0, 128
        %2194 = vxpose.xlu0.b32.cont [9/16] 0.0, 128
        %2195 = vxpose.xlu0.b32.cont [10/16] 0.0, 128
        %2196 = vxpose.xlu0.b32.cont [11/16] 0.0, 128
        %2197 = vxpose.xlu0.b32.cont [12/16] 0.0, 128
        %2198 = vxpose.xlu0.b32.cont [13/16] 0.0, 128
        %2199 = vxpose.xlu0.b32.cont [14/16] 0.0, 128
        %2200 = vxpose.xlu0.b32.cont [15/16] 0.0, 128
        %2201 = vxpose.xlu0.b32.end [16/16] 0.0, 128
        %v2202 = vpop.trf.xlu0
        %v2203 = vpop.trf.xlu0
        %v2204 = vpop.trf.xlu0
        %v2205 = vpop.trf.xlu0
        %v2206 = vpop.trf.xlu0
        %v2207 = vpop.trf.xlu0
        %v2208 = vpop.trf.xlu0
        %v2209 = vpop.trf.xlu0
        %v2210 = vpop.trf.xlu0
        %v2211 = vpop.trf.xlu0
        %v2212 = vpop.trf.xlu0
        %v2213 = vpop.trf.xlu0
        %v2214 = vpop.trf.xlu0
        %v2215 = vpop.trf.xlu0
        %v2216 = vpop.trf.xlu0
        %v2217 = vpop.trf.xlu0
        %2218 = vxpose.xlu0.b32.start [1/16] %v2185, 128
        %2219 = vxpose.xlu0.b32.cont [2/16] 0.0, 128
        %2220 = vxpose.xlu0.b32.cont [3/16] 0.0, 128
        %2221 = vxpose.xlu0.b32.cont [4/16] 0.0, 128
        %2222 = vxpose.xlu0.b32.cont [5/16] 0.0, 128
        %2223 = vxpose.xlu0.b32.cont [6/16] 0.0, 128
        %2224 = vxpose.xlu0.b32.cont [7/16] 0.0, 128
        %2225 = vxpose.xlu0.b32.cont [8/16] 0.0, 128
        %2226 = vxpose.xlu0.b32.cont [9/16] 0.0, 128
        %2227 = vxpose.xlu0.b32.cont [10/16] 0.0, 128
        %2228 = vxpose.xlu0.b32.cont [11/16] 0.0, 128
        %2229 = vxpose.xlu0.b32.cont [12/16] 0.0, 128
        %2230 = vxpose.xlu0.b32.cont [13/16] 0.0, 128
        %2231 = vxpose.xlu0.b32.cont [14/16] 0.0, 128
        %2232 = vxpose.xlu0.b32.cont [15/16] 0.0, 128
        %2233 = vxpose.xlu0.b32.end [16/16] 0.0, 128
        %v2234 = vpop.trf.xlu0
        %v2235 = vpop.trf.xlu0
        %v2236 = vpop.trf.xlu0
        %v2237 = vpop.trf.xlu0
        %v2238 = vpop.trf.xlu0
        %v2239 = vpop.trf.xlu0
        %v2240 = vpop.trf.xlu0
        %v2241 = vpop.trf.xlu0
        %v2242 = vpop.trf.xlu0
        %v2243 = vpop.trf.xlu0
        %v2244 = vpop.trf.xlu0
        %v2245 = vpop.trf.xlu0
        %v2246 = vpop.trf.xlu0
        %v2247 = vpop.trf.xlu0
        %v2248 = vpop.trf.xlu0
        %v2249 = vpop.trf.xlu0
        %v2250 = vpack.c.bf16 %v2202, %v2202
        %v2251 = vpack.c.bf16 %v2234, %v2234
        %2252 = vrot.lane.b32.xlu0 %v1284, 80
        %v2253 = vpop.permute.xlu0 %2252
        %v2255 = vsel %vm399, %v2253, 0
        %v2258 = vsel %vm526, %v2250, 0
        %2260 = vmatprep.subr.bf16.mxu0 0
        %2261 = vmatpush1.bf16.msra.mxu0 %v2258
        %2262 = vmatprep.subr.bf16.mxu0 0
        %2263 = vmatpush1.bf16.msra.mxu0 0
        %2264 = vmatprep.subr.bf16.mxu0 0
        %2265 = vmatpush1.bf16.msra.mxu0 0
        %2266 = vmatprep.subr.bf16.mxu0 0
        %2267 = vmatpush1.bf16.msra.mxu0 0
        %2268 = vmatprep.subr.bf16.mxu0 0
        %2269 = vmatpush1.bf16.msra.mxu0 0
        %2270 = vmatprep.subr.bf16.mxu0 0
        %2271 = vmatpush1.bf16.msra.mxu0 0
        %2272 = vmatprep.subr.bf16.mxu0 0
        %2273 = vmatpush1.bf16.msra.mxu0 0
        %2274 = vmatprep.subr.bf16.mxu0 0
        %2275 = vmatpush1.bf16.msra.mxu0 0
        %2276 = vmatprep.subr.bf16.mxu0 0
        %2277 = vmatpush1.bf16.msra.mxu0 0
        %2278 = vmatprep.subr.bf16.mxu0 0
        %2279 = vmatpush1.bf16.msra.mxu0 0
        %2280 = vmatprep.subr.bf16.mxu0 0
        %2281 = vmatpush1.bf16.msra.mxu0 0
        %2282 = vmatprep.subr.bf16.mxu0 0
        %2283 = vmatpush1.bf16.msra.mxu0 0
        %2284 = vmatprep.subr.bf16.mxu0 0
        %2285 = vmatpush1.bf16.msra.mxu0 0
        %2286 = vmatprep.subr.bf16.mxu0 0
        %2287 = vmatpush1.bf16.msra.mxu0 0
        %2288 = vmatprep.subr.bf16.mxu0 0
        %2289 = vmatpush1.bf16.msra.mxu0 0
        %2290 = vmatprep.subr.bf16.mxu0 0
        %2291 = vmatpush1.bf16.msra.mxu0 0
        %2292 = vmatprep.mubr.bf16.mxu0 0
        %2293 = vmatmul.mubr.bf16.gmra.mrb[0].mxu0 %v2255
        %v2294 = vpop.f32.mrb[0].mxu0
        %v2295 = vadd.f32 0.0, %v2294
        %v2296 = vpop.f32.mrb[0].mxu0
        %v2297 = vpop.f32.mrb[0].mxu0
        %v2298 = vpop.f32.mrb[0].mxu0
        %2299 = vdwg.mxu0
        %2300 = vrot.lane.b32.xlu0 %v1285, 80
        %v2301 = vpop.permute.xlu0 %2300
        %v2303 = vsel %vm399, %v2301, 0
        %v2306 = vsel %vm526, %v2251, 0
        %2308 = vmatprep.subr.bf16.mxu0 0
        %2309 = vmatpush1.bf16.msra.mxu0 %v2306
        %2310 = vmatprep.subr.bf16.mxu0 0
        %2311 = vmatpush1.bf16.msra.mxu0 0
        %2312 = vmatprep.subr.bf16.mxu0 0
        %2313 = vmatpush1.bf16.msra.mxu0 0
        %2314 = vmatprep.subr.bf16.mxu0 0
        %2315 = vmatpush1.bf16.msra.mxu0 0
        %2316 = vmatprep.subr.bf16.mxu0 0
        %2317 = vmatpush1.bf16.msra.mxu0 0
        %2318 = vmatprep.subr.bf16.mxu0 0
        %2319 = vmatpush1.bf16.msra.mxu0 0
        %2320 = vmatprep.subr.bf16.mxu0 0
        %2321 = vmatpush1.bf16.msra.mxu0 0
        %2322 = vmatprep.subr.bf16.mxu0 0
        %2323 = vmatpush1.bf16.msra.mxu0 0
        %2324 = vmatprep.subr.bf16.mxu0 0
        %2325 = vmatpush1.bf16.msra.mxu0 0
        %2326 = vmatprep.subr.bf16.mxu0 0
        %2327 = vmatpush1.bf16.msra.mxu0 0
        %2328 = vmatprep.subr.bf16.mxu0 0
        %2329 = vmatpush1.bf16.msra.mxu0 0
        %2330 = vmatprep.subr.bf16.mxu0 0
        %2331 = vmatpush1.bf16.msra.mxu0 0
        %2332 = vmatprep.subr.bf16.mxu0 0
        %2333 = vmatpush1.bf16.msra.mxu0 0
        %2334 = vmatprep.subr.bf16.mxu0 0
        %2335 = vmatpush1.bf16.msra.mxu0 0
        %2336 = vmatprep.subr.bf16.mxu0 0
        %2337 = vmatpush1.bf16.msra.mxu0 0
        %2338 = vmatprep.subr.bf16.mxu0 0
        %2339 = vmatpush1.bf16.msra.mxu0 0
        %2340 = vmatprep.mubr.bf16.mxu0 0
        %2341 = vmatmul.mubr.bf16.gmra.mrb[0].mxu0 %v2303
        %v2342 = vpop.f32.mrb[0].mxu0
        %v2343 = vadd.f32 0.0, %v2342
        %v2344 = vpop.f32.mrb[0].mxu0
        %v2345 = vpop.f32.mrb[0].mxu0
        %v2346 = vpop.f32.mrb[0].mxu0
        %2347 = vdwg.mxu0
        %2348 = vrot.lane.b32.xlu0 %v386, 8
        %v2349 = vpop.permute.xlu0 %2348
        %2350 = vrot.lane.b32.xlu0 %v390, 8
        %v2351 = vpop.permute.xlu0 %2350
        %2354 = vxpose.xlu0.b32.start [1/16] %v2349, 128
        %2355 = vxpose.xlu0.b32.cont [2/16] 0.0, 128
        %2356 = vxpose.xlu0.b32.cont [3/16] 0.0, 128
        %2357 = vxpose.xlu0.b32.cont [4/16] 0.0, 128
        %2358 = vxpose.xlu0.b32.cont [5/16] 0.0, 128
        %2359 = vxpose.xlu0.b32.cont [6/16] 0.0, 128
        %2360 = vxpose.xlu0.b32.cont [7/16] 0.0, 128
        %2361 = vxpose.xlu0.b32.cont [8/16] 0.0, 128
        %2362 = vxpose.xlu0.b32.cont [9/16] 0.0, 128
        %2363 = vxpose.xlu0.b32.cont [10/16] 0.0, 128
        %2364 = vxpose.xlu0.b32.cont [11/16] 0.0, 128
        %2365 = vxpose.xlu0.b32.cont [12/16] 0.0, 128
        %2366 = vxpose.xlu0.b32.cont [13/16] 0.0, 128
        %2367 = vxpose.xlu0.b32.cont [14/16] 0.0, 128
        %2368 = vxpose.xlu0.b32.cont [15/16] 0.0, 128
        %2369 = vxpose.xlu0.b32.end [16/16] 0.0, 128
        %v2370 = vpop.trf.xlu0
        %v2371 = vpop.trf.xlu0
        %v2372 = vpop.trf.xlu0
        %v2373 = vpop.trf.xlu0
        %v2374 = vpop.trf.xlu0
        %v2375 = vpop.trf.xlu0
        %v2376 = vpop.trf.xlu0
        %v2377 = vpop.trf.xlu0
        %v2378 = vpop.trf.xlu0
        %v2379 = vpop.trf.xlu0
        %v2380 = vpop.trf.xlu0
        %v2381 = vpop.trf.xlu0
        %v2382 = vpop.trf.xlu0
        %v2383 = vpop.trf.xlu0
        %v2384 = vpop.trf.xlu0
        %v2385 = vpop.trf.xlu0
        %2386 = vxpose.xlu0.b32.start [1/16] %v2351, 128
        %2387 = vxpose.xlu0.b32.cont [2/16] 0.0, 128
        %2388 = vxpose.xlu0.b32.cont [3/16] 0.0, 128
        %2389 = vxpose.xlu0.b32.cont [4/16] 0.0, 128
        %2390 = vxpose.xlu0.b32.cont [5/16] 0.0, 128
        %2391 = vxpose.xlu0.b32.cont [6/16] 0.0, 128
        %2392 = vxpose.xlu0.b32.cont [7/16] 0.0, 128
        %2393 = vxpose.xlu0.b32.cont [8/16] 0.0, 128
        %2394 = vxpose.xlu0.b32.cont [9/16] 0.0, 128
        %2395 = vxpose.xlu0.b32.cont [10/16] 0.0, 128
        %2396 = vxpose.xlu0.b32.cont [11/16] 0.0, 128
        %2397 = vxpose.xlu0.b32.cont [12/16] 0.0, 128
        %2398 = vxpose.xlu0.b32.cont [13/16] 0.0, 128
        %2399 = vxpose.xlu0.b32.cont [14/16] 0.0, 128
        %2400 = vxpose.xlu0.b32.cont [15/16] 0.0, 128
        %2401 = vxpose.xlu0.b32.end [16/16] 0.0, 128
        %v2402 = vpop.trf.xlu0
        %v2403 = vpop.trf.xlu0
        %v2404 = vpop.trf.xlu0
        %v2405 = vpop.trf.xlu0
        %v2406 = vpop.trf.xlu0
        %v2407 = vpop.trf.xlu0
        %v2408 = vpop.trf.xlu0
        %v2409 = vpop.trf.xlu0
        %v2410 = vpop.trf.xlu0
        %v2411 = vpop.trf.xlu0
        %v2412 = vpop.trf.xlu0
        %v2413 = vpop.trf.xlu0
        %v2414 = vpop.trf.xlu0
        %v2415 = vpop.trf.xlu0
        %v2416 = vpop.trf.xlu0
        %v2417 = vpop.trf.xlu0
        %v2418 = vpack.c.bf16 %v2370, %v2370
        %v2419 = vpack.c.bf16 %v2402, %v2402
        %2420 = vrot.lane.b32.xlu0 %v1284, 104
        %v2421 = vpop.permute.xlu0 %2420
        %v2423 = vsel %vm399, %v2418, 0
        %v2426 = vsel %vm526, %v2421, 0
        %2428 = vmatprep.subr.bf16.mxu0 0
        %2429 = vmatpush1.bf16.msra.mxu0 %v2426
        %2430 = vmatprep.subr.bf16.mxu0 0
        %2431 = vmatpush1.bf16.msra.mxu0 0
        %2432 = vmatprep.subr.bf16.mxu0 0
        %2433 = vmatpush1.bf16.msra.mxu0 0
        %2434 = vmatprep.subr.bf16.mxu0 0
        %2435 = vmatpush1.bf16.msra.mxu0 0
        %2436 = vmatprep.subr.bf16.mxu0 0
        %2437 = vmatpush1.bf16.msra.mxu0 0
        %2438 = vmatprep.subr.bf16.mxu0 0
        %2439 = vmatpush1.bf16.msra.mxu0 0
        %2440 = vmatprep.subr.bf16.mxu0 0
        %2441 = vmatpush1.bf16.msra.mxu0 0
        %2442 = vmatprep.subr.bf16.mxu0 0
        %2443 = vmatpush1.bf16.msra.mxu0 0
        %2444 = vmatprep.subr.bf16.mxu0 0
        %2445 = vmatpush1.bf16.msra.mxu0 0
        %2446 = vmatprep.subr.bf16.mxu0 0
        %2447 = vmatpush1.bf16.msra.mxu0 0
        %2448 = vmatprep.subr.bf16.mxu0 0
        %2449 = vmatpush1.bf16.msra.mxu0 0
        %2450 = vmatprep.subr.bf16.mxu0 0
        %2451 = vmatpush1.bf16.msra.mxu0 0
        %2452 = vmatprep.subr.bf16.mxu0 0
        %2453 = vmatpush1.bf16.msra.mxu0 0
        %2454 = vmatprep.subr.bf16.mxu0 0
        %2455 = vmatpush1.bf16.msra.mxu0 0
        %2456 = vmatprep.subr.bf16.mxu0 0
        %2457 = vmatpush1.bf16.msra.mxu0 0
        %2458 = vmatprep.subr.bf16.mxu0 0
        %2459 = vmatpush1.bf16.msra.mxu0 0
        %2460 = vmatprep.mubr.bf16.mxu0 0
        %2461 = vmatmul.mubr.bf16.gmra.mrb[0].mxu0 %v2423
        %v2462 = vpop.f32.mrb[0].mxu0
        %v2463 = vadd.f32 0.0, %v2462
        %v2464 = vpop.f32.mrb[0].mxu0
        %v2465 = vpop.f32.mrb[0].mxu0
        %v2466 = vpop.f32.mrb[0].mxu0
        %2467 = vdwg.mxu0
        %2468 = vrot.lane.b32.xlu0 %v1285, 104
        %v2469 = vpop.permute.xlu0 %2468
        %v2471 = vsel %vm399, %v2419, 0
        %v2474 = vsel %vm526, %v2469, 0
        %2476 = vmatprep.subr.bf16.mxu0 0
        %2477 = vmatpush1.bf16.msra.mxu0 %v2474
        %2478 = vmatprep.subr.bf16.mxu0 0
        %2479 = vmatpush1.bf16.msra.mxu0 0
        %2480 = vmatprep.subr.bf16.mxu0 0
        %2481 = vmatpush1.bf16.msra.mxu0 0
        %2482 = vmatprep.subr.bf16.mxu0 0
        %2483 = vmatpush1.bf16.msra.mxu0 0
        %2484 = vmatprep.subr.bf16.mxu0 0
        %2485 = vmatpush1.bf16.msra.mxu0 0
        %2486 = vmatprep.subr.bf16.mxu0 0
        %2487 = vmatpush1.bf16.msra.mxu0 0
        %2488 = vmatprep.subr.bf16.mxu0 0
        %2489 = vmatpush1.bf16.msra.mxu0 0
        %2490 = vmatprep.subr.bf16.mxu0 0
        %2491 = vmatpush1.bf16.msra.mxu0 0
        %2492 = vmatprep.subr.bf16.mxu0 0
        %2493 = vmatpush1.bf16.msra.mxu0 0
        %2494 = vmatprep.subr.bf16.mxu0 0
        %2495 = vmatpush1.bf16.msra.mxu0 0
        %2496 = vmatprep.subr.bf16.mxu0 0
        %2497 = vmatpush1.bf16.msra.mxu0 0
        %2498 = vmatprep.subr.bf16.mxu0 0
        %2499 = vmatpush1.bf16.msra.mxu0 0
        %2500 = vmatprep.subr.bf16.mxu0 0
        %2501 = vmatpush1.bf16.msra.mxu0 0
        %2502 = vmatprep.subr.bf16.mxu0 0
        %2503 = vmatpush1.bf16.msra.mxu0 0
        %2504 = vmatprep.subr.bf16.mxu0 0
        %2505 = vmatpush1.bf16.msra.mxu0 0
        %2506 = vmatprep.subr.bf16.mxu0 0
        %2507 = vmatpush1.bf16.msra.mxu0 0
        %2508 = vmatprep.mubr.bf16.mxu0 0
        %2509 = vmatmul.mubr.bf16.gmra.mrb[0].mxu0 %v2471
        %v2510 = vpop.f32.mrb[0].mxu0
        %v2511 = vadd.f32 0.0, %v2510
        %v2512 = vpop.f32.mrb[0].mxu0
        %v2513 = vpop.f32.mrb[0].mxu0
        %v2514 = vpop.f32.mrb[0].mxu0
        %2515 = vdwg.mxu0
        %v2516 = vmul.f32 %v2463, 0.35355338
        %v2517 = vmul.f32 %v2511, 0.35355338
        %v2518 = vsel %vm399, %v2516, -inf
        %2519 = vmax.xlane.f32.xlu0 %v2518
        %v2520 = vpop.xlane.xlu0 %2519
        %v2521 = vsel %vm399, %v2517, -inf
        %2522 = vmax.xlane.f32.xlu0 %v2521
        %v2523 = vpop.xlane.xlu0 %2522
        %v2524 = vsub.f32 %v2516, %v2520
        %v2525 = vsub.f32 %v2517, %v2523
        %v2526 = vmul.f32 %v2524, 1.442695
        %v2527 = vpow.pop %v2526
        %v2528 = vmul.f32 %v2525, 1.442695
        %v2529 = vpow.pop %v2528
        %v2530 = vsel %vm399, %v2527, 0.0
        %2531 = vadd.xlane.f32.xlu0 %v2530
        %v2532 = vpop.xlane.xlu0 %2531
        %v2533 = vsel %vm399, %v2529, 0.0
        %2534 = vadd.xlane.f32.xlu0 %v2533
        %v2535 = vpop.xlane.xlu0 %2534
        %v2536 = vrcp.pop %v2532
        %v2537 = vrcp.pop %v2535
        %v2538 = vmul.f32 %v2527, %v2536
        %v2539 = vmul.f32 %v2529, %v2537
        %2540 = vxpose.xlu0.b32.start [1/16] %v2538, 128
        %2541 = vxpose.xlu0.b32.cont [2/16] 0.0, 128
        %2542 = vxpose.xlu0.b32.cont [3/16] 0.0, 128
        %2543 = vxpose.xlu0.b32.cont [4/16] 0.0, 128
        %2544 = vxpose.xlu0.b32.cont [5/16] 0.0, 128
        %2545 = vxpose.xlu0.b32.cont [6/16] 0.0, 128
        %2546 = vxpose.xlu0.b32.cont [7/16] 0.0, 128
        %2547 = vxpose.xlu0.b32.cont [8/16] 0.0, 128
        %2548 = vxpose.xlu0.b32.cont [9/16] 0.0, 128
        %2549 = vxpose.xlu0.b32.cont [10/16] 0.0, 128
        %2550 = vxpose.xlu0.b32.cont [11/16] 0.0, 128
        %2551 = vxpose.xlu0.b32.cont [12/16] 0.0, 128
        %2552 = vxpose.xlu0.b32.cont [13/16] 0.0, 128
        %2553 = vxpose.xlu0.b32.cont [14/16] 0.0, 128
        %2554 = vxpose.xlu0.b32.cont [15/16] 0.0, 128
        %2555 = vxpose.xlu0.b32.end [16/16] 0.0, 128
        %v2556 = vpop.trf.xlu0
        %v2557 = vpop.trf.xlu0
        %v2558 = vpop.trf.xlu0
        %v2559 = vpop.trf.xlu0
        %v2560 = vpop.trf.xlu0
        %v2561 = vpop.trf.xlu0
        %v2562 = vpop.trf.xlu0
        %v2563 = vpop.trf.xlu0
        %v2564 = vpop.trf.xlu0
        %v2565 = vpop.trf.xlu0
        %v2566 = vpop.trf.xlu0
        %v2567 = vpop.trf.xlu0
        %v2568 = vpop.trf.xlu0
        %v2569 = vpop.trf.xlu0
        %v2570 = vpop.trf.xlu0
        %v2571 = vpop.trf.xlu0
        %2572 = vxpose.xlu0.b32.start [1/16] %v2539, 128
        %2573 = vxpose.xlu0.b32.cont [2/16] 0.0, 128
        %2574 = vxpose.xlu0.b32.cont [3/16] 0.0, 128
        %2575 = vxpose.xlu0.b32.cont [4/16] 0.0, 128
        %2576 = vxpose.xlu0.b32.cont [5/16] 0.0, 128
        %2577 = vxpose.xlu0.b32.cont [6/16] 0.0, 128
        %2578 = vxpose.xlu0.b32.cont [7/16] 0.0, 128
        %2579 = vxpose.xlu0.b32.cont [8/16] 0.0, 128
        %2580 = vxpose.xlu0.b32.cont [9/16] 0.0, 128
        %2581 = vxpose.xlu0.b32.cont [10/16] 0.0, 128
        %2582 = vxpose.xlu0.b32.cont [11/16] 0.0, 128
        %2583 = vxpose.xlu0.b32.cont [12/16] 0.0, 128
        %2584 = vxpose.xlu0.b32.cont [13/16] 0.0, 128
        %2585 = vxpose.xlu0.b32.cont [14/16] 0.0, 128
        %2586 = vxpose.xlu0.b32.cont [15/16] 0.0, 128
        %2587 = vxpose.xlu0.b32.end [16/16] 0.0, 128
        %v2588 = vpop.trf.xlu0
        %v2589 = vpop.trf.xlu0
        %v2590 = vpop.trf.xlu0
        %v2591 = vpop.trf.xlu0
        %v2592 = vpop.trf.xlu0
        %v2593 = vpop.trf.xlu0
        %v2594 = vpop.trf.xlu0
        %v2595 = vpop.trf.xlu0
        %v2596 = vpop.trf.xlu0
        %v2597 = vpop.trf.xlu0
        %v2598 = vpop.trf.xlu0
        %v2599 = vpop.trf.xlu0
        %v2600 = vpop.trf.xlu0
        %v2601 = vpop.trf.xlu0
        %v2602 = vpop.trf.xlu0
        %v2603 = vpop.trf.xlu0
        %v2604 = vpack.c.bf16 %v2556, %v2556
        %v2605 = vpack.c.bf16 %v2588, %v2588
        %2606 = vrot.lane.b32.xlu0 %v1284, 72
        %v2607 = vpop.permute.xlu0 %2606
        %v2609 = vsel %vm399, %v2607, 0
        %v2612 = vsel %vm526, %v2604, 0
        %2614 = vmatprep.subr.bf16.mxu0 0
        %2615 = vmatpush1.bf16.msra.mxu0 %v2612
        %2616 = vmatprep.subr.bf16.mxu0 0
        %2617 = vmatpush1.bf16.msra.mxu0 0
        %2618 = vmatprep.subr.bf16.mxu0 0
        %2619 = vmatpush1.bf16.msra.mxu0 0
        %2620 = vmatprep.subr.bf16.mxu0 0
        %2621 = vmatpush1.bf16.msra.mxu0 0
        %2622 = vmatprep.subr.bf16.mxu0 0
        %2623 = vmatpush1.bf16.msra.mxu0 0
        %2624 = vmatprep.subr.bf16.mxu0 0
        %2625 = vmatpush1.bf16.msra.mxu0 0
        %2626 = vmatprep.subr.bf16.mxu0 0
        %2627 = vmatpush1.bf16.msra.mxu0 0
        %2628 = vmatprep.subr.bf16.mxu0 0
        %2629 = vmatpush1.bf16.msra.mxu0 0
        %2630 = vmatprep.subr.bf16.mxu0 0
        %2631 = vmatpush1.bf16.msra.mxu0 0
        %2632 = vmatprep.subr.bf16.mxu0 0
        %2633 = vmatpush1.bf16.msra.mxu0 0
        %2634 = vmatprep.subr.bf16.mxu0 0
        %2635 = vmatpush1.bf16.msra.mxu0 0
        %2636 = vmatprep.subr.bf16.mxu0 0
        %2637 = vmatpush1.bf16.msra.mxu0 0
        %2638 = vmatprep.subr.bf16.mxu0 0
        %2639 = vmatpush1.bf16.msra.mxu0 0
        %2640 = vmatprep.subr.bf16.mxu0 0
        %2641 = vmatpush1.bf16.msra.mxu0 0
        %2642 = vmatprep.subr.bf16.mxu0 0
        %2643 = vmatpush1.bf16.msra.mxu0 0
        %2644 = vmatprep.subr.bf16.mxu0 0
        %2645 = vmatpush1.bf16.msra.mxu0 0
        %2646 = vmatprep.mubr.bf16.mxu0 0
        %2647 = vmatmul.mubr.bf16.gmra.mrb[0].mxu0 %v2609
        %v2648 = vpop.f32.mrb[0].mxu0
        %v2649 = vadd.f32 0.0, %v2648
        %v2650 = vpop.f32.mrb[0].mxu0
        %v2651 = vpop.f32.mrb[0].mxu0
        %v2652 = vpop.f32.mrb[0].mxu0
        %2653 = vdwg.mxu0
        %2654 = vrot.lane.b32.xlu0 %v1285, 72
        %v2655 = vpop.permute.xlu0 %2654
        %v2657 = vsel %vm399, %v2655, 0
        %v2660 = vsel %vm526, %v2605, 0
        %2662 = vmatprep.subr.bf16.mxu0 0
        %2663 = vmatpush1.bf16.msra.mxu0 %v2660
        %2664 = vmatprep.subr.bf16.mxu0 0
        %2665 = vmatpush1.bf16.msra.mxu0 0
        %2666 = vmatprep.subr.bf16.mxu0 0
        %2667 = vmatpush1.bf16.msra.mxu0 0
        %2668 = vmatprep.subr.bf16.mxu0 0
        %2669 = vmatpush1.bf16.msra.mxu0 0
        %2670 = vmatprep.subr.bf16.mxu0 0
        %2671 = vmatpush1.bf16.msra.mxu0 0
        %2672 = vmatprep.subr.bf16.mxu0 0
        %2673 = vmatpush1.bf16.msra.mxu0 0
        %2674 = vmatprep.subr.bf16.mxu0 0
        %2675 = vmatpush1.bf16.msra.mxu0 0
        %2676 = vmatprep.subr.bf16.mxu0 0
        %2677 = vmatpush1.bf16.msra.mxu0 0
        %2678 = vmatprep.subr.bf16.mxu0 0
        %2679 = vmatpush1.bf16.msra.mxu0 0
        %2680 = vmatprep.subr.bf16.mxu0 0
        %2681 = vmatpush1.bf16.msra.mxu0 0
        %2682 = vmatprep.subr.bf16.mxu0 0
        %2683 = vmatpush1.bf16.msra.mxu0 0
        %2684 = vmatprep.subr.bf16.mxu0 0
        %2685 = vmatpush1.bf16.msra.mxu0 0
        %2686 = vmatprep.subr.bf16.mxu0 0
        %2687 = vmatpush1.bf16.msra.mxu0 0
        %2688 = vmatprep.subr.bf16.mxu0 0
        %2689 = vmatpush1.bf16.msra.mxu0 0
        %2690 = vmatprep.subr.bf16.mxu0 0
        %2691 = vmatpush1.bf16.msra.mxu0 0
        %2692 = vmatprep.subr.bf16.mxu0 0
        %2693 = vmatpush1.bf16.msra.mxu0 0
        %2694 = vmatprep.mubr.bf16.mxu0 0
        %2695 = vmatmul.mubr.bf16.gmra.mrb[0].mxu0 %v2657
        %v2696 = vpop.f32.mrb[0].mxu0
        %v2697 = vadd.f32 0.0, %v2696
        %v2698 = vpop.f32.mrb[0].mxu0
        %v2699 = vpop.f32.mrb[0].mxu0
        %v2700 = vpop.f32.mrb[0].mxu0
        %2701 = vdwg.mxu0
        %2704 = vrot.lane.b32.xlu0 %v787, 8
        %v2705 = vpop.permute.xlu0 %2704
        %2706 = vrot.lane.b32.xlu0 %v835, 8
        %v2707 = vpop.permute.xlu0 %2706
        %2712 = vrot.lane.b32.xlu0 %v1009, 16
        %v2713 = vpop.permute.xlu0 %2712
        %2714 = vrot.lane.b32.xlu0 %v1057, 16
        %v2715 = vpop.permute.xlu0 %2714
        %2720 = vrot.lane.b32.xlu0 %v1231, 24
        %v2721 = vpop.permute.xlu0 %2720
        %2722 = vrot.lane.b32.xlu0 %v1279, 24
        %v2723 = vpop.permute.xlu0 %2722
        %2728 = vrot.lane.b32.xlu0 %v1586, 32
        %v2729 = vpop.permute.xlu0 %2728
        %2730 = vrot.lane.b32.xlu0 %v1635, 32
        %v2731 = vpop.permute.xlu0 %2730
        %2736 = vrot.lane.b32.xlu0 %v1941, 40
        %v2737 = vpop.permute.xlu0 %2736
        %2738 = vrot.lane.b32.xlu0 %v1989, 40
        %v2739 = vpop.permute.xlu0 %2738
        %2744 = vrot.lane.b32.xlu0 %v2295, 48
        %v2745 = vpop.permute.xlu0 %2744
        %2746 = vrot.lane.b32.xlu0 %v2343, 48
        %v2747 = vpop.permute.xlu0 %2746
        %2752 = vrot.lane.b32.xlu0 %v2649, 56
        %v2753 = vpop.permute.xlu0 %2752
        %2754 = vrot.lane.b32.xlu0 %v2697, 56
        %v2755 = vpop.permute.xlu0 %2754
        %v2758 = vsel %vm399, %v565, %v2705
        %v2759 = vsel %vm399, %v613, %v2707
        %vm2760 = vcmask 130048
        %v2761 = vsel %vm2760, %v2758, %v2713
        %v2762 = vsel %vm2760, %v2759, %v2715
        %vm2763 = vcmask 195584
        %v2764 = vsel %vm2763, %v2761, %v2721
        %v2765 = vsel %vm2763, %v2762, %v2723
        %v2766 = vsel %vm347, %v2764, %v2729
        %v2767 = vsel %vm347, %v2765, %v2731
        %vm2768 = vcmask 326656
        %v2769 = vsel %vm2768, %v2766, %v2737
        %v2770 = vsel %vm2768, %v2767, %v2739
        %vm2771 = vcmask 392192
        %v2772 = vsel %vm2771, %v2769, %v2745
        %v2773 = vsel %vm2771, %v2770, %v2747
        %vm2774 = vcmask 457728
        %v2775 = vsel %vm2774, %v2772, %v2753
        %v2776 = vsel %vm2774, %v2773, %v2755
        %v2777 = vpack.c.bf16 %v2776, %v2775
        %v2778 = vld [vmem:[%s3] sm:$0xf]
        %v2779 = vld [vmem:[%s3 + $0x4] sm:$0xf]
        %v2780 = vld [vmem:[%s3 + $0x8] sm:$0xf]
        %v2781 = vld [vmem:[%s3 + $0xc] sm:$0xf]
        %v2782 = vld [vmem:[%s3 + $0x10] sm:$0xf]
        %v2783 = vld [vmem:[%s3 + $0x14] sm:$0xf]
        %v2784 = vld [vmem:[%s3 + $0x18] sm:$0xf]
        %v2785 = vld [vmem:[%s3 + $0x1c] sm:$0xf]
        %v2786 = vld [vmem:[%s7] sm:$0x1]
        %v2787 = vlaneseq
        %v2788 = vshrl.u32 %v2787, 7
        %v2789 = vsub.s32 0, %v2788
        %v2790 = vrot.slane %v2786, %v2789
        %v2799 = vunpack.c.l.b16 %v2778
        %v2800 = vunpack.c.l.b16 %v2779
        %v2801 = vunpack.c.l.b16 %v2780
        %v2802 = vunpack.c.l.b16 %v2781
        %v2803 = vunpack.c.l.b16 %v2782
        %v2804 = vunpack.c.l.b16 %v2783
        %v2805 = vunpack.c.l.b16 %v2784
        %v2806 = vunpack.c.l.b16 %v2785
        %v2807 = vpack.c.b16 %v2800, %v2799
        %v2808 = vpack.c.b16 %v2802, %v2801
        %v2809 = vpack.c.b16 %v2804, %v2803
        %v2810 = vpack.c.b16 %v2806, %v2805
        %vm2815 = vcmask 523264
        %v2817 = vsel %vm2815, %v2777, 0
        %2819 = vmatprep.subr.bf16.mxu0 0
        %2820 = vmatpush1.bf16.msra.mxu0 %v2807
        %2821 = vmatprep.subr.bf16.mxu0 0
        %2822 = vmatpush1.bf16.msra.mxu0 %v2808
        %2823 = vmatprep.subr.bf16.mxu0 0
        %2824 = vmatpush1.bf16.msra.mxu0 %v2809
        %2825 = vmatprep.subr.bf16.mxu0 0
        %2826 = vmatpush1.bf16.msra.mxu0 %v2810
        %2827 = vmatprep.subr.bf16.mxu0 0
        %2828 = vmatpush1.bf16.msra.mxu0 0
        %2829 = vmatprep.subr.bf16.mxu0 0
        %2830 = vmatpush1.bf16.msra.mxu0 0
        %2831 = vmatprep.subr.bf16.mxu0 0
        %2832 = vmatpush1.bf16.msra.mxu0 0
        %2833 = vmatprep.subr.bf16.mxu0 0
        %2834 = vmatpush1.bf16.msra.mxu0 0
        %2835 = vmatprep.subr.bf16.mxu0 0
        %2836 = vmatpush1.bf16.msra.mxu0 0
        %2837 = vmatprep.subr.bf16.mxu0 0
        %2838 = vmatpush1.bf16.msra.mxu0 0
        %2839 = vmatprep.subr.bf16.mxu0 0
        %2840 = vmatpush1.bf16.msra.mxu0 0
        %2841 = vmatprep.subr.bf16.mxu0 0
        %2842 = vmatpush1.bf16.msra.mxu0 0
        %2843 = vmatprep.subr.bf16.mxu0 0
        %2844 = vmatpush1.bf16.msra.mxu0 0
        %2845 = vmatprep.subr.bf16.mxu0 0
        %2846 = vmatpush1.bf16.msra.mxu0 0
        %2847 = vmatprep.subr.bf16.mxu0 0
        %2848 = vmatpush1.bf16.msra.mxu0 0
        %2849 = vmatprep.subr.bf16.mxu0 0
        %2850 = vmatpush1.bf16.msra.mxu0 0
        %2851 = vmatprep.mubr.bf16.mxu0 0
        %2852 = vmatmul.mubr.bf16.gmra.mrb[0].mxu0 %v2817
        %v2853 = vpop.f32.mrb[0].mxu0
        %v2854 = vadd.f32 %v2790, %v2853
        %v2855 = vpop.f32.mrb[0].mxu0
        %v2856 = vpop.f32.mrb[0].mxu0
        %v2857 = vadd.f32 %v2790, %v2856
        %v2858 = vpop.f32.mrb[0].mxu0
        %2859 = vdwg.mxu0
        %v2860 = vadd.f32 %v308, %v2854
        %v2861 = vadd.f32 %v309, %v2857
        %v2862 = vld [vmem:[%s7 + $0x1] sm:$0x1]
        %v2863 = vld [vmem:[%s7 + $0x2] sm:$0x1]
        %v2864 = vsel %vm347, %v2860, 0.0
        %2865 = vadd.xlane.f32.xlu0 %v2864
        %v2866 = vpop.xlane.xlu0 %2865
        %v2867 = vsel %vm347, %v2861, 0.0
        %2868 = vadd.xlane.f32.xlu0 %v2867
        %v2869 = vpop.xlane.xlu0 %2868
        %v2870 = vrcp.pop 32.0
        %v2871 = vmul.f32 %v2866, %v2870
        %v2872 = vmul.f32 %v2869, %v2870
        %v2873 = vsub.f32 %v2860, %v2871
        %v2874 = vsub.f32 %v2861, %v2872
        %v2875 = vmul.f32 %v2873, %v2873
        %v2876 = vmul.f32 %v2874, %v2874
        %v2877 = vsel %vm347, %v2875, 0.0
        %2878 = vadd.xlane.f32.xlu0 %v2877
        %v2879 = vpop.xlane.xlu0 %2878
        %v2880 = vsel %vm347, %v2876, 0.0
        %2881 = vadd.xlane.f32.xlu0 %v2880
        %v2882 = vpop.xlane.xlu0 %2881
        %v2883 = vmul.f32 %v2879, %v2870
        %v2884 = vmul.f32 %v2882, %v2870
        %v2885 = vadd.f32 %v2883, 1e-05
        %v2886 = vadd.f32 %v2884, 1e-05
        %v2887 = vrsqrt.pop %v2885
        %v2888 = vrsqrt.pop %v2886
        %v2889 = vmul.f32 %v2873, %v2887
        %v2890 = vmul.f32 %v2874, %v2888
        %v2891 = vlaneseq
        %v2892 = vshrl.u32 %v2891, 7
        %v2893 = vsub.s32 0, %v2892
        %v2894 = vrot.slane %v2862, %v2893
        %v2895 = vmul.f32 %v2889, %v2894
        %v2896 = vmul.f32 %v2890, %v2894
        %v2897 = vlaneseq
        %v2898 = vshrl.u32 %v2897, 7
        %v2899 = vsub.s32 0, %v2898
        %v2900 = vrot.slane %v2863, %v2899
        %v2901 = vadd.f32 %v2895, %v2900
        %v2902 = vadd.f32 %v2896, %v2900
        %v2903 = vpack.c.bf16 %v2902, %v2901
        %v2904 = vld [vmem:[%s4] sm:$0xf]
        %v2905 = vld [vmem:[%s4 + $0x4] sm:$0xf]
        %v2906 = vld [vmem:[%s4 + $0x8] sm:$0xf]
        %v2907 = vld [vmem:[%s4 + $0xc] sm:$0xf]
        %v2908 = vld [vmem:[%s5] sm:$0x1]
        %v2910 = vlaneseq
        %v2911 = vshrl.u32 %v2910, 7
        %v2912 = vsub.s32 0, %v2911
        %v2913 = vrot.slane %v2908, %v2912
        %v2919 = vunpack.c.l.b16 %v2904
        %v2920 = vunpack.c.l.b16 %v2905
        %v2921 = vunpack.c.l.b16 %v2906
        %v2922 = vunpack.c.l.b16 %v2907
        %v2923 = vpack.c.b16 %v2920, %v2919
        %v2924 = vpack.c.b16 %v2922, %v2921
        %v2928 = vsel %vm347, %v2903, 0
        %2930 = vmatprep.subr.bf16.mxu0 0
        %2931 = vmatpush1.bf16.msra.mxu0 %v2923
        %2932 = vmatprep.subr.bf16.mxu0 0
        %2933 = vmatpush1.bf16.msra.mxu0 %v2924
        %2934 = vmatprep.subr.bf16.mxu0 0
        %2935 = vmatpush1.bf16.msra.mxu0 0
        %2936 = vmatprep.subr.bf16.mxu0 0
        %2937 = vmatpush1.bf16.msra.mxu0 0
        %2938 = vmatprep.subr.bf16.mxu0 0
        %2939 = vmatpush1.bf16.msra.mxu0 0
        %2940 = vmatprep.subr.bf16.mxu0 0
        %2941 = vmatpush1.bf16.msra.mxu0 0
        %2942 = vmatprep.subr.bf16.mxu0 0
        %2943 = vmatpush1.bf16.msra.mxu0 0
        %2944 = vmatprep.subr.bf16.mxu0 0
        %2945 = vmatpush1.bf16.msra.mxu0 0
        %2946 = vmatprep.subr.bf16.mxu0 0
        %2947 = vmatpush1.bf16.msra.mxu0 0
        %2948 = vmatprep.subr.bf16.mxu0 0
        %2949 = vmatpush1.bf16.msra.mxu0 0
        %2950 = vmatprep.subr.bf16.mxu0 0
        %2951 = vmatpush1.bf16.msra.mxu0 0
        %2952 = vmatprep.subr.bf16.mxu0 0
        %2953 = vmatpush1.bf16.msra.mxu0 0
        %2954 = vmatprep.subr.bf16.mxu0 0
        %2955 = vmatpush1.bf16.msra.mxu0 0
        %2956 = vmatprep.subr.bf16.mxu0 0
        %2957 = vmatpush1.bf16.msra.mxu0 0
        %2958 = vmatprep.subr.bf16.mxu0 0
        %2959 = vmatpush1.bf16.msra.mxu0 0
        %2960 = vmatprep.subr.bf16.mxu0 0
        %2961 = vmatpush1.bf16.msra.mxu0 0
        %2962 = vmatprep.mubr.bf16.mxu0 0
        %2963 = vmatmul.mubr.bf16.gmra.mrb[0].mxu0 %v2928
        %v2964 = vpop.f32.mrb[0].mxu0
        %v2965 = vadd.f32 %v2913, %v2964
        %v2966 = vpop.f32.mrb[0].mxu0
        %v2967 = vpop.f32.mrb[0].mxu0
        %v2968 = vadd.f32 %v2913, %v2967
        %v2969 = vpop.f32.mrb[0].mxu0
        %2970 = vdwg.mxu0
        %v2971 = vmax.f32 %v2965, 0.0
        %v2972 = vmax.f32 %v2968, 0.0
        %v2973 = vpack.c.bf16 %v2972, %v2971
        %v2974 = vld [vmem:[%s6] sm:$0xf]
        %v2975 = vld [vmem:[%s6 + $0x4] sm:$0xf]
        %v2976 = vld [vmem:[%s6 + $0x8] sm:$0xf]
        %v2977 = vld [vmem:[%s6 + $0xc] sm:$0xf]
        %v2978 = vld [vmem:[%s6 + $0x10] sm:$0xf]
        %v2979 = vld [vmem:[%s6 + $0x14] sm:$0xf]
        %v2980 = vld [vmem:[%s6 + $0x18] sm:$0xf]
        %v2981 = vld [vmem:[%s6 + $0x1c] sm:$0xf]
        %v2982 = vld [vmem:[%s7 + $0x3] sm:$0x1]
        %v2983 = vlaneseq
        %v2984 = vshrl.u32 %v2983, 7
        %v2985 = vsub.s32 0, %v2984
        %v2986 = vrot.slane %v2982, %v2985
        %v2995 = vunpack.c.l.b16 %v2974
        %v2996 = vunpack.c.l.b16 %v2975
        %v2997 = vunpack.c.l.b16 %v2976
        %v2998 = vunpack.c.l.b16 %v2977
        %v2999 = vunpack.c.l.b16 %v2978
        %v3000 = vunpack.c.l.b16 %v2979
        %v3001 = vunpack.c.l.b16 %v2980
        %v3002 = vunpack.c.l.b16 %v2981
        %v3003 = vpack.c.b16 %v2996, %v2995
        %v3004 = vpack.c.b16 %v2998, %v2997
        %v3005 = vpack.c.b16 %v3000, %v2999
        %v3006 = vpack.c.b16 %v3002, %v3001
        %v3012 = vsel %vm2815, %v2973, 0
        %3014 = vmatprep.subr.bf16.mxu0 0
        %3015 = vmatpush1.bf16.msra.mxu0 %v3003
        %3016 = vmatprep.subr.bf16.mxu0 0
        %3017 = vmatpush1.bf16.msra.mxu0 %v3004
        %3018 = vmatprep.subr.bf16.mxu0 0
        %3019 = vmatpush1.bf16.msra.mxu0 %v3005
        %3020 = vmatprep.subr.bf16.mxu0 0
        %3021 = vmatpush1.bf16.msra.mxu0 %v3006
        %3022 = vmatprep.subr.bf16.mxu0 0
        %3023 = vmatpush1.bf16.msra.mxu0 0
        %3024 = vmatprep.subr.bf16.mxu0 0
        %3025 = vmatpush1.bf16.msra.mxu0 0
        %3026 = vmatprep.subr.bf16.mxu0 0
        %3027 = vmatpush1.bf16.msra.mxu0 0
        %3028 = vmatprep.subr.bf16.mxu0 0
        %3029 = vmatpush1.bf16.msra.mxu0 0
        %3030 = vmatprep.subr.bf16.mxu0 0
        %3031 = vmatpush1.bf16.msra.mxu0 0
        %3032 = vmatprep.subr.bf16.mxu0 0
        %3033 = vmatpush1.bf16.msra.mxu0 0
        %3034 = vmatprep.subr.bf16.mxu0 0
        %3035 = vmatpush1.bf16.msra.mxu0 0
        %3036 = vmatprep.subr.bf16.mxu0 0
        %3037 = vmatpush1.bf16.msra.mxu0 0
        %3038 = vmatprep.subr.bf16.mxu0 0
        %3039 = vmatpush1.bf16.msra.mxu0 0
        %3040 = vmatprep.subr.bf16.mxu0 0
        %3041 = vmatpush1.bf16.msra.mxu0 0
        %3042 = vmatprep.subr.bf16.mxu0 0
        %3043 = vmatpush1.bf16.msra.mxu0 0
        %3044 = vmatprep.subr.bf16.mxu0 0
        %3045 = vmatpush1.bf16.msra.mxu0 0
        %3046 = vmatprep.mubr.bf16.mxu0 0
        %3047 = vmatmul.mubr.bf16.gmra.mrb[0].mxu0 %v3012
        %v3048 = vpop.f32.mrb[0].mxu0
        %v3049 = vadd.f32 %v2986, %v3048
        %v3050 = vpop.f32.mrb[0].mxu0
        %v3051 = vpop.f32.mrb[0].mxu0
        %v3052 = vadd.f32 %v2986, %v3051
        %v3053 = vpop.f32.mrb[0].mxu0
        %3054 = vdwg.mxu0
        %v3055 = vadd.f32 %v2901, %v3049
        %v3056 = vadd.f32 %v2902, %v3052
        %v3057 = vld [vmem:[%s7 + $0x4] sm:$0x1]
        %v3058 = vld [vmem:[%s7 + $0x5] sm:$0x1]
        %v3059 = vsel %vm347, %v3055, 0.0
        %3060 = vadd.xlane.f32.xlu0 %v3059
        %v3061 = vpop.xlane.xlu0 %3060
        %v3062 = vsel %vm347, %v3056, 0.0
        %3063 = vadd.xlane.f32.xlu0 %v3062
        %v3064 = vpop.xlane.xlu0 %3063
        %v3065 = vmul.f32 %v3061, %v2870
        %v3066 = vmul.f32 %v3064, %v2870
        %v3067 = vsub.f32 %v3055, %v3065
        %v3068 = vsub.f32 %v3056, %v3066
        %v3069 = vmul.f32 %v3067, %v3067
        %v3070 = vmul.f32 %v3068, %v3068
        %v3071 = vsel %vm347, %v3069, 0.0
        %3072 = vadd.xlane.f32.xlu0 %v3071
        %v3073 = vpop.xlane.xlu0 %3072
        %v3074 = vsel %vm347, %v3070, 0.0
        %3075 = vadd.xlane.f32.xlu0 %v3074
        %v3076 = vpop.xlane.xlu0 %3075
        %v3077 = vmul.f32 %v3073, %v2870
        %v3078 = vmul.f32 %v3076, %v2870
        %v3079 = vadd.f32 %v3077, 1e-05
        %v3080 = vadd.f32 %v3078, 1e-05
        %v3081 = vrsqrt.pop %v3079
        %v3082 = vrsqrt.pop %v3080
        %v3083 = vmul.f32 %v3067, %v3081
        %v3084 = vmul.f32 %v3068, %v3082
        %v3085 = vlaneseq
        %v3086 = vshrl.u32 %v3085, 7
        %v3087 = vsub.s32 0, %v3086
        %v3088 = vrot.slane %v3057, %v3087
        %v3089 = vmul.f32 %v3083, %v3088
        %v3090 = vmul.f32 %v3084, %v3088
        %v3091 = vlaneseq
        %v3092 = vshrl.u32 %v3091, 7
        %v3093 = vsub.s32 0, %v3092
        %v3094 = vrot.slane %v3058, %v3093
        %v3095 = vadd.f32 %v3089, %v3094
        %v3096 = vadd.f32 %v3090, %v3094
        %3097 = vst.msk [vmem:[%s299] sm:$0xff] %vm347, %v3095
        %3098 = vst.msk [vmem:[%s299 + $0x8] sm:$0xff] %vm347, %v3096
        %s3099 = sand.u32 %s203, 1
        %s3100 = scalar_lea.sflag [#allocation3], %s3099
        %s3101 = sand.u32 %s203, 1
        %s3102 = smul.addr %s3101, 16
        %s3103 = scalar_lea.vmem [#allocation2], %s3102
        // Predicated region
        $region53: #{tpu_custom_call.1} parent=51 // pred_check
          %p3104 = pneg %p213
        $region54: #{tpu_custom_call.1} parent=51 // pred_check_branch
          %3106 = sbr.rel (%p3104) target = $region56
        $region55: #{tpu_custom_call.1} parent=51 // pred_region
          %s3107 = smul.u32 2, %s22
          %s3109 = ssub.s32 256, 256
          %3110 = vsyncadd %s3100, %s3109
          %s3111 = smul.addr %s3107, 128
          %s3112 = scalar_lea.hbm %s8, %s3111
          %s3113 = sshll.u32 %s3103, 4
          %s3114 = int_to_ptr.vmem [resolvable:$true] %s3113
          %3119 = dma.vmem_to_hbm [thread:$0]  %s3114, 256, %s3112, %s3100, 128, 128, 8
        $region56: #{tpu_custom_call.1} parent=51 // pred_fallthru
          _
      $region52: #{tpu_custom_call.1} parent=5 // pred_fallthru
        _
      %p3120 = scmp.le.s32.totalorder 2, %s17
      // Predicated region
      $region57: #{tpu_custom_call.1} parent=5 // pred_check
        %p3121 = pneg %p3120
      $region58: #{tpu_custom_call.1} parent=5 // pred_check_branch
        %3123 = sbr.rel (%p3121) target = $region60
      $region59: #{tpu_custom_call.1} parent=5 // pred_region
        %s3124 = ssub.s32 %s17, 2
        // Predicated region
        $region61: #{tpu_custom_call.1} parent=59 // pred_check
          %p3125 = pneg %p219
        $region62: #{tpu_custom_call.1} parent=59 // pred_check_branch
          %3127 = sbr.rel (%p3125) target = $region64
        $region63: #{tpu_custom_call.1} parent=59 // pred_region
          %s3128 = sand.u32 %s204, 1
          %s3129 = scalar_lea.sflag [#allocation3], %s3128
          %s3130 = sand.u32 %s204, 1
          %s3131 = smul.addr %s3130, 16
          %s3132 = scalar_lea.vmem [#allocation2], %s3131
          %3133 = dma.done %s3129, 256
        $region64: #{tpu_custom_call.1} parent=59 // pred_fallthru
          _
      $region60: #{tpu_custom_call.1} parent=5 // pred_fallthru
        _
    $region6: #{tpu_custom_call.1} parent=1 // loop_footer
      %s21 = sadd.s32 1, %s17
    $region7: #{tpu_custom_call.1} parent=1 // loop_footer_branch
      %16 = sbr.rel target = $region3
    $region8: #{tpu_custom_call.1} parent=1 // loop_exit
      _
    %3134 = vsyncpa [#allocation3], 1
    %s3135 = scalar_lea.sflag [#allocation3], 1
    %3136 = vsyncpa %s3135, 1

</llo_original>
